<compile_context>
chip_gen: v7x
topology: tpu7x:2x2x1
jax: 0.10.0
libtpu: 0.0.40
codegen_flags: <defaults>
</compile_context>

<pallas_src>
import math
import functools

import jax
import jax.numpy as jnp
from jax.experimental import pallas as pl
from jax.experimental.pallas import tpu as pltpu

# ---------------- synthetic small config ----------------
B = 2            # batch (dialog turns)
S = 8            # sequence length
H = 32           # hidden size
NH = 4           # attention heads
DH = H // NH     # head size
I = 64           # intermediate size
L = 2            # num hidden layers
BS = B * S
EPS = 1e-12      # layer_norm_eps
SQRT_DH = math.sqrt(DH)


def _sigmoid(x):
    return 1.0 / (1.0 + jnp.exp(-x))


def _softmax_last(x):
    m = jnp.max(x, axis=-1, keepdims=True)
    e = jnp.exp(x - m)
    return e / jnp.sum(e, axis=-1, keepdims=True)


def _layer_norm(x, gamma, beta):
    mu = jnp.mean(x, axis=-1, keepdims=True)
    var = jnp.mean(jnp.square(x - mu), axis=-1, keepdims=True)
    return (x - mu) * jax.lax.rsqrt(var + EPS) * gamma + beta


def _gelu(x):
    # TODO(synk): HF default hidden_act='gelu' is the exact erf gelu; the tanh
    # approximation is used here for guaranteed Mosaic lowering.
    c = math.sqrt(2.0 / math.pi)
    return 0.5 * x * (1.0 + jnp.tanh(c * (x + 0.044715 * x * x * x)))


# ------------------------------------------------------------------
# Pallas kernel: one grid step == one RobertaLayer
# ------------------------------------------------------------------
def encoder_kernel(hid_ref, mask_ref,
                   wq_ref, bq_ref, wk_ref, bk_ref, wv_ref, bv_ref,
                   wo_ref, bo_ref, g1_ref, be1_ref,
                   wi_ref, bi_ref, wo2_ref, bo2_ref, g2_ref, be2_ref,
                   wih_r_ref, wih_x_ref, whh_ref, bih_ref, bhh_ref,
                   out_ref):
    l = pl.program_id(0)
    nlayers = pl.num_programs(0)

    # out_ref doubles as the layer-to-layer carry (constant block index => the
    # buffer stays resident in VMEM; HBM writeback happens once at grid end).
    @pl.when(l == 0)
    def _():
        out_ref[...] = hid_ref[...]

    x2 = out_ref[...]                    # (BS, H) hidden entering this layer
    mask = mask_ref[...]                 # (B, S) additive attention mask

    wq, bq = wq_ref[0], bq_ref[0]
    wk, bk = wk_ref[0], bk_ref[0]
    wv, bv = wv_ref[0], bv_ref[0]
    wo, bo = wo_ref[0], bo_ref[0]
    g1, be1 = g1_ref[0], be1_ref[0]
    wi, bi = wi_ref[0], bi_ref[0]
    wo2, bo2 = wo2_ref[0], bo2_ref[0]
    g2, be2 = g2_ref[0], be2_ref[0]

    # ---- self-attention: fused projections over all B*S rows ----
    q2 = jnp.dot(x2, wq, preferred_element_type=jnp.float32) + bq
    k2 = jnp.dot(x2, wk, preferred_element_type=jnp.float32) + bk
    v2 = jnp.dot(x2, wv, preferred_element_type=jnp.float32) + bv
    q3 = q2.reshape(B, S, H)
    k3 = k2.reshape(B, S, H)
    v3 = v2.reshape(B, S, H)

    ctx_heads = []
    for hh in range(NH):
        sl = slice(hh * DH, (hh + 1) * DH)
        qh, kh, vh = q3[:, :, sl], k3[:, :, sl], v3[:, :, sl]
        scores = jnp.einsum('bqd,bkd->bqk', qh, kh,
                            preferred_element_type=jnp.float32) / SQRT_DH
        scores = scores + mask[:, None, :]
        probs = _softmax_last(scores)
        ctx_heads.append(jnp.einsum('bqk,bkd->bqd', probs, vh,
                                    preferred_element_type=jnp.float32))
    ctx2 = jnp.concatenate(ctx_heads, axis=-1).reshape(BS, H)
    attn2 = jnp.dot(ctx2, wo, preferred_element_type=jnp.float32) + bo

    h1 = _layer_norm(attn2 + x2, g1, be1)

    # ---- feed-forward, fused over all B*S rows ----
    inter = _gelu(jnp.dot(h1, wi, preferred_element_type=jnp.float32) + bi)
    ffn = jnp.dot(inter, wo2, preferred_element_type=jnp.float32) + bo2
    pre2 = ffn + h1

    # ---- last layer: FlowRNN (GRU over the dialog-turn axis) added pre-LN ----
    @pl.when(l == nlayers - 1)
    def _():
        # Hoisted non-recurrent input term: one fused matmul per gate.
        gix_r = jnp.dot(x2, wih_x_ref[0], preferred_element_type=jnp.float32) + bih_ref[0]
        gix_z = jnp.dot(x2, wih_x_ref[1], preferred_element_type=jnp.float32) + bih_ref[1]
        gix_n = jnp.dot(x2, wih_x_ref[2], preferred_element_type=jnp.float32) + bih_ref[2]
        wir_r, wir_z, wir_n = wih_r_ref[0], wih_r_ref[1], wih_r_ref[2]
        whh_r, whh_z, whh_n = whh_ref[0], whh_ref[1], whh_ref[2]
        bhh_r, bhh_z, bhh_n = bhh_ref[0], bhh_ref[1], bhh_ref[2]

        h_prev = jnp.zeros((S, H), jnp.float32)
        residual = jnp.zeros((S, H), jnp.float32)
        flow_rows = []
        for b in range(B):               # serial scan over the turn axis
            rs = slice(b * S, (b + 1) * S)
            if b == 0:                   # residual == h_prev == 0: skip matmuls
                gi_r, gi_z, gi_n = gix_r[rs], gix_z[rs], gix_n[rs]
                gh_r, gh_z, gh_n = bhh_r, bhh_z, bhh_n
            else:
                gi_r = gix_r[rs] + jnp.dot(residual, wir_r, preferred_element_type=jnp.float32)
                gi_z = gix_z[rs] + jnp.dot(residual, wir_z, preferred_element_type=jnp.float32)
                gi_n = gix_n[rs] + jnp.dot(residual, wir_n, preferred_element_type=jnp.float32)
                gh_r = jnp.dot(h_prev, whh_r, preferred_element_type=jnp.float32) + bhh_r
                gh_z = jnp.dot(h_prev, whh_z, preferred_element_type=jnp.float32) + bhh_z
                gh_n = jnp.dot(h_prev, whh_n, preferred_element_type=jnp.float32) + bhh_n
            r = _sigmoid(gi_r + gh_r)
            z = _sigmoid(gi_z + gh_z)
            n = jnp.tanh(gi_n + r * gh_n)
            h_new = (1.0 - z) * n + z * h_prev
            flow_rows.append(h_new)          # GRU output == new hidden (seq_len=1)
            residual = h_new - h_prev        # flowdelta
            h_prev = h_new
        flow2 = jnp.concatenate(flow_rows, axis=0)   # (BS, H)
        out_ref[...] = _layer_norm(pre2 + flow2, g2, be2)

    @pl.when(l != nlayers - 1)
    def _():
        out_ref[...] = _layer_norm(pre2, g2, be2)


# ------------------------------------------------------------------
# wrapper
# ------------------------------------------------------------------
def roberta_encoder_pallas(hidden, mask, p):
    hid2 = hidden.reshape(BS, H)

    per_layer = lambda d0, d1: pl.BlockSpec((1, d0, d1), lambda l: (l, 0, 0))
    gru_full = lambda d0, d1: pl.BlockSpec((3, d0, d1), lambda l: (0, 0, 0))

    in_specs = [
        pl.BlockSpec((BS, H), lambda l: (0, 0)),        # hidden_states (2-D slab)
        pl.BlockSpec((B, S), lambda l: (0, 0)),         # attention_mask
        per_layer(H, H), per_layer(1, H),               # wq, bq
        per_layer(H, H), per_layer(1, H),               # wk, bk
        per_layer(H, H), per_layer(1, H),               # wv, bv
        per_layer(H, H), per_layer(1, H),               # wo, bo
        per_layer(1, H), per_layer(1, H),               # ln1 gamma/beta
        per_layer(H, I), per_layer(1, I),               # wi, bi
        per_layer(I, H), per_layer(1, H),               # wo2, bo2
        per_layer(1, H), per_layer(1, H),               # ln2 gamma/beta
        gru_full(H, H), gru_full(H, H), gru_full(H, H),  # GRU W_ih_res, W_ih_x, W_hh (r/z/n)
        gru_full(1, H), gru_full(1, H),                  # GRU b_ih, b_hh (r/z/n)
    ]
    grid_spec = pltpu.PrefetchScalarGridSpec(
        num_scalar_prefetch=0,
        grid=(L,),
        in_specs=in_specs,
        out_specs=pl.BlockSpec((BS, H), lambda l: (0, 0)),
    )

    # advisory cost estimate for the XLA scheduler
    param_bytes = sum(int(v.size) * v.dtype.itemsize for v in p.values())
    flops = (L * (8 * BS * H * H            # QKV + output projection
                  + 4 * B * S * S * H       # scores + context (all heads)
                  + 8 * BS * H * I)         # FFN
             + 6 * BS * H * H               # hoisted GRU input term
             + 12 * (B - 1) * S * H * H)    # GRU recurrence
    transcendentals = L * (B * S * S + BS * I) + 3 * B * S * H
    bytes_accessed = param_bytes + 4 * (2 * BS * H + B * S)

    fn = pl.pallas_call(
        encoder_kernel,
        grid_spec=grid_spec,
        out_shape=jax.ShapeDtypeStruct((BS, H), jnp.float32),
        compiler_params=pltpu.CompilerParams(
            dimension_semantics=("arbitrary",)),
        cost_estimate=pl.CostEstimate(flops=flops,
                                      transcendentals=transcendentals,
                                      bytes_accessed=bytes_accessed),
    )
    out2 = fn(hid2, mask,
              p['wq'], p['bq'], p['wk'], p['bk'], p['wv'], p['bv'],
              p['wo'], p['bo'], p['g1'], p['be1'],
              p['wi'], p['bi'], p['wo2'], p['bo2'], p['g2'], p['be2'],
              p['wih_r'], p['wih_x'], p['whh'], p['bih'], p['bhh'])
    return out2.reshape(B, S, H)


def make_params(key):
    keys = iter(jax.random.split(key, 20))

    def w(shape, scale=0.02):
        return (scale * jax.random.normal(next(keys), shape)).astype(jnp.float32)

    return dict(
        wq=w((L, H, H)), bq=w((L, 1, H)),
        wk=w((L, H, H)), bk=w((L, 1, H)),
        wv=w((L, H, H)), bv=w((L, 1, H)),
        wo=w((L, H, H)), bo=w((L, 1, H)),
        g1=jnp.ones((L, 1, H), jnp.float32), be1=jnp.zeros((L, 1, H), jnp.float32),
        wi=w((L, H, I)), bi=w((L, 1, I)),
        wo2=w((L, I, H)), bo2=w((L, 1, H)),
        g2=jnp.ones((L, 1, H), jnp.float32), be2=jnp.zeros((L, 1, H), jnp.float32),
        # GRU gate weights pre-split as (3, ...) with gate order r, z, n
        wih_r=w((3, H, H), 0.1), wih_x=w((3, H, H), 0.1),
        whh=w((3, H, H), 0.1),
        bih=w((3, 1, H), 0.1), bhh=w((3, 1, H), 0.1),
    )


# ------------------------------------------------------------------
# pure-JAX reference (same math, high-precision matmuls)
# ------------------------------------------------------------------
def encoder_reference(hidden, mask, p):
    mm = functools.partial(jnp.matmul, precision=jax.lax.Precision.HIGHEST)

    def flow_gru(h_in):
        outs = []
        h_prev = jnp.zeros((S, H), jnp.float32)
        residual = jnp.zeros((S, H), jnp.float32)
        for b in range(B):
            x_b = h_in[b]
            gi = [mm(residual, p['wih_r'][g]) + mm(x_b, p['wih_x'][g]) + p['bih'][g]
                  for g in range(3)]
            gh = [mm(h_prev, p['whh'][g]) + p['bhh'][g] for g in range(3)]
            r = _sigmoid(gi[0] + gh[0])
            z = _sigmoid(gi[1] + gh[1])
            n = jnp.tanh(gi[2] + r * gh[2])
            h_new = (1.0 - z) * n + z * h_prev
            outs.append(h_new)
            residual = h_new - h_prev
            h_prev = h_new
        return jnp.stack(outs, axis=0)

    h = hidden
    for l in range(L):
        flow = flow_gru(h) if l == L - 1 else jnp.zeros_like(h)
        new_h = []
        for b in range(B):
            x = h[b]
            q = mm(x, p['wq'][l]) + p['bq'][l]
            k = mm(x, p['wk'][l]) + p['bk'][l]
            v = mm(x, p['wv'][l]) + p['bv'][l]
            attn = jnp.broadcast_to(p['bo'][l], (S, H))
            for hh in range(NH):
                sl = slice(hh * DH, (hh + 1) * DH)
                scores = mm(q[:, sl], k[:, sl].T) / SQRT_DH + mask[b][None, :]
                probs = _softmax_last(scores)
                attn = attn + mm(mm(probs, v[:, sl]), p['wo'][l][sl, :])
            h1 = _layer_norm(attn + x, p['g1'][l], p['be1'][l])
            inter = _gelu(mm(h1, p['wi'][l]) + p['bi'][l])
            out = mm(inter, p['wo2'][l]) + p['bo2'][l]
            h2 = _layer_norm(out + h1 + flow[b], p['g2'][l], p['be2'][l])
            new_h.append(h2)
        h = jnp.stack(new_h, axis=0)
    return h


if __name__ == "__main__":
    key = jax.random.PRNGKey(0)
    kx, kp = jax.random.split(key)
    hidden = jax.random.normal(kx, (B, S, H), dtype=jnp.float32)
    # additive attention mask; mask out the last two key positions of batch 1
    mask = jnp.zeros((B, S), jnp.float32).at[1, S - 2:].set(-10000.0)
    params = make_params(kp)

    out = roberta_encoder_pallas(hidden, mask, params)
    out = jax.block_until_ready(out)
    assert out.shape == (B, S, H)

    ref = encoder_reference(hidden, mask, params)
    err = float(jnp.max(jnp.abs(out - ref)))
    if err > 5e-3:
        raise AssertionError(f"mismatch vs reference: max abs err = {err}")
    print("KERNEL_OK")
</pallas_src>

<mosaic_0001>
module attributes {stable_mosaic.version = 11 : i64} {
  func.func @encoder_kernel(%arg0: i32, %arg1: memref<16x32xf32, #tpu.memory_space<vmem>>, %arg2: memref<2x8xf32, #tpu.memory_space<vmem>>, %arg3: memref<1x32x32xf32, #tpu.memory_space<vmem>>, %arg4: memref<1x1x32xf32, #tpu.memory_space<vmem>>, %arg5: memref<1x32x32xf32, #tpu.memory_space<vmem>>, %arg6: memref<1x1x32xf32, #tpu.memory_space<vmem>>, %arg7: memref<1x32x32xf32, #tpu.memory_space<vmem>>, %arg8: memref<1x1x32xf32, #tpu.memory_space<vmem>>, %arg9: memref<1x32x32xf32, #tpu.memory_space<vmem>>, %arg10: memref<1x1x32xf32, #tpu.memory_space<vmem>>, %arg11: memref<1x1x32xf32, #tpu.memory_space<vmem>>, %arg12: memref<1x1x32xf32, #tpu.memory_space<vmem>>, %arg13: memref<1x32x64xf32, #tpu.memory_space<vmem>>, %arg14: memref<1x1x64xf32, #tpu.memory_space<vmem>>, %arg15: memref<1x64x32xf32, #tpu.memory_space<vmem>>, %arg16: memref<1x1x32xf32, #tpu.memory_space<vmem>>, %arg17: memref<1x1x32xf32, #tpu.memory_space<vmem>>, %arg18: memref<1x1x32xf32, #tpu.memory_space<vmem>>, %arg19: memref<3x32x32xf32, #tpu.memory_space<vmem>>, %arg20: memref<3x32x32xf32, #tpu.memory_space<vmem>>, %arg21: memref<3x32x32xf32, #tpu.memory_space<vmem>>, %arg22: memref<3x1x32xf32, #tpu.memory_space<vmem>>, %arg23: memref<3x1x32xf32, #tpu.memory_space<vmem>>, %arg24: memref<16x32xf32, #tpu.memory_space<vmem>>) attributes {dimension_semantics = [#tpu.dimension_semantics<arbitrary>], iteration_bounds = array<i64: 2>, scalar_prefetch = 0 : i64, scratch_operands = 0 : i64, tpu.core_type = #tpu.core_type<tc>, window_params = [{pipeline_mode = #tpu.pipeline_mode<synchronous>, transform_indices = @transform_0, window_bounds = array<i64: 16, 32>}, {pipeline_mode = #tpu.pipeline_mode<synchronous>, transform_indices = @transform_1, window_bounds = array<i64: 2, 8>}, {transform_indices = @transform_2, window_bounds = array<i64: 1, 32, 32>}, {transform_indices = @transform_3, window_bounds = array<i64: 1, 1, 32>}, {transform_indices = @transform_4, window_bounds = array<i64: 1, 32, 32>}, {transform_indices = @transform_5, window_bounds = array<i64: 1, 1, 32>}, {transform_indices = @transform_6, window_bounds = array<i64: 1, 32, 32>}, {transform_indices = @transform_7, window_bounds = array<i64: 1, 1, 32>}, {transform_indices = @transform_8, window_bounds = array<i64: 1, 32, 32>}, {transform_indices = @transform_9, window_bounds = array<i64: 1, 1, 32>}, {transform_indices = @transform_10, window_bounds = array<i64: 1, 1, 32>}, {transform_indices = @transform_11, window_bounds = array<i64: 1, 1, 32>}, {transform_indices = @transform_12, window_bounds = array<i64: 1, 32, 64>}, {transform_indices = @transform_13, window_bounds = array<i64: 1, 1, 64>}, {transform_indices = @transform_14, window_bounds = array<i64: 1, 64, 32>}, {transform_indices = @transform_15, window_bounds = array<i64: 1, 1, 32>}, {transform_indices = @transform_16, window_bounds = array<i64: 1, 1, 32>}, {transform_indices = @transform_17, window_bounds = array<i64: 1, 1, 32>}, {pipeline_mode = #tpu.pipeline_mode<synchronous>, transform_indices = @transform_18, window_bounds = array<i64: 3, 32, 32>}, {pipeline_mode = #tpu.pipeline_mode<synchronous>, transform_indices = @transform_19, window_bounds = array<i64: 3, 32, 32>}, {pipeline_mode = #tpu.pipeline_mode<synchronous>, transform_indices = @transform_20, window_bounds = array<i64: 3, 32, 32>}, {pipeline_mode = #tpu.pipeline_mode<synchronous>, transform_indices = @transform_21, window_bounds = array<i64: 3, 1, 32>}, {pipeline_mode = #tpu.pipeline_mode<synchronous>, transform_indices = @transform_22, window_bounds = array<i64: 3, 1, 32>}, {pipeline_mode = #tpu.pipeline_mode<synchronous>, transform_indices = @transform_23, window_bounds = array<i64: 16, 32>}]} {
    %c0_i32 = arith.constant 0 : i32
    %0 = arith.cmpi eq, %arg0, %c0_i32 : i32
    %1 = arith.extui %0 : i1 to i32
    %c0_i32_0 = arith.constant 0 : i32
    %2 = arith.cmpi ne, %1, %c0_i32_0 : i32
    scf.if %2 {
      %c0_89 = arith.constant 0 : index
      %c0_90 = arith.constant 0 : index
      %179 = vector.load %arg1[%c0_89, %c0_90] : memref<16x32xf32, #tpu.memory_space<vmem>>, vector<16x32xf32>
      %c0_91 = arith.constant 0 : index
      %c0_92 = arith.constant 0 : index
      %180 = vector.load %arg24[%c0_91, %c0_92] : memref<16x32xf32, #tpu.memory_space<vmem>>, vector<16x32xf32>
      tpu.vector_store %arg24[%c0_91, %c0_92], %179 {strides = array<i32>} : memref<16x32xf32, #tpu.memory_space<vmem>>, vector<16x32xf32>,
    } else {
    }
    %c0 = arith.constant 0 : index
    %c0_1 = arith.constant 0 : index
    %3 = vector.load %arg24[%c0, %c0_1] : memref<16x32xf32, #tpu.memory_space<vmem>>, vector<16x32xf32>
    %c0_2 = arith.constant 0 : index
    %c0_3 = arith.constant 0 : index
    %4 = vector.load %arg2[%c0_2, %c0_3] : memref<2x8xf32, #tpu.memory_space<vmem>>, vector<2x8xf32>
    %c0_4 = arith.constant 0 : index
    %c0_5 = arith.constant 0 : index
    %c0_6 = arith.constant 0 : index
    %5 = vector.load %arg3[%c0_4, %c0_5, %c0_6] : memref<1x32x32xf32, #tpu.memory_space<vmem>>, vector<1x32x32xf32>
    %6 = vector.shape_cast %5 : vector<1x32x32xf32> to vector<32x32xf32>
    %c0_7 = arith.constant 0 : index
    %c0_8 = arith.constant 0 : index
    %c0_9 = arith.constant 0 : index
    %7 = vector.load %arg4[%c0_7, %c0_8, %c0_9] : memref<1x1x32xf32, #tpu.memory_space<vmem>>, vector<1x1x32xf32>
    %8 = vector.shape_cast %7 : vector<1x1x32xf32> to vector<1x32xf32>
    %c0_10 = arith.constant 0 : index
    %c0_11 = arith.constant 0 : index
    %c0_12 = arith.constant 0 : index
    %9 = vector.load %arg5[%c0_10, %c0_11, %c0_12] : memref<1x32x32xf32, #tpu.memory_space<vmem>>, vector<1x32x32xf32>
    %10 = vector.shape_cast %9 : vector<1x32x32xf32> to vector<32x32xf32>
    %c0_13 = arith.constant 0 : index
    %c0_14 = arith.constant 0 : index
    %c0_15 = arith.constant 0 : index
    %11 = vector.load %arg6[%c0_13, %c0_14, %c0_15] : memref<1x1x32xf32, #tpu.memory_space<vmem>>, vector<1x1x32xf32>
    %12 = vector.shape_cast %11 : vector<1x1x32xf32> to vector<1x32xf32>
    %c0_16 = arith.constant 0 : index
    %c0_17 = arith.constant 0 : index
    %c0_18 = arith.constant 0 : index
    %13 = vector.load %arg7[%c0_16, %c0_17, %c0_18] : memref<1x32x32xf32, #tpu.memory_space<vmem>>, vector<1x32x32xf32>
    %14 = vector.shape_cast %13 : vector<1x32x32xf32> to vector<32x32xf32>
    %c0_19 = arith.constant 0 : index
    %c0_20 = arith.constant 0 : index
    %c0_21 = arith.constant 0 : index
    %15 = vector.load %arg8[%c0_19, %c0_20, %c0_21] : memref<1x1x32xf32, #tpu.memory_space<vmem>>, vector<1x1x32xf32>
    %16 = vector.shape_cast %15 : vector<1x1x32xf32> to vector<1x32xf32>
    %c0_22 = arith.constant 0 : index
    %c0_23 = arith.constant 0 : index
    %c0_24 = arith.constant 0 : index
    %17 = vector.load %arg9[%c0_22, %c0_23, %c0_24] : memref<1x32x32xf32, #tpu.memory_space<vmem>>, vector<1x32x32xf32>
    %18 = vector.shape_cast %17 : vector<1x32x32xf32> to vector<32x32xf32>
    %c0_25 = arith.constant 0 : index
    %c0_26 = arith.constant 0 : index
    %c0_27 = arith.constant 0 : index
    %19 = vector.load %arg10[%c0_25, %c0_26, %c0_27] : memref<1x1x32xf32, #tpu.memory_space<vmem>>, vector<1x1x32xf32>
    %20 = vector.shape_cast %19 : vector<1x1x32xf32> to vector<1x32xf32>
    %c0_28 = arith.constant 0 : index
    %c0_29 = arith.constant 0 : index
    %c0_30 = arith.constant 0 : index
    %21 = vector.load %arg11[%c0_28, %c0_29, %c0_30] : memref<1x1x32xf32, #tpu.memory_space<vmem>>, vector<1x1x32xf32>
    %22 = vector.shape_cast %21 : vector<1x1x32xf32> to vector<1x32xf32>
    %c0_31 = arith.constant 0 : index
    %c0_32 = arith.constant 0 : index
    %c0_33 = arith.constant 0 : index
    %23 = vector.load %arg12[%c0_31, %c0_32, %c0_33] : memref<1x1x32xf32, #tpu.memory_space<vmem>>, vector<1x1x32xf32>
    %24 = vector.shape_cast %23 : vector<1x1x32xf32> to vector<1x32xf32>
    %c0_34 = arith.constant 0 : index
    %c0_35 = arith.constant 0 : index
    %c0_36 = arith.constant 0 : index
    %25 = vector.load %arg13[%c0_34, %c0_35, %c0_36] : memref<1x32x64xf32, #tpu.memory_space<vmem>>, vector<1x32x64xf32>
    %26 = vector.shape_cast %25 : vector<1x32x64xf32> to vector<32x64xf32>
    %c0_37 = arith.constant 0 : index
    %c0_38 = arith.constant 0 : index
    %c0_39 = arith.constant 0 : index
    %27 = vector.load %arg14[%c0_37, %c0_38, %c0_39] : memref<1x1x64xf32, #tpu.memory_space<vmem>>, vector<1x1x64xf32>
    %28 = vector.shape_cast %27 : vector<1x1x64xf32> to vector<1x64xf32>
    %c0_40 = arith.constant 0 : index
    %c0_41 = arith.constant 0 : index
    %c0_42 = arith.constant 0 : index
    %29 = vector.load %arg15[%c0_40, %c0_41, %c0_42] : memref<1x64x32xf32, #tpu.memory_space<vmem>>, vector<1x64x32xf32>
    %30 = vector.shape_cast %29 : vector<1x64x32xf32> to vector<64x32xf32>
    %c0_43 = arith.constant 0 : index
    %c0_44 = arith.constant 0 : index
    %c0_45 = arith.constant 0 : index
    %31 = vector.load %arg16[%c0_43, %c0_44, %c0_45] : memref<1x1x32xf32, #tpu.memory_space<vmem>>, vector<1x1x32xf32>
    %32 = vector.shape_cast %31 : vector<1x1x32xf32> to vector<1x32xf32>
    %c0_46 = arith.constant 0 : index
    %c0_47 = arith.constant 0 : index
    %c0_48 = arith.constant 0 : index
    %33 = vector.load %arg17[%c0_46, %c0_47, %c0_48] : memref<1x1x32xf32, #tpu.memory_space<vmem>>, vector<1x1x32xf32>
    %34 = vector.shape_cast %33 : vector<1x1x32xf32> to vector<1x32xf32>
    %c0_49 = arith.constant 0 : index
    %c0_50 = arith.constant 0 : index
    %c0_51 = arith.constant 0 : index
    %35 = vector.load %arg18[%c0_49, %c0_50, %c0_51] : memref<1x1x32xf32, #tpu.memory_space<vmem>>, vector<1x1x32xf32>
    %36 = vector.shape_cast %35 : vector<1x1x32xf32> to vector<1x32xf32>
    %cst = arith.constant dense<0.000000e+00> : vector<16x32xf32>
    %37 = tpu.matmul %3, %6, %cst {dimension_numbers = #tpu.dot_dimension_numbers<[1], [0], [0], [1], [0, 0, 1, 1], [], []>} : vector<16x32xf32>, vector<32x32xf32>, vector<16x32xf32> -> vector<16x32xf32>
    %38 = vector.broadcast %8 : vector<1x32xf32> to vector<16x32xf32>
    %39 = arith.addf %37, %38 : vector<16x32xf32>
    %cst_52 = arith.constant dense<0.000000e+00> : vector<16x32xf32>
    %40 = tpu.matmul %3, %10, %cst_52 {dimension_numbers = #tpu.dot_dimension_numbers<[1], [0], [0], [1], [0, 0, 1, 1], [], []>} : vector<16x32xf32>, vector<32x32xf32>, vector<16x32xf32> -> vector<16x32xf32>
    %41 = vector.broadcast %12 : vector<1x32xf32> to vector<16x32xf32>
    %42 = arith.addf %40, %41 : vector<16x32xf32>
    %cst_53 = arith.constant dense<0.000000e+00> : vector<16x32xf32>
    %43 = tpu.matmul %3, %14, %cst_53 {dimension_numbers = #tpu.dot_dimension_numbers<[1], [0], [0], [1], [0, 0, 1, 1], [], []>} : vector<16x32xf32>, vector<32x32xf32>, vector<16x32xf32> -> vector<16x32xf32>
    %44 = vector.broadcast %16 : vector<1x32xf32> to vector<16x32xf32>
    %45 = arith.addf %43, %44 : vector<16x32xf32>
    %46 = vector.shape_cast %39 : vector<16x32xf32> to vector<2x8x32xf32>
    %47 = vector.shape_cast %42 : vector<16x32xf32> to vector<2x8x32xf32>
    %48 = vector.shape_cast %45 : vector<16x32xf32> to vector<2x8x32xf32>
    %49 = vector.extract_strided_slice %46 {offsets = [0, 0, 0], sizes = [2, 8, 8], strides = [1, 1, 1]} : vector<2x8x32xf32> to vector<2x8x8xf32>
    %50 = vector.extract_strided_slice %47 {offsets = [0, 0, 0], sizes = [2, 8, 8], strides = [1, 1, 1]} : vector<2x8x32xf32> to vector<2x8x8xf32>
    %51 = vector.extract_strided_slice %48 {offsets = [0, 0, 0], sizes = [2, 8, 8], strides = [1, 1, 1]} : vector<2x8x32xf32> to vector<2x8x8xf32>
    "tpu.trace_start"() <{level = 10 : i32, message = "bqd,bkd->bqk"}> : () -> ()
    %cst_54 = arith.constant dense<0.000000e+00> : vector<2x8x8xf32>
    %52 = tpu.matmul %49, %50, %cst_54 {dimension_numbers = #tpu.dot_dimension_numbers<[2], [2], [1], [1], [0, 0, 0, 1, 1, 1], [0], [0]>} : vector<2x8x8xf32>, vector<2x8x8xf32>, vector<2x8x8xf32> -> vector<2x8x8xf32>
    "tpu.trace_stop"() : () -> ()
    %cst_55 = arith.constant 2.82842708 : f32
    %53 = vector.broadcast %cst_55 : f32 to vector<2x8x8xf32>
    %54 = arith.divf %52, %53 : vector<2x8x8xf32>
    %55 = vector.shape_cast %4 : vector<2x8xf32> to vector<2x1x8xf32>
    %56 = vector.broadcast %55 : vector<2x1x8xf32> to vector<2x8x8xf32>
    %57 = arith.addf %54, %56 : vector<2x8x8xf32>
    %cst_56 = arith.constant dense<0xFF800000> : vector<2x8xf32>
    %58 = vector.multi_reduction <maximumf>, %57, %cst_56 [2] : vector<2x8x8xf32> to vector<2x8xf32>
    %59 = vector.shape_cast %58 : vector<2x8xf32> to vector<2x8x1xf32>
    %60 = vector.broadcast %59 : vector<2x8x1xf32> to vector<2x8x8xf32>
    %61 = arith.subf %57, %60 : vector<2x8x8xf32>
    %62 = math.exp %61 : vector<2x8x8xf32>
    %cst_57 = arith.constant dense<0.000000e+00> : vector<2x8xf32>
    %63 = vector.multi_reduction <add>, %62, %cst_57 [2] : vector<2x8x8xf32> to vector<2x8xf32>
    %64 = vector.shape_cast %63 : vector<2x8xf32> to vector<2x8x1xf32>
    %65 = vector.broadcast %64 : vector<2x8x1xf32> to vector<2x8x8xf32>
    %66 = arith.divf %62, %65 : vector<2x8x8xf32>
    "tpu.trace_start"() <{level = 10 : i32, message = "bqk,bkd->bqd"}> : () -> ()
    %cst_58 = arith.constant dense<0.000000e+00> : vector<2x8x8xf32>
    %67 = tpu.matmul %66, %51, %cst_58 {dimension_numbers = #tpu.dot_dimension_numbers<[2], [1], [1], [2], [0, 0, 0, 1, 1, 2], [0], [0]>} : vector<2x8x8xf32>, vector<2x8x8xf32>, vector<2x8x8xf32> -> vector<2x8x8xf32>
    "tpu.trace_stop"() : () -> ()
    %68 = vector.extract_strided_slice %46 {offsets = [0, 0, 8], sizes = [2, 8, 8], strides = [1, 1, 1]} : vector<2x8x32xf32> to vector<2x8x8xf32>
    %69 = vector.extract_strided_slice %47 {offsets = [0, 0, 8], sizes = [2, 8, 8], strides = [1, 1, 1]} : vector<2x8x32xf32> to vector<2x8x8xf32>
    %70 = vector.extract_strided_slice %48 {offsets = [0, 0, 8], sizes = [2, 8, 8], strides = [1, 1, 1]} : vector<2x8x32xf32> to vector<2x8x8xf32>
    "tpu.trace_start"() <{level = 10 : i32, message = "bqd,bkd->bqk"}> : () -> ()
    %cst_59 = arith.constant dense<0.000000e+00> : vector<2x8x8xf32>
    %71 = tpu.matmul %68, %69, %cst_59 {dimension_numbers = #tpu.dot_dimension_numbers<[2], [2], [1], [1], [0, 0, 0, 1, 1, 1], [0], [0]>} : vector<2x8x8xf32>, vector<2x8x8xf32>, vector<2x8x8xf32> -> vector<2x8x8xf32>
    "tpu.trace_stop"() : () -> ()
    %cst_60 = arith.constant 2.82842708 : f32
    %72 = vector.broadcast %cst_60 : f32 to vector<2x8x8xf32>
    %73 = arith.divf %71, %72 : vector<2x8x8xf32>
    %74 = vector.shape_cast %4 : vector<2x8xf32> to vector<2x1x8xf32>
    %75 = vector.broadcast %74 : vector<2x1x8xf32> to vector<2x8x8xf32>
    %76 = arith.addf %73, %75 : vector<2x8x8xf32>
    %cst_61 = arith.constant dense<0xFF800000> : vector<2x8xf32>
    %77 = vector.multi_reduction <maximumf>, %76, %cst_61 [2] : vector<2x8x8xf32> to vector<2x8xf32>
    %78 = vector.shape_cast %77 : vector<2x8xf32> to vector<2x8x1xf32>
    %79 = vector.broadcast %78 : vector<2x8x1xf32> to vector<2x8x8xf32>
    %80 = arith.subf %76, %79 : vector<2x8x8xf32>
    %81 = math.exp %80 : vector<2x8x8xf32>
    %cst_62 = arith.constant dense<0.000000e+00> : vector<2x8xf32>
    %82 = vector.multi_reduction <add>, %81, %cst_62 [2] : vector<2x8x8xf32> to vector<2x8xf32>
    %83 = vector.shape_cast %82 : vector<2x8xf32> to vector<2x8x1xf32>
    %84 = vector.broadcast %83 : vector<2x8x1xf32> to vector<2x8x8xf32>
    %85 = arith.divf %81, %84 : vector<2x8x8xf32>
    "tpu.trace_start"() <{level = 10 : i32, message = "bqk,bkd->bqd"}> : () -> ()
    %cst_63 = arith.constant dense<0.000000e+00> : vector<2x8x8xf32>
    %86 = tpu.matmul %85, %70, %cst_63 {dimension_numbers = #tpu.dot_dimension_numbers<[2], [1], [1], [2], [0, 0, 0, 1, 1, 2], [0], [0]>} : vector<2x8x8xf32>, vector<2x8x8xf32>, vector<2x8x8xf32> -> vector<2x8x8xf32>
    "tpu.trace_stop"() : () -> ()
    %87 = vector.extract_strided_slice %46 {offsets = [0, 0, 16], sizes = [2, 8, 8], strides = [1, 1, 1]} : vector<2x8x32xf32> to vector<2x8x8xf32>
    %88 = vector.extract_strided_slice %47 {offsets = [0, 0, 16], sizes = [2, 8, 8], strides = [1, 1, 1]} : vector<2x8x32xf32> to vector<2x8x8xf32>
    %89 = vector.extract_strided_slice %48 {offsets = [0, 0, 16], sizes = [2, 8, 8], strides = [1, 1, 1]} : vector<2x8x32xf32> to vector<2x8x8xf32>
    "tpu.trace_start"() <{level = 10 : i32, message = "bqd,bkd->bqk"}> : () -> ()
    %cst_64 = arith.constant dense<0.000000e+00> : vector<2x8x8xf32>
    %90 = tpu.matmul %87, %88, %cst_64 {dimension_numbers = #tpu.dot_dimension_numbers<[2], [2], [1], [1], [0, 0, 0, 1, 1, 1], [0], [0]>} : vector<2x8x8xf32>, vector<2x8x8xf32>, vector<2x8x8xf32> -> vector<2x8x8xf32>
    "tpu.trace_stop"() : () -> ()
    %cst_65 = arith.constant 2.82842708 : f32
    %91 = vector.broadcast %cst_65 : f32 to vector<2x8x8xf32>
    %92 = arith.divf %90, %91 : vector<2x8x8xf32>
    %93 = vector.shape_cast %4 : vector<2x8xf32> to vector<2x1x8xf32>
    %94 = vector.broadcast %93 : vector<2x1x8xf32> to vector<2x8x8xf32>
    %95 = arith.addf %92, %94 : vector<2x8x8xf32>
    %cst_66 = arith.constant dense<0xFF800000> : vector<2x8xf32>
    %96 = vector.multi_reduction <maximumf>, %95, %cst_66 [2] : vector<2x8x8xf32> to vector<2x8xf32>
    %97 = vector.shape_cast %96 : vector<2x8xf32> to vector<2x8x1xf32>
    %98 = vector.broadcast %97 : vector<2x8x1xf32> to vector<2x8x8xf32>
    %99 = arith.subf %95, %98 : vector<2x8x8xf32>
    %100 = math.exp %99 : vector<2x8x8xf32>
    %cst_67 = arith.constant dense<0.000000e+00> : vector<2x8xf32>
    %101 = vector.multi_reduction <add>, %100, %cst_67 [2] : vector<2x8x8xf32> to vector<2x8xf32>
    %102 = vector.shape_cast %101 : vector<2x8xf32> to vector<2x8x1xf32>
    %103 = vector.broadcast %102 : vector<2x8x1xf32> to vector<2x8x8xf32>
    %104 = arith.divf %100, %103 : vector<2x8x8xf32>
    "tpu.trace_start"() <{level = 10 : i32, message = "bqk,bkd->bqd"}> : () -> ()
    %cst_68 = arith.constant dense<0.000000e+00> : vector<2x8x8xf32>
    %105 = tpu.matmul %104, %89, %cst_68 {dimension_numbers = #tpu.dot_dimension_numbers<[2], [1], [1], [2], [0, 0, 0, 1, 1, 2], [0], [0]>} : vector<2x8x8xf32>, vector<2x8x8xf32>, vector<2x8x8xf32> -> vector<2x8x8xf32>
    "tpu.trace_stop"() : () -> ()
    %106 = vector.extract_strided_slice %46 {offsets = [0, 0, 24], sizes = [2, 8, 8], strides = [1, 1, 1]} : vector<2x8x32xf32> to vector<2x8x8xf32>
    %107 = vector.extract_strided_slice %47 {offsets = [0, 0, 24], sizes = [2, 8, 8], strides = [1, 1, 1]} : vector<2x8x32xf32> to vector<2x8x8xf32>
    %108 = vector.extract_strided_slice %48 {offsets = [0, 0, 24], sizes = [2, 8, 8], strides = [1, 1, 1]} : vector<2x8x32xf32> to vector<2x8x8xf32>
    "tpu.trace_start"() <{level = 10 : i32, message = "bqd,bkd->bqk"}> : () -> ()
    %cst_69 = arith.constant dense<0.000000e+00> : vector<2x8x8xf32>
    %109 = tpu.matmul %106, %107, %cst_69 {dimension_numbers = #tpu.dot_dimension_numbers<[2], [2], [1], [1], [0, 0, 0, 1, 1, 1], [0], [0]>} : vector<2x8x8xf32>, vector<2x8x8xf32>, vector<2x8x8xf32> -> vector<2x8x8xf32>
    "tpu.trace_stop"() : () -> ()
    %cst_70 = arith.constant 2.82842708 : f32
    %110 = vector.broadcast %cst_70 : f32 to vector<2x8x8xf32>
    %111 = arith.divf %109, %110 : vector<2x8x8xf32>
    %112 = vector.shape_cast %4 : vector<2x8xf32> to vector<2x1x8xf32>
    %113 = vector.broadcast %112 : vector<2x1x8xf32> to vector<2x8x8xf32>
    %114 = arith.addf %111, %113 : vector<2x8x8xf32>
    %cst_71 = arith.constant dense<0xFF800000> : vector<2x8xf32>
    %115 = vector.multi_reduction <maximumf>, %114, %cst_71 [2] : vector<2x8x8xf32> to vector<2x8xf32>
    %116 = vector.shape_cast %115 : vector<2x8xf32> to vector<2x8x1xf32>
    %117 = vector.broadcast %116 : vector<2x8x1xf32> to vector<2x8x8xf32>
    %118 = arith.subf %114, %117 : vector<2x8x8xf32>
    %119 = math.exp %118 : vector<2x8x8xf32>
    %cst_72 = arith.constant dense<0.000000e+00> : vector<2x8xf32>
    %120 = vector.multi_reduction <add>, %119, %cst_72 [2] : vector<2x8x8xf32> to vector<2x8xf32>
    %121 = vector.shape_cast %120 : vector<2x8xf32> to vector<2x8x1xf32>
    %122 = vector.broadcast %121 : vector<2x8x1xf32> to vector<2x8x8xf32>
    %123 = arith.divf %119, %122 : vector<2x8x8xf32>
    "tpu.trace_start"() <{level = 10 : i32, message = "bqk,bkd->bqd"}> : () -> ()
    %cst_73 = arith.constant dense<0.000000e+00> : vector<2x8x8xf32>
    %124 = tpu.matmul %123, %108, %cst_73 {dimension_numbers = #tpu.dot_dimension_numbers<[2], [1], [1], [2], [0, 0, 0, 1, 1, 2], [0], [0]>} : vector<2x8x8xf32>, vector<2x8x8xf32>, vector<2x8x8xf32> -> vector<2x8x8xf32>
    "tpu.trace_stop"() : () -> ()
    %125 = tpu.concatenate %67, %86, %105, %124 in 2 : vector<2x8x8xf32>, vector<2x8x8xf32>, vector<2x8x8xf32>, vector<2x8x8xf32> -> vector<2x8x32xf32>
    %126 = vector.shape_cast %125 : vector<2x8x32xf32> to vector<16x32xf32>
    %cst_74 = arith.constant dense<0.000000e+00> : vector<16x32xf32>
    %127 = tpu.matmul %126, %18, %cst_74 {dimension_numbers = #tpu.dot_dimension_numbers<[1], [0], [0], [1], [0, 0, 1, 1], [], []>} : vector<16x32xf32>, vector<32x32xf32>, vector<16x32xf32> -> vector<16x32xf32>
    %128 = vector.broadcast %20 : vector<1x32xf32> to vector<16x32xf32>
    %129 = arith.addf %127, %128 : vector<16x32xf32>
    %130 = arith.addf %129, %3 : vector<16x32xf32>
    %cst_75 = arith.constant dense<0.000000e+00> : vector<16xf32>
    %131 = vector.multi_reduction <add>, %130, %cst_75 [1] : vector<16x32xf32> to vector<16xf32>
    %132 = vector.shape_cast %131 : vector<16xf32> to vector<16x1xf32>
    %cst_76 = arith.constant 3.200000e+01 : f32
    %133 = vector.broadcast %cst_76 : f32 to vector<16x1xf32>
    %134 = arith.divf %132, %133 : vector<16x1xf32>
    %135 = vector.broadcast %134 : vector<16x1xf32> to vector<16x32xf32>
    %136 = arith.subf %130, %135 : vector<16x32xf32>
    %137 = arith.mulf %136, %136 : vector<16x32xf32>
    %cst_77 = arith.constant dense<0.000000e+00> : vector<16xf32>
    %138 = vector.multi_reduction <add>, %137, %cst_77 [1] : vector<16x32xf32> to vector<16xf32>
    %139 = vector.shape_cast %138 : vector<16xf32> to vector<16x1xf32>
    %cst_78 = arith.constant 3.200000e+01 : f32
    %140 = vector.broadcast %cst_78 : f32 to vector<16x1xf32>
    %141 = arith.divf %139, %140 : vector<16x1xf32>
    %142 = vector.broadcast %134 : vector<16x1xf32> to vector<16x32xf32>
    %143 = arith.subf %130, %142 : vector<16x32xf32>
    %cst_79 = arith.constant 9.99999996E-13 : f32
    %144 = vector.broadcast %cst_79 : f32 to vector<16x1xf32>
    %145 = arith.addf %141, %144 : vector<16x1xf32>
    %146 = math.rsqrt %145 : vector<16x1xf32>
    %147 = vector.broadcast %146 : vector<16x1xf32> to vector<16x32xf32>
    %148 = arith.mulf %143, %147 : vector<16x32xf32>
    %149 = vector.broadcast %22 : vector<1x32xf32> to vector<16x32xf32>
    %150 = arith.mulf %148, %149 : vector<16x32xf32>
    %151 = vector.broadcast %24 : vector<1x32xf32> to vector<16x32xf32>
    %152 = arith.addf %150, %151 : vector<16x32xf32>
    %cst_80 = arith.constant dense<0.000000e+00> : vector<16x64xf32>
    %153 = tpu.matmul %152, %26, %cst_80 {dimension_numbers = #tpu.dot_dimension_numbers<[1], [0], [0], [1], [0, 0, 1, 1], [], []>} : vector<16x32xf32>, vector<32x64xf32>, vector<16x64xf32> -> vector<16x64xf32>
    %154 = vector.broadcast %28 : vector<1x64xf32> to vector<16x64xf32>
    %155 = arith.addf %153, %154 : vector<16x64xf32>
    %cst_81 = arith.constant 5.000000e-01 : f32
    %156 = vector.broadcast %cst_81 : f32 to vector<16x64xf32>
    %157 = arith.mulf %156, %155 : vector<16x64xf32>
    %cst_82 = arith.constant 4.471500e-02 : f32
    %158 = vector.broadcast %cst_82 : f32 to vector<16x64xf32>
    %159 = arith.mulf %158, %155 : vector<16x64xf32>
    %160 = arith.mulf %159, %155 : vector<16x64xf32>
    %161 = arith.mulf %160, %155 : vector<16x64xf32>
    %162 = arith.addf %155, %161 : vector<16x64xf32>
    %cst_83 = arith.constant 0.797884583 : f32
    %163 = vector.broadcast %cst_83 : f32 to vector<16x64xf32>
    %164 = arith.mulf %163, %162 : vector<16x64xf32>
    %165 = math.tanh %164 : vector<16x64xf32>
    %cst_84 = arith.constant 1.000000e+00 : f32
    %166 = vector.broadcast %cst_84 : f32 to vector<16x64xf32>
    %167 = arith.addf %166, %165 : vector<16x64xf32>
    %168 = arith.mulf %157, %167 : vector<16x64xf32>
    %cst_85 = arith.constant dense<0.000000e+00> : vector<16x32xf32>
    %169 = tpu.matmul %168, %30, %cst_85 {dimension_numbers = #tpu.dot_dimension_numbers<[1], [0], [0], [1], [0, 0, 1, 1], [], []>} : vector<16x64xf32>, vector<64x32xf32>, vector<16x32xf32> -> vector<16x32xf32>
    %170 = vector.broadcast %32 : vector<1x32xf32> to vector<16x32xf32>
    %171 = arith.addf %169, %170 : vector<16x32xf32>
    %172 = arith.addf %171, %152 : vector<16x32xf32>
    %c1_i32 = arith.constant 1 : i32
    %173 = arith.cmpi eq, %arg0, %c1_i32 : i32
    %174 = arith.extui %173 : i1 to i32
    %c0_i32_86 = arith.constant 0 : i32
    %175 = arith.cmpi ne, %174, %c0_i32_86 : i32
    scf.if %175 {
      %c0_89 = arith.constant 0 : index
      %c0_90 = arith.constant 0 : index
      %c0_91 = arith.constant 0 : index
      %179 = vector.load %arg20[%c0_89, %c0_90, %c0_91] : memref<3x32x32xf32, #tpu.memory_space<vmem>>, vector<1x32x32xf32>
      %180 = vector.shape_cast %179 : vector<1x32x32xf32> to vector<32x32xf32>
      %cst_92 = arith.constant dense<0.000000e+00> : vector<16x32xf32>
      %181 = tpu.matmul %3, %180, %cst_92 {dimension_numbers = #tpu.dot_dimension_numbers<[1], [0], [0], [1], [0, 0, 1, 1], [], []>} : vector<16x32xf32>, vector<32x32xf32>, vector<16x32xf32> -> vector<16x32xf32>
      %c0_93 = arith.constant 0 : index
      %c0_94 = arith.constant 0 : index
      %c0_95 = arith.constant 0 : index
      %182 = vector.load %arg22[%c0_93, %c0_94, %c0_95] : memref<3x1x32xf32, #tpu.memory_space<vmem>>, vector<1x1x32xf32>
      %183 = vector.shape_cast %182 : vector<1x1x32xf32> to vector<1x32xf32>
      %184 = vector.broadcast %183 : vector<1x32xf32> to vector<16x32xf32>
      %185 = arith.addf %181, %184 : vector<16x32xf32>
      %c1 = arith.constant 1 : index
      %c0_96 = arith.constant 0 : index
      %c0_97 = arith.constant 0 : index
      %186 = vector.load %arg20[%c1, %c0_96, %c0_97] : memref<3x32x32xf32, #tpu.memory_space<vmem>>, vector<1x32x32xf32>
      %187 = vector.shape_cast %186 : vector<1x32x32xf32> to vector<32x32xf32>
      %cst_98 = arith.constant dense<0.000000e+00> : vector<16x32xf32>
      %188 = tpu.matmul %3, %187, %cst_98 {dimension_numbers = #tpu.dot_dimension_numbers<[1], [0], [0], [1], [0, 0, 1, 1], [], []>} : vector<16x32xf32>, vector<32x32xf32>, vector<16x32xf32> -> vector<16x32xf32>
      %c1_99 = arith.constant 1 : index
      %c0_100 = arith.constant 0 : index
      %c0_101 = arith.constant 0 : index
      %189 = vector.load %arg22[%c1_99, %c0_100, %c0_101] : memref<3x1x32xf32, #tpu.memory_space<vmem>>, vector<1x1x32xf32>
      %190 = vector.shape_cast %189 : vector<1x1x32xf32> to vector<1x32xf32>
      %191 = vector.broadcast %190 : vector<1x32xf32> to vector<16x32xf32>
      %192 = arith.addf %188, %191 : vector<16x32xf32>
      %c2 = arith.constant 2 : index
      %c0_102 = arith.constant 0 : index
      %c0_103 = arith.constant 0 : index
      %193 = vector.load %arg20[%c2, %c0_102, %c0_103] : memref<3x32x32xf32, #tpu.memory_space<vmem>>, vector<1x32x32xf32>
      %194 = vector.shape_cast %193 : vector<1x32x32xf32> to vector<32x32xf32>
      %cst_104 = arith.constant dense<0.000000e+00> : vector<16x32xf32>
      %195 = tpu.matmul %3, %194, %cst_104 {dimension_numbers = #tpu.dot_dimension_numbers<[1], [0], [0], [1], [0, 0, 1, 1], [], []>} : vector<16x32xf32>, vector<32x32xf32>, vector<16x32xf32> -> vector<16x32xf32>
      %c2_105 = arith.constant 2 : index
      %c0_106 = arith.constant 0 : index
      %c0_107 = arith.constant 0 : index
      %196 = vector.load %arg22[%c2_105, %c0_106, %c0_107] : memref<3x1x32xf32, #tpu.memory_space<vmem>>, vector<1x1x32xf32>
      %197 = vector.shape_cast %196 : vector<1x1x32xf32> to vector<1x32xf32>
      %198 = vector.broadcast %197 : vector<1x32xf32> to vector<16x32xf32>
      %199 = arith.addf %195, %198 : vector<16x32xf32>
      %c0_108 = arith.constant 0 : index
      %c0_109 = arith.constant 0 : index
      %c0_110 = arith.constant 0 : index
      %200 = vector.load %arg19[%c0_108, %c0_109, %c0_110] : memref<3x32x32xf32, #tpu.memory_space<vmem>>, vector<1x32x32xf32>
      %201 = vector.shape_cast %200 : vector<1x32x32xf32> to vector<32x32xf32>
      %c1_111 = arith.constant 1 : index
      %c0_112 = arith.constant 0 : index
      %c0_113 = arith.constant 0 : index
      %202 = vector.load %arg19[%c1_111, %c0_112, %c0_113] : memref<3x32x32xf32, #tpu.memory_space<vmem>>, vector<1x32x32xf32>
      %203 = vector.shape_cast %202 : vector<1x32x32xf32> to vector<32x32xf32>
      %c2_114 = arith.constant 2 : index
      %c0_115 = arith.constant 0 : index
      %c0_116 = arith.constant 0 : index
      %204 = vector.load %arg19[%c2_114, %c0_115, %c0_116] : memref<3x32x32xf32, #tpu.memory_space<vmem>>, vector<1x32x32xf32>
      %205 = vector.shape_cast %204 : vector<1x32x32xf32> to vector<32x32xf32>
      %c0_117 = arith.constant 0 : index
      %c0_118 = arith.constant 0 : index
      %c0_119 = arith.constant 0 : index
      %206 = vector.load %arg21[%c0_117, %c0_118, %c0_119] : memref<3x32x32xf32, #tpu.memory_space<vmem>>, vector<1x32x32xf32>
      %207 = vector.shape_cast %206 : vector<1x32x32xf32> to vector<32x32xf32>
      %c1_120 = arith.constant 1 : index
      %c0_121 = arith.constant 0 : index
      %c0_122 = arith.constant 0 : index
      %208 = vector.load %arg21[%c1_120, %c0_121, %c0_122] : memref<3x32x32xf32, #tpu.memory_space<vmem>>, vector<1x32x32xf32>
      %209 = vector.shape_cast %208 : vector<1x32x32xf32> to vector<32x32xf32>
      %c2_123 = arith.constant 2 : index
      %c0_124 = arith.constant 0 : index
      %c0_125 = arith.constant 0 : index
      %210 = vector.load %arg21[%c2_123, %c0_124, %c0_125] : memref<3x32x32xf32, #tpu.memory_space<vmem>>, vector<1x32x32xf32>
      %211 = vector.shape_cast %210 : vector<1x32x32xf32> to vector<32x32xf32>
      %c0_126 = arith.constant 0 : index
      %c0_127 = arith.constant 0 : index
      %c0_128 = arith.constant 0 : index
      %212 = vector.load %arg23[%c0_126, %c0_127, %c0_128] : memref<3x1x32xf32, #tpu.memory_space<vmem>>, vector<1x1x32xf32>
      %213 = vector.shape_cast %212 : vector<1x1x32xf32> to vector<1x32xf32>
      %c1_129 = arith.constant 1 : index
      %c0_130 = arith.constant 0 : index
      %c0_131 = arith.constant 0 : index
      %214 = vector.load %arg23[%c1_129, %c0_130, %c0_131] : memref<3x1x32xf32, #tpu.memory_space<vmem>>, vector<1x1x32xf32>
      %215 = vector.shape_cast %214 : vector<1x1x32xf32> to vector<1x32xf32>
      %c2_132 = arith.constant 2 : index
      %c0_133 = arith.constant 0 : index
      %c0_134 = arith.constant 0 : index
      %216 = vector.load %arg23[%c2_132, %c0_133, %c0_134] : memref<3x1x32xf32, #tpu.memory_space<vmem>>, vector<1x1x32xf32>
      %217 = vector.shape_cast %216 : vector<1x1x32xf32> to vector<1x32xf32>
      %cst_135 = arith.constant 0.000000e+00 : f32
      %218 = vector.broadcast %cst_135 : f32 to vector<8x32xf32>
      %219 = vector.extract_strided_slice %185 {offsets = [0, 0], sizes = [8, 32], strides = [1, 1]} : vector<16x32xf32> to vector<8x32xf32>
      %220 = vector.extract_strided_slice %192 {offsets = [0, 0], sizes = [8, 32], strides = [1, 1]} : vector<16x32xf32> to vector<8x32xf32>
      %221 = vector.extract_strided_slice %199 {offsets = [0, 0], sizes = [8, 32], strides = [1, 1]} : vector<16x32xf32> to vector<8x32xf32>
      %222 = vector.broadcast %213 : vector<1x32xf32> to vector<8x32xf32>
      %223 = arith.addf %219, %222 : vector<8x32xf32>
      %cst_136 = arith.constant 0.000000e+00 : f32
      %224 = vector.broadcast %cst_136 : f32 to vector<8x32xf32>
      %225 = arith.subf %224, %223 : vector<8x32xf32>
      %226 = math.exp %225 : vector<8x32xf32>
      %cst_137 = arith.constant 1.000000e+00 : f32
      %227 = vector.broadcast %cst_137 : f32 to vector<8x32xf32>
      %228 = arith.addf %227, %226 : vector<8x32xf32>
      %cst_138 = arith.constant 1.000000e+00 : f32
      %229 = vector.broadcast %cst_138 : f32 to vector<8x32xf32>
      %230 = arith.divf %229, %228 : vector<8x32xf32>
      %231 = vector.broadcast %215 : vector<1x32xf32> to vector<8x32xf32>
      %232 = arith.addf %220, %231 : vector<8x32xf32>
      %cst_139 = arith.constant 0.000000e+00 : f32
      %233 = vector.broadcast %cst_139 : f32 to vector<8x32xf32>
      %234 = arith.subf %233, %232 : vector<8x32xf32>
      %235 = math.exp %234 : vector<8x32xf32>
      %cst_140 = arith.constant 1.000000e+00 : f32
      %236 = vector.broadcast %cst_140 : f32 to vector<8x32xf32>
      %237 = arith.addf %236, %235 : vector<8x32xf32>
      %cst_141 = arith.constant 1.000000e+00 : f32
      %238 = vector.broadcast %cst_141 : f32 to vector<8x32xf32>
      %239 = arith.divf %238, %237 : vector<8x32xf32>
      %240 = vector.broadcast %217 : vector<1x32xf32> to vector<8x32xf32>
      %241 = arith.mulf %230, %240 : vector<8x32xf32>
      %242 = arith.addf %221, %241 : vector<8x32xf32>
      %243 = math.tanh %242 : vector<8x32xf32>
      %cst_142 = arith.constant 1.000000e+00 : f32
      %244 = vector.broadcast %cst_142 : f32 to vector<8x32xf32>
      %245 = arith.subf %244, %239 : vector<8x32xf32>
      %246 = arith.mulf %245, %243 : vector<8x32xf32>
      %247 = arith.mulf %239, %218 : vector<8x32xf32>
      %248 = arith.addf %246, %247 : vector<8x32xf32>
      %249 = arith.subf %248, %218 : vector<8x32xf32>
      %250 = vector.extract_strided_slice %185 {offsets = [8, 0], sizes = [8, 32], strides = [1, 1]} : vector<16x32xf32> to vector<8x32xf32>
      %cst_143 = arith.constant dense<0.000000e+00> : vector<8x32xf32>
      %251 = tpu.matmul %249, %201, %cst_143 {dimension_numbers = #tpu.dot_dimension_numbers<[1], [0], [0], [1], [0, 0, 1, 1], [], []>} : vector<8x32xf32>, vector<32x32xf32>, vector<8x32xf32> -> vector<8x32xf32>
      %252 = arith.addf %250, %251 : vector<8x32xf32>
      %253 = vector.extract_strided_slice %192 {offsets = [8, 0], sizes = [8, 32], strides = [1, 1]} : vector<16x32xf32> to vector<8x32xf32>
      %cst_144 = arith.constant dense<0.000000e+00> : vector<8x32xf32>
      %254 = tpu.matmul %249, %203, %cst_144 {dimension_numbers = #tpu.dot_dimension_numbers<[1], [0], [0], [1], [0, 0, 1, 1], [], []>} : vector<8x32xf32>, vector<32x32xf32>, vector<8x32xf32> -> vector<8x32xf32>
      %255 = arith.addf %253, %254 : vector<8x32xf32>
      %256 = vector.extract_strided_slice %199 {offsets = [8, 0], sizes = [8, 32], strides = [1, 1]} : vector<16x32xf32> to vector<8x32xf32>
      %cst_145 = arith.constant dense<0.000000e+00> : vector<8x32xf32>
      %257 = tpu.matmul %249, %205, %cst_145 {dimension_numbers = #tpu.dot_dimension_numbers<[1], [0], [0], [1], [0, 0, 1, 1], [], []>} : vector<8x32xf32>, vector<32x32xf32>, vector<8x32xf32> -> vector<8x32xf32>
      %258 = arith.addf %256, %257 : vector<8x32xf32>
      %cst_146 = arith.constant dense<0.000000e+00> : vector<8x32xf32>
      %259 = tpu.matmul %248, %207, %cst_146 {dimension_numbers = #tpu.dot_dimension_numbers<[1], [0], [0], [1], [0, 0, 1, 1], [], []>} : vector<8x32xf32>, vector<32x32xf32>, vector<8x32xf32> -> vector<8x32xf32>
      %260 = vector.broadcast %213 : vector<1x32xf32> to vector<8x32xf32>
      %261 = arith.addf %259, %260 : vector<8x32xf32>
      %cst_147 = arith.constant dense<0.000000e+00> : vector<8x32xf32>
      %262 = tpu.matmul %248, %209, %cst_147 {dimension_numbers = #tpu.dot_dimension_numbers<[1], [0], [0], [1], [0, 0, 1, 1], [], []>} : vector<8x32xf32>, vector<32x32xf32>, vector<8x32xf32> -> vector<8x32xf32>
      %263 = vector.broadcast %215 : vector<1x32xf32> to vector<8x32xf32>
      %264 = arith.addf %262, %263 : vector<8x32xf32>
      %cst_148 = arith.constant dense<0.000000e+00> : vector<8x32xf32>
      %265 = tpu.matmul %248, %211, %cst_148 {dimension_numbers = #tpu.dot_dimension_numbers<[1], [0], [0], [1], [0, 0, 1, 1], [], []>} : vector<8x32xf32>, vector<32x32xf32>, vector<8x32xf32> -> vector<8x32xf32>
      %266 = vector.broadcast %217 : vector<1x32xf32> to vector<8x32xf32>
      %267 = arith.addf %265, %266 : vector<8x32xf32>
      %268 = arith.addf %252, %261 : vector<8x32xf32>
      %cst_149 = arith.constant 0.000000e+00 : f32
      %269 = vector.broadcast %cst_149 : f32 to vector<8x32xf32>
      %270 = arith.subf %269, %268 : vector<8x32xf32>
      %271 = math.exp %270 : vector<8x32xf32>
      %cst_150 = arith.constant 1.000000e+00 : f32
      %272 = vector.broadcast %cst_150 : f32 to vector<8x32xf32>
      %273 = arith.addf %272, %271 : vector<8x32xf32>
      %cst_151 = arith.constant 1.000000e+00 : f32
      %274 = vector.broadcast %cst_151 : f32 to vector<8x32xf32>
      %275 = arith.divf %274, %273 : vector<8x32xf32>
      %276 = arith.addf %255, %264 : vector<8x32xf32>
      %cst_152 = arith.constant 0.000000e+00 : f32
      %277 = vector.broadcast %cst_152 : f32 to vector<8x32xf32>
      %278 = arith.subf %277, %276 : vector<8x32xf32>
      %279 = math.exp %278 : vector<8x32xf32>
      %cst_153 = arith.constant 1.000000e+00 : f32
      %280 = vector.broadcast %cst_153 : f32 to vector<8x32xf32>
      %281 = arith.addf %280, %279 : vector<8x32xf32>
      %cst_154 = arith.constant 1.000000e+00 : f32
      %282 = vector.broadcast %cst_154 : f32 to vector<8x32xf32>
      %283 = arith.divf %282, %281 : vector<8x32xf32>
      %284 = arith.mulf %275, %267 : vector<8x32xf32>
      %285 = arith.addf %258, %284 : vector<8x32xf32>
      %286 = math.tanh %285 : vector<8x32xf32>
      %cst_155 = arith.constant 1.000000e+00 : f32
      %287 = vector.broadcast %cst_155 : f32 to vector<8x32xf32>
      %288 = arith.subf %287, %283 : vector<8x32xf32>
      %289 = arith.mulf %288, %286 : vector<8x32xf32>
      %290 = arith.mulf %283, %248 : vector<8x32xf32>
      %291 = arith.addf %289, %290 : vector<8x32xf32>
      %292 = tpu.concatenate %248, %291 in 0 : vector<8x32xf32>, vector<8x32xf32> -> vector<16x32xf32>
      %293 = arith.addf %172, %292 : vector<16x32xf32>
      %cst_156 = arith.constant dense<0.000000e+00> : vector<16xf32>
      %294 = vector.multi_reduction <add>, %293, %cst_156 [1] : vector<16x32xf32> to vector<16xf32>
      %295 = vector.shape_cast %294 : vector<16xf32> to vector<16x1xf32>
      %cst_157 = arith.constant 3.200000e+01 : f32
      %296 = vector.broadcast %cst_157 : f32 to vector<16x1xf32>
      %297 = arith.divf %295, %296 : vector<16x1xf32>
      %298 = vector.broadcast %297 : vector<16x1xf32> to vector<16x32xf32>
      %299 = arith.subf %293, %298 : vector<16x32xf32>
      %300 = arith.mulf %299, %299 : vector<16x32xf32>
      %cst_158 = arith.constant dense<0.000000e+00> : vector<16xf32>
      %301 = vector.multi_reduction <add>, %300, %cst_158 [1] : vector<16x32xf32> to vector<16xf32>
      %302 = vector.shape_cast %301 : vector<16xf32> to vector<16x1xf32>
      %cst_159 = arith.constant 3.200000e+01 : f32
      %303 = vector.broadcast %cst_159 : f32 to vector<16x1xf32>
      %304 = arith.divf %302, %303 : vector<16x1xf32>
      %305 = vector.broadcast %297 : vector<16x1xf32> to vector<16x32xf32>
      %306 = arith.subf %293, %305 : vector<16x32xf32>
      %cst_160 = arith.constant 9.99999996E-13 : f32
      %307 = vector.broadcast %cst_160 : f32 to vector<16x1xf32>
      %308 = arith.addf %304, %307 : vector<16x1xf32>
      %309 = math.rsqrt %308 : vector<16x1xf32>
      %310 = vector.broadcast %309 : vector<16x1xf32> to vector<16x32xf32>
      %311 = arith.mulf %306, %310 : vector<16x32xf32>
      %312 = vector.broadcast %34 : vector<1x32xf32> to vector<16x32xf32>
      %313 = arith.mulf %311, %312 : vector<16x32xf32>
      %314 = vector.broadcast %36 : vector<1x32xf32> to vector<16x32xf32>
      %315 = arith.addf %313, %314 : vector<16x32xf32>
      %c0_161 = arith.constant 0 : index
      %c0_162 = arith.constant 0 : index
      %316 = vector.load %arg24[%c0_161, %c0_162] : memref<16x32xf32, #tpu.memory_space<vmem>>, vector<16x32xf32>
      tpu.vector_store %arg24[%c0_161, %c0_162], %315 {strides = array<i32>} : memref<16x32xf32, #tpu.memory_space<vmem>>, vector<16x32xf32>,
    } else {
    }
    %c1_i32_87 = arith.constant 1 : i32
    %176 = arith.cmpi ne, %arg0, %c1_i32_87 : i32
    %177 = arith.extui %176 : i1 to i32
    %c0_i32_88 = arith.constant 0 : i32
    %178 = arith.cmpi ne, %177, %c0_i32_88 : i32
    scf.if %178 {
      %cst_89 = arith.constant dense<0.000000e+00> : vector<16xf32>
      %179 = vector.multi_reduction <add>, %172, %cst_89 [1] : vector<16x32xf32> to vector<16xf32>
      %180 = vector.shape_cast %179 : vector<16xf32> to vector<16x1xf32>
      %cst_90 = arith.constant 3.200000e+01 : f32
      %181 = vector.broadcast %cst_90 : f32 to vector<16x1xf32>
      %182 = arith.divf %180, %181 : vector<16x1xf32>
      %183 = vector.broadcast %182 : vector<16x1xf32> to vector<16x32xf32>
      %184 = arith.subf %172, %183 : vector<16x32xf32>
      %185 = arith.mulf %184, %184 : vector<16x32xf32>
      %cst_91 = arith.constant dense<0.000000e+00> : vector<16xf32>
      %186 = vector.multi_reduction <add>, %185, %cst_91 [1] : vector<16x32xf32> to vector<16xf32>
      %187 = vector.shape_cast %186 : vector<16xf32> to vector<16x1xf32>
      %cst_92 = arith.constant 3.200000e+01 : f32
      %188 = vector.broadcast %cst_92 : f32 to vector<16x1xf32>
      %189 = arith.divf %187, %188 : vector<16x1xf32>
      %190 = vector.broadcast %182 : vector<16x1xf32> to vector<16x32xf32>
      %191 = arith.subf %172, %190 : vector<16x32xf32>
      %cst_93 = arith.constant 9.99999996E-13 : f32
      %192 = vector.broadcast %cst_93 : f32 to vector<16x1xf32>
      %193 = arith.addf %189, %192 : vector<16x1xf32>
      %194 = math.rsqrt %193 : vector<16x1xf32>
      %195 = vector.broadcast %194 : vector<16x1xf32> to vector<16x32xf32>
      %196 = arith.mulf %191, %195 : vector<16x32xf32>
      %197 = vector.broadcast %34 : vector<1x32xf32> to vector<16x32xf32>
      %198 = arith.mulf %196, %197 : vector<16x32xf32>
      %199 = vector.broadcast %36 : vector<1x32xf32> to vector<16x32xf32>
      %200 = arith.addf %198, %199 : vector<16x32xf32>
      %c0_94 = arith.constant 0 : index
      %c0_95 = arith.constant 0 : index
      %201 = vector.load %arg24[%c0_94, %c0_95] : memref<16x32xf32, #tpu.memory_space<vmem>>, vector<16x32xf32>
      tpu.vector_store %arg24[%c0_94, %c0_95], %200 {strides = array<i32>} : memref<16x32xf32, #tpu.memory_space<vmem>>, vector<16x32xf32>,
    } else {
    }
    return
  }
  func.func @transform_0(%arg0: i32) -> (i32, i32) {
    %c0_i32 = arith.constant 0 : i32
    %c0_i32_0 = arith.constant 0 : i32
    %c0_i32_1 = arith.constant 0 : i32
    return %c0_i32, %c0_i32_0 : i32, i32
  }
  func.func @transform_1(%arg0: i32) -> (i32, i32) {
    %c0_i32 = arith.constant 0 : i32
    %c0_i32_0 = arith.constant 0 : i32
    %c0_i32_1 = arith.constant 0 : i32
    return %c0_i32, %c0_i32_0 : i32, i32
  }
  func.func @transform_2(%arg0: i32) -> (i32, i32, i32) {
    %c0_i32 = arith.constant 0 : i32
    %c0_i32_0 = arith.constant 0 : i32
    %c0_i32_1 = arith.constant 0 : i32
    return %arg0, %c0_i32, %c0_i32_0 : i32, i32, i32
  }
  func.func @transform_3(%arg0: i32) -> (i32, i32, i32) {
    %c0_i32 = arith.constant 0 : i32
    %c0_i32_0 = arith.constant 0 : i32
    %c0_i32_1 = arith.constant 0 : i32
    return %arg0, %c0_i32, %c0_i32_0 : i32, i32, i32
  }
  func.func @transform_4(%arg0: i32) -> (i32, i32, i32) {
    %c0_i32 = arith.constant 0 : i32
    %c0_i32_0 = arith.constant 0 : i32
    %c0_i32_1 = arith.constant 0 : i32
    return %arg0, %c0_i32, %c0_i32_0 : i32, i32, i32
  }
  func.func @transform_5(%arg0: i32) -> (i32, i32, i32) {
    %c0_i32 = arith.constant 0 : i32
    %c0_i32_0 = arith.constant 0 : i32
    %c0_i32_1 = arith.constant 0 : i32
    return %arg0, %c0_i32, %c0_i32_0 : i32, i32, i32
  }
  func.func @transform_6(%arg0: i32) -> (i32, i32, i32) {
    %c0_i32 = arith.constant 0 : i32
    %c0_i32_0 = arith.constant 0 : i32
    %c0_i32_1 = arith.constant 0 : i32
    return %arg0, %c0_i32, %c0_i32_0 : i32, i32, i32
  }
  func.func @transform_7(%arg0: i32) -> (i32, i32, i32) {
    %c0_i32 = arith.constant 0 : i32
    %c0_i32_0 = arith.constant 0 : i32
    %c0_i32_1 = arith.constant 0 : i32
    return %arg0, %c0_i32, %c0_i32_0 : i32, i32, i32
  }
  func.func @transform_8(%arg0: i32) -> (i32, i32, i32) {
    %c0_i32 = arith.constant 0 : i32
    %c0_i32_0 = arith.constant 0 : i32
    %c0_i32_1 = arith.constant 0 : i32
    return %arg0, %c0_i32, %c0_i32_0 : i32, i32, i32
  }
  func.func @transform_9(%arg0: i32) -> (i32, i32, i32) {
    %c0_i32 = arith.constant 0 : i32
    %c0_i32_0 = arith.constant 0 : i32
    %c0_i32_1 = arith.constant 0 : i32
    return %arg0, %c0_i32, %c0_i32_0 : i32, i32, i32
  }
  func.func @transform_10(%arg0: i32) -> (i32, i32, i32) {
    %c0_i32 = arith.constant 0 : i32
    %c0_i32_0 = arith.constant 0 : i32
    %c0_i32_1 = arith.constant 0 : i32
    return %arg0, %c0_i32, %c0_i32_0 : i32, i32, i32
  }
  func.func @transform_11(%arg0: i32) -> (i32, i32, i32) {
    %c0_i32 = arith.constant 0 : i32
    %c0_i32_0 = arith.constant 0 : i32
    %c0_i32_1 = arith.constant 0 : i32
    return %arg0, %c0_i32, %c0_i32_0 : i32, i32, i32
  }
  func.func @transform_12(%arg0: i32) -> (i32, i32, i32) {
    %c0_i32 = arith.constant 0 : i32
    %c0_i32_0 = arith.constant 0 : i32
    %c0_i32_1 = arith.constant 0 : i32
    return %arg0, %c0_i32, %c0_i32_0 : i32, i32, i32
  }
  func.func @transform_13(%arg0: i32) -> (i32, i32, i32) {
    %c0_i32 = arith.constant 0 : i32
    %c0_i32_0 = arith.constant 0 : i32
    %c0_i32_1 = arith.constant 0 : i32
    return %arg0, %c0_i32, %c0_i32_0 : i32, i32, i32
  }
  func.func @transform_14(%arg0: i32) -> (i32, i32, i32) {
    %c0_i32 = arith.constant 0 : i32
    %c0_i32_0 = arith.constant 0 : i32
    %c0_i32_1 = arith.constant 0 : i32
    return %arg0, %c0_i32, %c0_i32_0 : i32, i32, i32
  }
  func.func @transform_15(%arg0: i32) -> (i32, i32, i32) {
    %c0_i32 = arith.constant 0 : i32
    %c0_i32_0 = arith.constant 0 : i32
    %c0_i32_1 = arith.constant 0 : i32
    return %arg0, %c0_i32, %c0_i32_0 : i32, i32, i32
  }
  func.func @transform_16(%arg0: i32) -> (i32, i32, i32) {
    %c0_i32 = arith.constant 0 : i32
    %c0_i32_0 = arith.constant 0 : i32
    %c0_i32_1 = arith.constant 0 : i32
    return %arg0, %c0_i32, %c0_i32_0 : i32, i32, i32
  }
  func.func @transform_17(%arg0: i32) -> (i32, i32, i32) {
    %c0_i32 = arith.constant 0 : i32
    %c0_i32_0 = arith.constant 0 : i32
    %c0_i32_1 = arith.constant 0 : i32
    return %arg0, %c0_i32, %c0_i32_0 : i32, i32, i32
  }
  func.func @transform_18(%arg0: i32) -> (i32, i32, i32) {
    %c0_i32 = arith.constant 0 : i32
    %c0_i32_0 = arith.constant 0 : i32
    %c0_i32_1 = arith.constant 0 : i32
    %c0_i32_2 = arith.constant 0 : i32
    return %c0_i32, %c0_i32_0, %c0_i32_1 : i32, i32, i32
  }
  func.func @transform_19(%arg0: i32) -> (i32, i32, i32) {
    %c0_i32 = arith.constant 0 : i32
    %c0_i32_0 = arith.constant 0 : i32
    %c0_i32_1 = arith.constant 0 : i32
    %c0_i32_2 = arith.constant 0 : i32
    return %c0_i32, %c0_i32_0, %c0_i32_1 : i32, i32, i32
  }
  func.func @transform_20(%arg0: i32) -> (i32, i32, i32) {
    %c0_i32 = arith.constant 0 : i32
    %c0_i32_0 = arith.constant 0 : i32
    %c0_i32_1 = arith.constant 0 : i32
    %c0_i32_2 = arith.constant 0 : i32
    return %c0_i32, %c0_i32_0, %c0_i32_1 : i32, i32, i32
  }
  func.func @transform_21(%arg0: i32) -> (i32, i32, i32) {
    %c0_i32 = arith.constant 0 : i32
    %c0_i32_0 = arith.constant 0 : i32
    %c0_i32_1 = arith.constant 0 : i32
    %c0_i32_2 = arith.constant 0 : i32
    return %c0_i32, %c0_i32_0, %c0_i32_1 : i32, i32, i32
  }
  func.func @transform_22(%arg0: i32) -> (i32, i32, i32) {
    %c0_i32 = arith.constant 0 : i32
    %c0_i32_0 = arith.constant 0 : i32
    %c0_i32_1 = arith.constant 0 : i32
    %c0_i32_2 = arith.constant 0 : i32
    return %c0_i32, %c0_i32_0, %c0_i32_1 : i32, i32, i32
  }
  func.func @transform_23(%arg0: i32) -> (i32, i32) {
    %c0_i32 = arith.constant 0 : i32
    %c0_i32_0 = arith.constant 0 : i32
    %c0_i32_1 = arith.constant 0 : i32
    return %c0_i32, %c0_i32_0 : i32, i32
  }
}

</mosaic_0001>

<llo_original>
// kernel: tpu_custom_call.1
$region0: #{tpu_custom_call.1}
  #allocation0 [shape = 'u32[]', space=smem, size = 0x4, offset = 0x4, fixed_abs, tag = 'smem constant byte address 0x4 - core index']
  #allocation1 [shape = 'u32[144,128]{1,0:T(1,128)}', space=vmem, size = 0x12000, scoped, tag = 'internal scratch']
  %s0 = inlined_call_operand.hbm [shape: f32[16,32], index: 0, kind: input, shape index: {}]
  %s1 = inlined_call_operand.hbm [shape: f32[2,8], index: 1, kind: input, shape index: {}]
  %s2 = inlined_call_operand.hbm [shape: f32[2,32,32], index: 2, kind: input, shape index: {}]
  %s3 = inlined_call_operand.vmem [shape: f32[2,1,32], index: 3, kind: input, shape index: {}]
  %s4 = inlined_call_operand.hbm [shape: f32[2,32,32], index: 4, kind: input, shape index: {}]
  %s5 = inlined_call_operand.vmem [shape: f32[2,1,32], index: 5, kind: input, shape index: {}]
  %s6 = inlined_call_operand.hbm [shape: f32[2,32,32], index: 6, kind: input, shape index: {}]
  %s7 = inlined_call_operand.vmem [shape: f32[2,1,32], index: 7, kind: input, shape index: {}]
  %s8 = inlined_call_operand.hbm [shape: f32[2,32,32], index: 8, kind: input, shape index: {}]
  %s9 = inlined_call_operand.vmem [shape: f32[2,1,32], index: 9, kind: input, shape index: {}]
  %s10 = inlined_call_operand.vmem [shape: f32[2,1,32], index: 10, kind: input, shape index: {}]
  %s11 = inlined_call_operand.vmem [shape: f32[2,1,32], index: 11, kind: input, shape index: {}]
  %s12 = inlined_call_operand.hbm [shape: f32[2,32,64], index: 12, kind: input, shape index: {}]
  %s13 = inlined_call_operand.vmem [shape: f32[2,1,64], index: 13, kind: input, shape index: {}]
  %s14 = inlined_call_operand.vmem [shape: f32[2,64,32], index: 14, kind: input, shape index: {}]
  %s15 = inlined_call_operand.vmem [shape: f32[2,1,32], index: 15, kind: input, shape index: {}]
  %s16 = inlined_call_operand.vmem [shape: f32[2,1,32], index: 16, kind: input, shape index: {}]
  %s17 = inlined_call_operand.vmem [shape: f32[2,1,32], index: 17, kind: input, shape index: {}]
  %s18 = inlined_call_operand.vmem [shape: f32[3,32,32], index: 18, kind: input, shape index: {}]
  %s19 = inlined_call_operand.vmem [shape: f32[3,32,32], index: 19, kind: input, shape index: {}]
  %s20 = inlined_call_operand.hbm [shape: f32[3,32,32], index: 20, kind: input, shape index: {}]
  %s21 = inlined_call_operand.vmem [shape: f32[3,1,32], index: 21, kind: input, shape index: {}]
  %s22 = inlined_call_operand.vmem [shape: f32[3,1,32], index: 22, kind: input, shape index: {}]
  %s23 = inlined_call_operand.hbm [shape: f32[16,32], index: 23, kind: output, shape index: {}]
  %s24 = sld [smem:[#allocation0]]
  $region169: #{tpu_custom_call.1} parent=0
    _
  %s26 = ssub.s32 1, %s24
  %s27 = scalar_select 0, %s26, %s24
  $region1: #{tpu_custom_call.1} parent=0
    #allocation2 [shape = 'u8[8192]{0}', space=vmem, size = 0x2000, scoped, tag = 'input window, operand 0, single buffered']
    #allocation3 [shape = 's32[2]{0}', space=sflag, size = 0x8, scoped, tag = 'scoped memory for tpu_custom_call.1']
    #allocation4 [shape = 's32[2]{0}', space=sflag, size = 0x8, scoped, tag = 'scoped memory for tpu_custom_call.1']
    #allocation5 [shape = 'u8[1024]{0}', space=vmem, size = 0x400, scoped, tag = 'input window, operand 1, single buffered']
    #allocation6 [shape = 's32[1]{0}', space=sflag, size = 0x4, scoped, tag = 'scoped memory for tpu_custom_call.1']
    #allocation7 [shape = 'u8[32768]{0}', space=vmem, size = 0x8000, scoped, tag = 'input window, operand 2']
    #allocation8 [shape = 'u8[32768]{0}', space=vmem, size = 0x8000, scoped, tag = 'input window, operand 4']
    #allocation9 [shape = 'u8[32768]{0}', space=vmem, size = 0x8000, scoped, tag = 'input window, operand 6']
    #allocation10 [shape = 'u8[32768]{0}', space=vmem, size = 0x8000, scoped, tag = 'input window, operand 8']
    #allocation11 [shape = 'u8[32768]{0}', space=vmem, size = 0x8000, scoped, tag = 'input window, operand 12']
    #allocation12 [shape = 'u8[49152]{0}', space=vmem, size = 0xc000, scoped, tag = 'input window, operand 20, single buffered']
    #allocation13 [shape = 'u8[8192]{0}', space=vmem, size = 0x2000, scoped, tag = 'output window, operand 0, single buffered']
    %28 = vsyncpa [#allocation3], 0
    %29 = vsyncpa [#allocation6], 0
    %30 = vsyncpa [#allocation4], 0
    loop: start=0, step=1, limit=4
    $region2: #{tpu_custom_call.1} parent=1 // loop_pre_header
      _
    $region3: #{tpu_custom_call.1} parent=1 // loop_header
      %s32 = sphi 0, %s36
      %p33 = scmp.ge.s32.totalorder %s32, 4
      %s40 = sphi 0, %s40
      %s42 = sphi 0, %s40
      %s43 = sphi 0, %s42
      %s57 = sphi 0, %s43
      %s61 = sphi 0, %s61
      %s63 = sphi 0, %s61
      %s64 = sphi 0, %s63
      %s78 = sphi 0, %s64
      %s84 = sphi 0, %s86
      %s87 = sphi 0, %s84
      %s88 = sphi 0, %s87
      %s104 = sphi 0, %s88
      %s110 = sphi 0, %s112
      %s113 = sphi 0, %s110
      %s114 = sphi 0, %s113
      %s130 = sphi 0, %s114
      %s136 = sphi 0, %s138
      %s139 = sphi 0, %s136
      %s140 = sphi 0, %s139
      %s156 = sphi 0, %s140
      %s162 = sphi 0, %s164
      %s165 = sphi 0, %s162
      %s166 = sphi 0, %s165
      %s182 = sphi 0, %s166
      %s188 = sphi 0, %s190
      %s191 = sphi 0, %s188
      %s192 = sphi 0, %s191
      %s208 = sphi 0, %s192
      %s214 = sphi 0, %s216
      %s217 = sphi 0, %s214
      %s218 = sphi 0, %s217
      %s234 = sphi 0, %s218
      %s240 = sphi 0, %s242
      %s243 = sphi 0, %s240
      %s244 = sphi 0, %s243
      %s260 = sphi 0, %s244
      %s266 = sphi 0, %s268
      %s269 = sphi 0, %s266
      %s270 = sphi 0, %s269
      %s286 = sphi 0, %s270
      %s292 = sphi 0, %s294
      %s295 = sphi 0, %s292
      %s296 = sphi 0, %s295
      %s312 = sphi 0, %s296
      %s318 = sphi 0, %s320
      %s321 = sphi 0, %s318
      %s322 = sphi 0, %s321
      %s338 = sphi 0, %s322
      %s344 = sphi 0, %s346
      %s347 = sphi 0, %s344
      %s348 = sphi 0, %s347
      %s364 = sphi 0, %s348
      %s370 = sphi 0, %s372
      %s373 = sphi 0, %s370
      %s374 = sphi 0, %s373
      %s390 = sphi 0, %s374
      %s396 = sphi 0, %s398
      %s399 = sphi 0, %s396
      %s400 = sphi 0, %s399
      %s416 = sphi 0, %s400
      %s422 = sphi 0, %s424
      %s425 = sphi 0, %s422
      %s426 = sphi 0, %s425
      %s442 = sphi 0, %s426
      %s448 = sphi 0, %s450
      %s451 = sphi 0, %s448
      %s452 = sphi 0, %s451
      %s468 = sphi 0, %s452
      %s474 = sphi 0, %s476
      %s477 = sphi 0, %s474
      %s478 = sphi 0, %s477
      %s494 = sphi 0, %s478
      %s498 = sphi 0, %s498
      %s500 = sphi 0, %s498
      %s501 = sphi 0, %s500
      %s515 = sphi 0, %s501
      %s519 = sphi 0, %s519
      %s521 = sphi 0, %s519
      %s522 = sphi 0, %s521
      %s536 = sphi 0, %s522
      %s540 = sphi 0, %s540
      %s542 = sphi 0, %s540
      %s543 = sphi 0, %s542
      %s557 = sphi 0, %s543
      %s561 = sphi 0, %s561
      %s563 = sphi 0, %s561
      %s564 = sphi 0, %s563
      %s578 = sphi 0, %s564
      %s582 = sphi 0, %s582
      %s584 = sphi 0, %s582
      %s585 = sphi 0, %s584
      %s599 = sphi 0, %s585
      %s603 = sphi 0, %s603
      %s605 = sphi 0, %s603
      %s606 = sphi 0, %s605
      %s620 = sphi 0, %s606
    $region4: #{tpu_custom_call.1} parent=1 // loop_header_branch
      %35 = sbr.rel (%p33) target = $region8
    $region5: #{tpu_custom_call.1} parent=1 // loop_body
      %s37 = ssub.s32 %s32, 1
      %s38 = ssub.s32 %s32, 2
      %s39 = sadd.s32 %s32, 1
      %s41 = sadd.s32 %s40, 1
      %p44 = scmp.eq.s32.totalorder %s32, 1
      %p45 = scmp.ne.s32.totalorder %s40, %s42
      %p46 = scmp.eq.s32.totalorder %s32, 0
      %p47 = por %p45, %p46
      %p48 = scmp.ne.s32.totalorder %s40, %s42
      %p49 = scmp.eq.s32.totalorder %s37, 1
      %p50 = por %p48, %p49
      %p51 = scmp.ne.s32.totalorder %s42, %s43
      %p52 = scmp.eq.s32.totalorder %s37, 0
      %p53 = por %p51, %p52
      %p54 = scmp.ne.s32.totalorder %s42, %s43
      %p55 = scmp.eq.s32.totalorder %s38, 1
      %p56 = por %p54, %p55
      %p58 = scmp.ne.s32.totalorder %s43, %s57
      %p59 = scmp.eq.s32.totalorder %s38, 0
      %p60 = por %p58, %p59
      %s62 = sadd.s32 %s61, 1
      %p65 = scmp.eq.s32.totalorder %s32, 1
      %p66 = scmp.ne.s32.totalorder %s61, %s63
      %p67 = scmp.eq.s32.totalorder %s32, 0
      %p68 = por %p66, %p67
      %p69 = scmp.ne.s32.totalorder %s61, %s63
      %p70 = scmp.eq.s32.totalorder %s37, 1
      %p71 = por %p69, %p70
      %p72 = scmp.ne.s32.totalorder %s63, %s64
      %p73 = scmp.eq.s32.totalorder %s37, 0
      %p74 = por %p72, %p73
      %p75 = scmp.ne.s32.totalorder %s63, %s64
      %p76 = scmp.eq.s32.totalorder %s38, 1
      %p77 = por %p75, %p76
      %p79 = scmp.ne.s32.totalorder %s64, %s78
      %p80 = scmp.eq.s32.totalorder %s38, 0
      %p81 = por %p79, %p80
      %s82 = ssub.s32 %s32, %s39
      %p83 = scmp.eq.s32.totalorder %s82, 0
      %s85 = sadd.s32 %s84, 1
      %s86 = scalar_select %p83, %s84, %s85
      %p89 = pneg %p83
      %p90 = scmp.eq.s32.totalorder %s32, 1
      %p91 = por %p89, %p90
      %p92 = scmp.ne.s32.totalorder %s84, %s87
      %p93 = scmp.eq.s32.totalorder %s32, 0
      %p94 = por %p92, %p93
      %p95 = scmp.ne.s32.totalorder %s84, %s87
      %p96 = scmp.eq.s32.totalorder %s37, 1
      %p97 = por %p95, %p96
      %p98 = scmp.ne.s32.totalorder %s87, %s88
      %p99 = scmp.eq.s32.totalorder %s37, 0
      %p100 = por %p98, %p99
      %p101 = scmp.ne.s32.totalorder %s87, %s88
      %p102 = scmp.eq.s32.totalorder %s38, 1
      %p103 = por %p101, %p102
      %p105 = scmp.ne.s32.totalorder %s88, %s104
      %p106 = scmp.eq.s32.totalorder %s38, 0
      %p107 = por %p105, %p106
      %s108 = ssub.s32 %s32, %s39
      %p109 = scmp.eq.s32.totalorder %s108, 0
      %s111 = sadd.s32 %s110, 1
      %s112 = scalar_select %p109, %s110, %s111
      %p115 = pneg %p109
      %p116 = scmp.eq.s32.totalorder %s32, 1
      %p117 = por %p115, %p116
      %p118 = scmp.ne.s32.totalorder %s110, %s113
      %p119 = scmp.eq.s32.totalorder %s32, 0
      %p120 = por %p118, %p119
      %p121 = scmp.ne.s32.totalorder %s110, %s113
      %p122 = scmp.eq.s32.totalorder %s37, 1
      %p123 = por %p121, %p122
      %p124 = scmp.ne.s32.totalorder %s113, %s114
      %p125 = scmp.eq.s32.totalorder %s37, 0
      %p126 = por %p124, %p125
      %p127 = scmp.ne.s32.totalorder %s113, %s114
      %p128 = scmp.eq.s32.totalorder %s38, 1
      %p129 = por %p127, %p128
      %p131 = scmp.ne.s32.totalorder %s114, %s130
      %p132 = scmp.eq.s32.totalorder %s38, 0
      %p133 = por %p131, %p132
      %s134 = ssub.s32 %s32, %s39
      %p135 = scmp.eq.s32.totalorder %s134, 0
      %s137 = sadd.s32 %s136, 1
      %s138 = scalar_select %p135, %s136, %s137
      %p141 = pneg %p135
      %p142 = scmp.eq.s32.totalorder %s32, 1
      %p143 = por %p141, %p142
      %p144 = scmp.ne.s32.totalorder %s136, %s139
      %p145 = scmp.eq.s32.totalorder %s32, 0
      %p146 = por %p144, %p145
      %p147 = scmp.ne.s32.totalorder %s136, %s139
      %p148 = scmp.eq.s32.totalorder %s37, 1
      %p149 = por %p147, %p148
      %p150 = scmp.ne.s32.totalorder %s139, %s140
      %p151 = scmp.eq.s32.totalorder %s37, 0
      %p152 = por %p150, %p151
      %p153 = scmp.ne.s32.totalorder %s139, %s140
      %p154 = scmp.eq.s32.totalorder %s38, 1
      %p155 = por %p153, %p154
      %p157 = scmp.ne.s32.totalorder %s140, %s156
      %p158 = scmp.eq.s32.totalorder %s38, 0
      %p159 = por %p157, %p158
      %s160 = ssub.s32 %s32, %s39
      %p161 = scmp.eq.s32.totalorder %s160, 0
      %s163 = sadd.s32 %s162, 1
      %s164 = scalar_select %p161, %s162, %s163
      %p167 = pneg %p161
      %p168 = scmp.eq.s32.totalorder %s32, 1
      %p169 = por %p167, %p168
      %p170 = scmp.ne.s32.totalorder %s162, %s165
      %p171 = scmp.eq.s32.totalorder %s32, 0
      %p172 = por %p170, %p171
      %p173 = scmp.ne.s32.totalorder %s162, %s165
      %p174 = scmp.eq.s32.totalorder %s37, 1
      %p175 = por %p173, %p174
      %p176 = scmp.ne.s32.totalorder %s165, %s166
      %p177 = scmp.eq.s32.totalorder %s37, 0
      %p178 = por %p176, %p177
      %p179 = scmp.ne.s32.totalorder %s165, %s166
      %p180 = scmp.eq.s32.totalorder %s38, 1
      %p181 = por %p179, %p180
      %p183 = scmp.ne.s32.totalorder %s166, %s182
      %p184 = scmp.eq.s32.totalorder %s38, 0
      %p185 = por %p183, %p184
      %s186 = ssub.s32 %s32, %s39
      %p187 = scmp.eq.s32.totalorder %s186, 0
      %s189 = sadd.s32 %s188, 1
      %s190 = scalar_select %p187, %s188, %s189
      %p193 = pneg %p187
      %p194 = scmp.eq.s32.totalorder %s32, 1
      %p195 = por %p193, %p194
      %p196 = scmp.ne.s32.totalorder %s188, %s191
      %p197 = scmp.eq.s32.totalorder %s32, 0
      %p198 = por %p196, %p197
      %p199 = scmp.ne.s32.totalorder %s188, %s191
      %p200 = scmp.eq.s32.totalorder %s37, 1
      %p201 = por %p199, %p200
      %p202 = scmp.ne.s32.totalorder %s191, %s192
      %p203 = scmp.eq.s32.totalorder %s37, 0
      %p204 = por %p202, %p203
      %p205 = scmp.ne.s32.totalorder %s191, %s192
      %p206 = scmp.eq.s32.totalorder %s38, 1
      %p207 = por %p205, %p206
      %p209 = scmp.ne.s32.totalorder %s192, %s208
      %p210 = scmp.eq.s32.totalorder %s38, 0
      %p211 = por %p209, %p210
      %s212 = ssub.s32 %s32, %s39
      %p213 = scmp.eq.s32.totalorder %s212, 0
      %s215 = sadd.s32 %s214, 1
      %s216 = scalar_select %p213, %s214, %s215
      %p219 = pneg %p213
      %p220 = scmp.eq.s32.totalorder %s32, 1
      %p221 = por %p219, %p220
      %p222 = scmp.ne.s32.totalorder %s214, %s217
      %p223 = scmp.eq.s32.totalorder %s32, 0
      %p224 = por %p222, %p223
      %p225 = scmp.ne.s32.totalorder %s214, %s217
      %p226 = scmp.eq.s32.totalorder %s37, 1
      %p227 = por %p225, %p226
      %p228 = scmp.ne.s32.totalorder %s217, %s218
      %p229 = scmp.eq.s32.totalorder %s37, 0
      %p230 = por %p228, %p229
      %p231 = scmp.ne.s32.totalorder %s217, %s218
      %p232 = scmp.eq.s32.totalorder %s38, 1
      %p233 = por %p231, %p232
      %p235 = scmp.ne.s32.totalorder %s218, %s234
      %p236 = scmp.eq.s32.totalorder %s38, 0
      %p237 = por %p235, %p236
      %s238 = ssub.s32 %s32, %s39
      %p239 = scmp.eq.s32.totalorder %s238, 0
      %s241 = sadd.s32 %s240, 1
      %s242 = scalar_select %p239, %s240, %s241
      %p245 = pneg %p239
      %p246 = scmp.eq.s32.totalorder %s32, 1
      %p247 = por %p245, %p246
      %p248 = scmp.ne.s32.totalorder %s240, %s243
      %p249 = scmp.eq.s32.totalorder %s32, 0
      %p250 = por %p248, %p249
      %p251 = scmp.ne.s32.totalorder %s240, %s243
      %p252 = scmp.eq.s32.totalorder %s37, 1
      %p253 = por %p251, %p252
      %p254 = scmp.ne.s32.totalorder %s243, %s244
      %p255 = scmp.eq.s32.totalorder %s37, 0
      %p256 = por %p254, %p255
      %p257 = scmp.ne.s32.totalorder %s243, %s244
      %p258 = scmp.eq.s32.totalorder %s38, 1
      %p259 = por %p257, %p258
      %p261 = scmp.ne.s32.totalorder %s244, %s260
      %p262 = scmp.eq.s32.totalorder %s38, 0
      %p263 = por %p261, %p262
      %s264 = ssub.s32 %s32, %s39
      %p265 = scmp.eq.s32.totalorder %s264, 0
      %s267 = sadd.s32 %s266, 1
      %s268 = scalar_select %p265, %s266, %s267
      %p271 = pneg %p265
      %p272 = scmp.eq.s32.totalorder %s32, 1
      %p273 = por %p271, %p272
      %p274 = scmp.ne.s32.totalorder %s266, %s269
      %p275 = scmp.eq.s32.totalorder %s32, 0
      %p276 = por %p274, %p275
      %p277 = scmp.ne.s32.totalorder %s266, %s269
      %p278 = scmp.eq.s32.totalorder %s37, 1
      %p279 = por %p277, %p278
      %p280 = scmp.ne.s32.totalorder %s269, %s270
      %p281 = scmp.eq.s32.totalorder %s37, 0
      %p282 = por %p280, %p281
      %p283 = scmp.ne.s32.totalorder %s269, %s270
      %p284 = scmp.eq.s32.totalorder %s38, 1
      %p285 = por %p283, %p284
      %p287 = scmp.ne.s32.totalorder %s270, %s286
      %p288 = scmp.eq.s32.totalorder %s38, 0
      %p289 = por %p287, %p288
      %s290 = ssub.s32 %s32, %s39
      %p291 = scmp.eq.s32.totalorder %s290, 0
      %s293 = sadd.s32 %s292, 1
      %s294 = scalar_select %p291, %s292, %s293
      %p297 = pneg %p291
      %p298 = scmp.eq.s32.totalorder %s32, 1
      %p299 = por %p297, %p298
      %p300 = scmp.ne.s32.totalorder %s292, %s295
      %p301 = scmp.eq.s32.totalorder %s32, 0
      %p302 = por %p300, %p301
      %p303 = scmp.ne.s32.totalorder %s292, %s295
      %p304 = scmp.eq.s32.totalorder %s37, 1
      %p305 = por %p303, %p304
      %p306 = scmp.ne.s32.totalorder %s295, %s296
      %p307 = scmp.eq.s32.totalorder %s37, 0
      %p308 = por %p306, %p307
      %p309 = scmp.ne.s32.totalorder %s295, %s296
      %p310 = scmp.eq.s32.totalorder %s38, 1
      %p311 = por %p309, %p310
      %p313 = scmp.ne.s32.totalorder %s296, %s312
      %p314 = scmp.eq.s32.totalorder %s38, 0
      %p315 = por %p313, %p314
      %s316 = ssub.s32 %s32, %s39
      %p317 = scmp.eq.s32.totalorder %s316, 0
      %s319 = sadd.s32 %s318, 1
      %s320 = scalar_select %p317, %s318, %s319
      %p323 = pneg %p317
      %p324 = scmp.eq.s32.totalorder %s32, 1
      %p325 = por %p323, %p324
      %p326 = scmp.ne.s32.totalorder %s318, %s321
      %p327 = scmp.eq.s32.totalorder %s32, 0
      %p328 = por %p326, %p327
      %p329 = scmp.ne.s32.totalorder %s318, %s321
      %p330 = scmp.eq.s32.totalorder %s37, 1
      %p331 = por %p329, %p330
      %p332 = scmp.ne.s32.totalorder %s321, %s322
      %p333 = scmp.eq.s32.totalorder %s37, 0
      %p334 = por %p332, %p333
      %p335 = scmp.ne.s32.totalorder %s321, %s322
      %p336 = scmp.eq.s32.totalorder %s38, 1
      %p337 = por %p335, %p336
      %p339 = scmp.ne.s32.totalorder %s322, %s338
      %p340 = scmp.eq.s32.totalorder %s38, 0
      %p341 = por %p339, %p340
      %s342 = ssub.s32 %s32, %s39
      %p343 = scmp.eq.s32.totalorder %s342, 0
      %s345 = sadd.s32 %s344, 1
      %s346 = scalar_select %p343, %s344, %s345
      %p349 = pneg %p343
      %p350 = scmp.eq.s32.totalorder %s32, 1
      %p351 = por %p349, %p350
      %p352 = scmp.ne.s32.totalorder %s344, %s347
      %p353 = scmp.eq.s32.totalorder %s32, 0
      %p354 = por %p352, %p353
      %p355 = scmp.ne.s32.totalorder %s344, %s347
      %p356 = scmp.eq.s32.totalorder %s37, 1
      %p357 = por %p355, %p356
      %p358 = scmp.ne.s32.totalorder %s347, %s348
      %p359 = scmp.eq.s32.totalorder %s37, 0
      %p360 = por %p358, %p359
      %p361 = scmp.ne.s32.totalorder %s347, %s348
      %p362 = scmp.eq.s32.totalorder %s38, 1
      %p363 = por %p361, %p362
      %p365 = scmp.ne.s32.totalorder %s348, %s364
      %p366 = scmp.eq.s32.totalorder %s38, 0
      %p367 = por %p365, %p366
      %s368 = ssub.s32 %s32, %s39
      %p369 = scmp.eq.s32.totalorder %s368, 0
      %s371 = sadd.s32 %s370, 1
      %s372 = scalar_select %p369, %s370, %s371
      %p375 = pneg %p369
      %p376 = scmp.eq.s32.totalorder %s32, 1
      %p377 = por %p375, %p376
      %p378 = scmp.ne.s32.totalorder %s370, %s373
      %p379 = scmp.eq.s32.totalorder %s32, 0
      %p380 = por %p378, %p379
      %p381 = scmp.ne.s32.totalorder %s370, %s373
      %p382 = scmp.eq.s32.totalorder %s37, 1
      %p383 = por %p381, %p382
      %p384 = scmp.ne.s32.totalorder %s373, %s374
      %p385 = scmp.eq.s32.totalorder %s37, 0
      %p386 = por %p384, %p385
      %p387 = scmp.ne.s32.totalorder %s373, %s374
      %p388 = scmp.eq.s32.totalorder %s38, 1
      %p389 = por %p387, %p388
      %p391 = scmp.ne.s32.totalorder %s374, %s390
      %p392 = scmp.eq.s32.totalorder %s38, 0
      %p393 = por %p391, %p392
      %s394 = ssub.s32 %s32, %s39
      %p395 = scmp.eq.s32.totalorder %s394, 0
      %s397 = sadd.s32 %s396, 1
      %s398 = scalar_select %p395, %s396, %s397
      %p401 = pneg %p395
      %p402 = scmp.eq.s32.totalorder %s32, 1
      %p403 = por %p401, %p402
      %p404 = scmp.ne.s32.totalorder %s396, %s399
      %p405 = scmp.eq.s32.totalorder %s32, 0
      %p406 = por %p404, %p405
      %p407 = scmp.ne.s32.totalorder %s396, %s399
      %p408 = scmp.eq.s32.totalorder %s37, 1
      %p409 = por %p407, %p408
      %p410 = scmp.ne.s32.totalorder %s399, %s400
      %p411 = scmp.eq.s32.totalorder %s37, 0
      %p412 = por %p410, %p411
      %p413 = scmp.ne.s32.totalorder %s399, %s400
      %p414 = scmp.eq.s32.totalorder %s38, 1
      %p415 = por %p413, %p414
      %p417 = scmp.ne.s32.totalorder %s400, %s416
      %p418 = scmp.eq.s32.totalorder %s38, 0
      %p419 = por %p417, %p418
      %s420 = ssub.s32 %s32, %s39
      %p421 = scmp.eq.s32.totalorder %s420, 0
      %s423 = sadd.s32 %s422, 1
      %s424 = scalar_select %p421, %s422, %s423
      %p427 = pneg %p421
      %p428 = scmp.eq.s32.totalorder %s32, 1
      %p429 = por %p427, %p428
      %p430 = scmp.ne.s32.totalorder %s422, %s425
      %p431 = scmp.eq.s32.totalorder %s32, 0
      %p432 = por %p430, %p431
      %p433 = scmp.ne.s32.totalorder %s422, %s425
      %p434 = scmp.eq.s32.totalorder %s37, 1
      %p435 = por %p433, %p434
      %p436 = scmp.ne.s32.totalorder %s425, %s426
      %p437 = scmp.eq.s32.totalorder %s37, 0
      %p438 = por %p436, %p437
      %p439 = scmp.ne.s32.totalorder %s425, %s426
      %p440 = scmp.eq.s32.totalorder %s38, 1
      %p441 = por %p439, %p440
      %p443 = scmp.ne.s32.totalorder %s426, %s442
      %p444 = scmp.eq.s32.totalorder %s38, 0
      %p445 = por %p443, %p444
      %s446 = ssub.s32 %s32, %s39
      %p447 = scmp.eq.s32.totalorder %s446, 0
      %s449 = sadd.s32 %s448, 1
      %s450 = scalar_select %p447, %s448, %s449
      %p453 = pneg %p447
      %p454 = scmp.eq.s32.totalorder %s32, 1
      %p455 = por %p453, %p454
      %p456 = scmp.ne.s32.totalorder %s448, %s451
      %p457 = scmp.eq.s32.totalorder %s32, 0
      %p458 = por %p456, %p457
      %p459 = scmp.ne.s32.totalorder %s448, %s451
      %p460 = scmp.eq.s32.totalorder %s37, 1
      %p461 = por %p459, %p460
      %p462 = scmp.ne.s32.totalorder %s451, %s452
      %p463 = scmp.eq.s32.totalorder %s37, 0
      %p464 = por %p462, %p463
      %p465 = scmp.ne.s32.totalorder %s451, %s452
      %p466 = scmp.eq.s32.totalorder %s38, 1
      %p467 = por %p465, %p466
      %p469 = scmp.ne.s32.totalorder %s452, %s468
      %p470 = scmp.eq.s32.totalorder %s38, 0
      %p471 = por %p469, %p470
      %s472 = ssub.s32 %s32, %s39
      %p473 = scmp.eq.s32.totalorder %s472, 0
      %s475 = sadd.s32 %s474, 1
      %s476 = scalar_select %p473, %s474, %s475
      %p479 = pneg %p473
      %p480 = scmp.eq.s32.totalorder %s32, 1
      %p481 = por %p479, %p480
      %p482 = scmp.ne.s32.totalorder %s474, %s477
      %p483 = scmp.eq.s32.totalorder %s32, 0
      %p484 = por %p482, %p483
      %p485 = scmp.ne.s32.totalorder %s474, %s477
      %p486 = scmp.eq.s32.totalorder %s37, 1
      %p487 = por %p485, %p486
      %p488 = scmp.ne.s32.totalorder %s477, %s478
      %p489 = scmp.eq.s32.totalorder %s37, 0
      %p490 = por %p488, %p489
      %p491 = scmp.ne.s32.totalorder %s477, %s478
      %p492 = scmp.eq.s32.totalorder %s38, 1
      %p493 = por %p491, %p492
      %p495 = scmp.ne.s32.totalorder %s478, %s494
      %p496 = scmp.eq.s32.totalorder %s38, 0
      %p497 = por %p495, %p496
      %s499 = sadd.s32 %s498, 1
      %p502 = scmp.eq.s32.totalorder %s32, 1
      %p503 = scmp.ne.s32.totalorder %s498, %s500
      %p504 = scmp.eq.s32.totalorder %s32, 0
      %p505 = por %p503, %p504
      %p506 = scmp.ne.s32.totalorder %s498, %s500
      %p507 = scmp.eq.s32.totalorder %s37, 1
      %p508 = por %p506, %p507
      %p509 = scmp.ne.s32.totalorder %s500, %s501
      %p510 = scmp.eq.s32.totalorder %s37, 0
      %p511 = por %p509, %p510
      %p512 = scmp.ne.s32.totalorder %s500, %s501
      %p513 = scmp.eq.s32.totalorder %s38, 1
      %p514 = por %p512, %p513
      %p516 = scmp.ne.s32.totalorder %s501, %s515
      %p517 = scmp.eq.s32.totalorder %s38, 0
      %p518 = por %p516, %p517
      %s520 = sadd.s32 %s519, 1
      %p523 = scmp.eq.s32.totalorder %s32, 1
      %p524 = scmp.ne.s32.totalorder %s519, %s521
      %p525 = scmp.eq.s32.totalorder %s32, 0
      %p526 = por %p524, %p525
      %p527 = scmp.ne.s32.totalorder %s519, %s521
      %p528 = scmp.eq.s32.totalorder %s37, 1
      %p529 = por %p527, %p528
      %p530 = scmp.ne.s32.totalorder %s521, %s522
      %p531 = scmp.eq.s32.totalorder %s37, 0
      %p532 = por %p530, %p531
      %p533 = scmp.ne.s32.totalorder %s521, %s522
      %p534 = scmp.eq.s32.totalorder %s38, 1
      %p535 = por %p533, %p534
      %p537 = scmp.ne.s32.totalorder %s522, %s536
      %p538 = scmp.eq.s32.totalorder %s38, 0
      %p539 = por %p537, %p538
      %s541 = sadd.s32 %s540, 1
      %p544 = scmp.eq.s32.totalorder %s32, 1
      %p545 = scmp.ne.s32.totalorder %s540, %s542
      %p546 = scmp.eq.s32.totalorder %s32, 0
      %p547 = por %p545, %p546
      %p548 = scmp.ne.s32.totalorder %s540, %s542
      %p549 = scmp.eq.s32.totalorder %s37, 1
      %p550 = por %p548, %p549
      %p551 = scmp.ne.s32.totalorder %s542, %s543
      %p552 = scmp.eq.s32.totalorder %s37, 0
      %p553 = por %p551, %p552
      %p554 = scmp.ne.s32.totalorder %s542, %s543
      %p555 = scmp.eq.s32.totalorder %s38, 1
      %p556 = por %p554, %p555
      %p558 = scmp.ne.s32.totalorder %s543, %s557
      %p559 = scmp.eq.s32.totalorder %s38, 0
      %p560 = por %p558, %p559
      %s562 = sadd.s32 %s561, 1
      %p565 = scmp.eq.s32.totalorder %s32, 1
      %p566 = scmp.ne.s32.totalorder %s561, %s563
      %p567 = scmp.eq.s32.totalorder %s32, 0
      %p568 = por %p566, %p567
      %p569 = scmp.ne.s32.totalorder %s561, %s563
      %p570 = scmp.eq.s32.totalorder %s37, 1
      %p571 = por %p569, %p570
      %p572 = scmp.ne.s32.totalorder %s563, %s564
      %p573 = scmp.eq.s32.totalorder %s37, 0
      %p574 = por %p572, %p573
      %p575 = scmp.ne.s32.totalorder %s563, %s564
      %p576 = scmp.eq.s32.totalorder %s38, 1
      %p577 = por %p575, %p576
      %p579 = scmp.ne.s32.totalorder %s564, %s578
      %p580 = scmp.eq.s32.totalorder %s38, 0
      %p581 = por %p579, %p580
      %s583 = sadd.s32 %s582, 1
      %p586 = scmp.eq.s32.totalorder %s32, 1
      %p587 = scmp.ne.s32.totalorder %s582, %s584
      %p588 = scmp.eq.s32.totalorder %s32, 0
      %p589 = por %p587, %p588
      %p590 = scmp.ne.s32.totalorder %s582, %s584
      %p591 = scmp.eq.s32.totalorder %s37, 1
      %p592 = por %p590, %p591
      %p593 = scmp.ne.s32.totalorder %s584, %s585
      %p594 = scmp.eq.s32.totalorder %s37, 0
      %p595 = por %p593, %p594
      %p596 = scmp.ne.s32.totalorder %s584, %s585
      %p597 = scmp.eq.s32.totalorder %s38, 1
      %p598 = por %p596, %p597
      %p600 = scmp.ne.s32.totalorder %s585, %s599
      %p601 = scmp.eq.s32.totalorder %s38, 0
      %p602 = por %p600, %p601
      %s604 = sadd.s32 %s603, 1
      %p607 = scmp.eq.s32.totalorder %s32, 1
      %p608 = scmp.ne.s32.totalorder %s603, %s605
      %p609 = scmp.eq.s32.totalorder %s32, 0
      %p610 = por %p608, %p609
      %p611 = scmp.ne.s32.totalorder %s603, %s605
      %p612 = scmp.eq.s32.totalorder %s37, 1
      %p613 = por %p611, %p612
      %p614 = scmp.ne.s32.totalorder %s605, %s606
      %p615 = scmp.eq.s32.totalorder %s37, 0
      %p616 = por %p614, %p615
      %p617 = scmp.ne.s32.totalorder %s605, %s606
      %p618 = scmp.eq.s32.totalorder %s38, 1
      %p619 = por %p617, %p618
      %p621 = scmp.ne.s32.totalorder %s606, %s620
      %p622 = scmp.eq.s32.totalorder %s38, 0
      %p623 = por %p621, %p622
      %p624 = scmp.le.s32.totalorder 1, %s32
      %p625 = scmp.lt.s32.totalorder %s32, 3
      %p626 = pnand %p624, %p625
      %p627 = pneg %p626
      // Predicated region
      $region9: #{tpu_custom_call.1} parent=5 // pred_check
        _
      $region10: #{tpu_custom_call.1} parent=5 // pred_check_branch
        %629 = sbr.rel (%p626) target = $region12
      $region11: #{tpu_custom_call.1} parent=5 // pred_region
        %s630 = ssub.s32 %s32, 1
        // Predicated region
        $region13: #{tpu_custom_call.1} parent=11 // pred_check
          %p631 = pneg %p53
        $region14: #{tpu_custom_call.1} parent=11 // pred_check_branch
          %633 = sbr.rel (%p631) target = $region16
        $region15: #{tpu_custom_call.1} parent=11 // pred_region
          %s635 = ssub.s32 256, 256
          %636 = vsyncadd [#allocation3], %s635
          %s637 = sshll.u32 [#allocation2], 4
          %s638 = int_to_ptr.vmem [resolvable:$true] %s637
          %643 = dma.hbm_to_vmem [thread:$0]  %s0, 256, %s638, [#allocation3], 128, 128, 8
        $region16: #{tpu_custom_call.1} parent=11 // pred_fallthru
          _
        // Predicated region
        $region17: #{tpu_custom_call.1} parent=11 // pred_check
          %p644 = pneg %p74
        $region18: #{tpu_custom_call.1} parent=11 // pred_check_branch
          %646 = sbr.rel (%p644) target = $region20
        $region19: #{tpu_custom_call.1} parent=11 // pred_region
          %s648 = ssub.s32 32, 32
          %649 = vsyncadd [#allocation6], %s648
          %s651 = sshll.u32 [#allocation5], 4
          %s652 = int_to_ptr.vmem [resolvable:$true] %s651
          %654 = dma.hbm_to_vmem [thread:$0]  %s1, 32, %s652, [#allocation6]
        $region20: #{tpu_custom_call.1} parent=11 // pred_fallthru
          _
        // Predicated region
        $region21: #{tpu_custom_call.1} parent=11 // pred_check
          %p655 = pneg %p511
        $region22: #{tpu_custom_call.1} parent=11 // pred_check_branch
          %657 = sbr.rel (%p655) target = $region24
        $region23: #{tpu_custom_call.1} parent=11 // pred_region
          _
        $region24: #{tpu_custom_call.1} parent=11 // pred_fallthru
          _
        // Predicated region
        $region25: #{tpu_custom_call.1} parent=11 // pred_check
          %p658 = pneg %p532
        $region26: #{tpu_custom_call.1} parent=11 // pred_check_branch
          %660 = sbr.rel (%p658) target = $region28
        $region27: #{tpu_custom_call.1} parent=11 // pred_region
          _
        $region28: #{tpu_custom_call.1} parent=11 // pred_fallthru
          _
        // Predicated region
        $region29: #{tpu_custom_call.1} parent=11 // pred_check
          %p661 = pneg %p553
        $region30: #{tpu_custom_call.1} parent=11 // pred_check_branch
          %663 = sbr.rel (%p661) target = $region32
        $region31: #{tpu_custom_call.1} parent=11 // pred_region
          %s665 = ssub.s32 1536, 1536
          %666 = vsyncadd [#allocation6], %s665
          %s667 = sshll.u32 [#allocation12], 4
          %s668 = int_to_ptr.vmem [resolvable:$true] %s667
          %673 = dma.hbm_to_vmem [thread:$0]  %s20, 1536, %s668, [#allocation6], 128, 128, 8
        $region32: #{tpu_custom_call.1} parent=11 // pred_fallthru
          _
        // Predicated region
        $region33: #{tpu_custom_call.1} parent=11 // pred_check
          %p674 = pneg %p574
        $region34: #{tpu_custom_call.1} parent=11 // pred_check_branch
          %676 = sbr.rel (%p674) target = $region36
        $region35: #{tpu_custom_call.1} parent=11 // pred_region
          _
        $region36: #{tpu_custom_call.1} parent=11 // pred_fallthru
          _
        // Predicated region
        $region37: #{tpu_custom_call.1} parent=11 // pred_check
          %p677 = pneg %p595
        $region38: #{tpu_custom_call.1} parent=11 // pred_check_branch
          %679 = sbr.rel (%p677) target = $region40
        $region39: #{tpu_custom_call.1} parent=11 // pred_region
          _
        $region40: #{tpu_custom_call.1} parent=11 // pred_fallthru
          _
      $region12: #{tpu_custom_call.1} parent=5 // pred_fallthru
        _
      %p680 = scmp.lt.s32.totalorder %s32, 2
      // Predicated region
      $region41: #{tpu_custom_call.1} parent=5 // pred_check
        %p681 = pneg %p680
      $region42: #{tpu_custom_call.1} parent=5 // pred_check_branch
        %683 = sbr.rel (%p681) target = $region44
      $region43: #{tpu_custom_call.1} parent=5 // pred_region
        // Predicated region
        $region45: #{tpu_custom_call.1} parent=43 // pred_check
          %p684 = pneg %p94
        $region46: #{tpu_custom_call.1} parent=43 // pred_check_branch
          %686 = sbr.rel (%p684) target = $region48
        $region47: #{tpu_custom_call.1} parent=43 // pred_region
          %s687 = sand.u32 %s32, 1
          %s688 = scalar_lea.sflag [#allocation3], %s687
          %s689 = sand.u32 %s84, 1
          %s690 = smul.addr %s689, 32
          %s691 = scalar_lea.vmem [#allocation7], %s690
          %s693 = ssub.s32 512, 512
          %694 = vsyncadd %s688, %s693
          %s695 = smul.addr %s32, 4
          %s696 = smul.addr %s695, 128
          %s697 = scalar_lea.hbm %s2, %s696
          %s698 = sshll.u32 %s691, 4
          %s699 = int_to_ptr.vmem [resolvable:$true] %s698
          %704 = dma.hbm_to_vmem [thread:$0]  %s697, 512, %s699, %s688, 128, 128, 8
        $region48: #{tpu_custom_call.1} parent=43 // pred_fallthru
          _
        // Predicated region
        $region49: #{tpu_custom_call.1} parent=43 // pred_check
          %p705 = pneg %p120
        $region50: #{tpu_custom_call.1} parent=43 // pred_check_branch
          %707 = sbr.rel (%p705) target = $region52
        $region51: #{tpu_custom_call.1} parent=43 // pred_region
          %p708 = scmp.lt.s32.totalorder %s32, 1
          %s709 = scalar_select %p708, %s32, 1
          %s710 = scalar_lea.vmem %s3, %s709
        $region52: #{tpu_custom_call.1} parent=43 // pred_fallthru
          _
        // Predicated region
        $region53: #{tpu_custom_call.1} parent=43 // pred_check
          %p711 = pneg %p146
        $region54: #{tpu_custom_call.1} parent=43 // pred_check_branch
          %713 = sbr.rel (%p711) target = $region56
        $region55: #{tpu_custom_call.1} parent=43 // pred_region
          %s714 = sand.u32 %s32, 1
          %s715 = scalar_lea.sflag [#allocation3], %s714
          %s716 = sand.u32 %s136, 1
          %s717 = smul.addr %s716, 32
          %s718 = scalar_lea.vmem [#allocation8], %s717
          %s720 = ssub.s32 512, 512
          %721 = vsyncadd %s715, %s720
          %s722 = smul.addr %s32, 4
          %s723 = smul.addr %s722, 128
          %s724 = scalar_lea.hbm %s4, %s723
          %s725 = sshll.u32 %s718, 4
          %s726 = int_to_ptr.vmem [resolvable:$true] %s725
          %731 = dma.hbm_to_vmem [thread:$0]  %s724, 512, %s726, %s715, 128, 128, 8
        $region56: #{tpu_custom_call.1} parent=43 // pred_fallthru
          _
        // Predicated region
        $region57: #{tpu_custom_call.1} parent=43 // pred_check
          %p732 = pneg %p172
        $region58: #{tpu_custom_call.1} parent=43 // pred_check_branch
          %734 = sbr.rel (%p732) target = $region60
        $region59: #{tpu_custom_call.1} parent=43 // pred_region
          %p735 = scmp.lt.s32.totalorder %s32, 1
          %s736 = scalar_select %p735, %s32, 1
          %s737 = scalar_lea.vmem %s5, %s736
        $region60: #{tpu_custom_call.1} parent=43 // pred_fallthru
          _
        // Predicated region
        $region61: #{tpu_custom_call.1} parent=43 // pred_check
          %p738 = pneg %p198
        $region62: #{tpu_custom_call.1} parent=43 // pred_check_branch
          %740 = sbr.rel (%p738) target = $region64
        $region63: #{tpu_custom_call.1} parent=43 // pred_region
          %s741 = sand.u32 %s32, 1
          %s742 = scalar_lea.sflag [#allocation3], %s741
          %s743 = sand.u32 %s188, 1
          %s744 = smul.addr %s743, 32
          %s745 = scalar_lea.vmem [#allocation9], %s744
          %s747 = ssub.s32 512, 512
          %748 = vsyncadd %s742, %s747
          %s749 = smul.addr %s32, 4
          %s750 = smul.addr %s749, 128
          %s751 = scalar_lea.hbm %s6, %s750
          %s752 = sshll.u32 %s745, 4
          %s753 = int_to_ptr.vmem [resolvable:$true] %s752
          %758 = dma.hbm_to_vmem [thread:$0]  %s751, 512, %s753, %s742, 128, 128, 8
        $region64: #{tpu_custom_call.1} parent=43 // pred_fallthru
          _
        // Predicated region
        $region65: #{tpu_custom_call.1} parent=43 // pred_check
          %p759 = pneg %p224
        $region66: #{tpu_custom_call.1} parent=43 // pred_check_branch
          %761 = sbr.rel (%p759) target = $region68
        $region67: #{tpu_custom_call.1} parent=43 // pred_region
          %p762 = scmp.lt.s32.totalorder %s32, 1
          %s763 = scalar_select %p762, %s32, 1
          %s764 = scalar_lea.vmem %s7, %s763
        $region68: #{tpu_custom_call.1} parent=43 // pred_fallthru
          _
        // Predicated region
        $region69: #{tpu_custom_call.1} parent=43 // pred_check
          %p765 = pneg %p250
        $region70: #{tpu_custom_call.1} parent=43 // pred_check_branch
          %767 = sbr.rel (%p765) target = $region72
        $region71: #{tpu_custom_call.1} parent=43 // pred_region
          %s768 = sand.u32 %s32, 1
          %s769 = scalar_lea.sflag [#allocation3], %s768
          %s770 = sand.u32 %s240, 1
          %s771 = smul.addr %s770, 32
          %s772 = scalar_lea.vmem [#allocation10], %s771
          %s774 = ssub.s32 512, 512
          %775 = vsyncadd %s769, %s774
          %s776 = smul.addr %s32, 4
          %s777 = smul.addr %s776, 128
          %s778 = scalar_lea.hbm %s8, %s777
          %s779 = sshll.u32 %s772, 4
          %s780 = int_to_ptr.vmem [resolvable:$true] %s779
          %785 = dma.hbm_to_vmem [thread:$0]  %s778, 512, %s780, %s769, 128, 128, 8
        $region72: #{tpu_custom_call.1} parent=43 // pred_fallthru
          _
        // Predicated region
        $region73: #{tpu_custom_call.1} parent=43 // pred_check
          %p786 = pneg %p276
        $region74: #{tpu_custom_call.1} parent=43 // pred_check_branch
          %788 = sbr.rel (%p786) target = $region76
        $region75: #{tpu_custom_call.1} parent=43 // pred_region
          %p789 = scmp.lt.s32.totalorder %s32, 1
          %s790 = scalar_select %p789, %s32, 1
          %s791 = scalar_lea.vmem %s9, %s790
        $region76: #{tpu_custom_call.1} parent=43 // pred_fallthru
          _
        // Predicated region
        $region77: #{tpu_custom_call.1} parent=43 // pred_check
          %p792 = pneg %p302
        $region78: #{tpu_custom_call.1} parent=43 // pred_check_branch
          %794 = sbr.rel (%p792) target = $region80
        $region79: #{tpu_custom_call.1} parent=43 // pred_region
          %p795 = scmp.lt.s32.totalorder %s32, 1
          %s796 = scalar_select %p795, %s32, 1
          %s797 = scalar_lea.vmem %s10, %s796
        $region80: #{tpu_custom_call.1} parent=43 // pred_fallthru
          _
        // Predicated region
        $region81: #{tpu_custom_call.1} parent=43 // pred_check
          %p798 = pneg %p328
        $region82: #{tpu_custom_call.1} parent=43 // pred_check_branch
          %800 = sbr.rel (%p798) target = $region84
        $region83: #{tpu_custom_call.1} parent=43 // pred_region
          %p801 = scmp.lt.s32.totalorder %s32, 1
          %s802 = scalar_select %p801, %s32, 1
          %s803 = scalar_lea.vmem %s11, %s802
        $region84: #{tpu_custom_call.1} parent=43 // pred_fallthru
          _
        // Predicated region
        $region85: #{tpu_custom_call.1} parent=43 // pred_check
          %p804 = pneg %p354
        $region86: #{tpu_custom_call.1} parent=43 // pred_check_branch
          %806 = sbr.rel (%p804) target = $region88
        $region87: #{tpu_custom_call.1} parent=43 // pred_region
          %s807 = sand.u32 %s32, 1
          %s808 = scalar_lea.sflag [#allocation3], %s807
          %s809 = sand.u32 %s344, 1
          %s810 = smul.addr %s809, 32
          %s811 = scalar_lea.vmem [#allocation11], %s810
          %s813 = ssub.s32 512, 512
          %814 = vsyncadd %s808, %s813
          %s815 = smul.addr %s32, 4
          %s816 = smul.addr %s815, 128
          %s817 = scalar_lea.hbm %s12, %s816
          %s818 = sshll.u32 %s811, 4
          %s819 = int_to_ptr.vmem [resolvable:$true] %s818
          %824 = dma.hbm_to_vmem [thread:$0]  %s817, 512, %s819, %s808, 128, 128, 8
        $region88: #{tpu_custom_call.1} parent=43 // pred_fallthru
          _
        // Predicated region
        $region89: #{tpu_custom_call.1} parent=43 // pred_check
          %p825 = pneg %p380
        $region90: #{tpu_custom_call.1} parent=43 // pred_check_branch
          %827 = sbr.rel (%p825) target = $region92
        $region91: #{tpu_custom_call.1} parent=43 // pred_region
          %p828 = scmp.lt.s32.totalorder %s32, 1
          %s829 = scalar_select %p828, %s32, 1
          %s830 = scalar_lea.vmem %s13, %s829
        $region92: #{tpu_custom_call.1} parent=43 // pred_fallthru
          _
        // Predicated region
        $region93: #{tpu_custom_call.1} parent=43 // pred_check
          %p831 = pneg %p406
        $region94: #{tpu_custom_call.1} parent=43 // pred_check_branch
          %833 = sbr.rel (%p831) target = $region96
        $region95: #{tpu_custom_call.1} parent=43 // pred_region
          %p834 = scmp.lt.s32.totalorder %s32, 1
          %s835 = scalar_select %p834, %s32, 1
          %s836 = smul.addr %s835, 8
          %s837 = smul.addr %s836, 8
          %s838 = scalar_lea.vmem %s14, %s837
        $region96: #{tpu_custom_call.1} parent=43 // pred_fallthru
          _
        // Predicated region
        $region97: #{tpu_custom_call.1} parent=43 // pred_check
          %p839 = pneg %p432
        $region98: #{tpu_custom_call.1} parent=43 // pred_check_branch
          %841 = sbr.rel (%p839) target = $region100
        $region99: #{tpu_custom_call.1} parent=43 // pred_region
          %p842 = scmp.lt.s32.totalorder %s32, 1
          %s843 = scalar_select %p842, %s32, 1
          %s844 = scalar_lea.vmem %s15, %s843
        $region100: #{tpu_custom_call.1} parent=43 // pred_fallthru
          _
        // Predicated region
        $region101: #{tpu_custom_call.1} parent=43 // pred_check
          %p845 = pneg %p458
        $region102: #{tpu_custom_call.1} parent=43 // pred_check_branch
          %847 = sbr.rel (%p845) target = $region104
        $region103: #{tpu_custom_call.1} parent=43 // pred_region
          %p848 = scmp.lt.s32.totalorder %s32, 1
          %s849 = scalar_select %p848, %s32, 1
          %s850 = scalar_lea.vmem %s16, %s849
        $region104: #{tpu_custom_call.1} parent=43 // pred_fallthru
          _
        // Predicated region
        $region105: #{tpu_custom_call.1} parent=43 // pred_check
          %p851 = pneg %p484
        $region106: #{tpu_custom_call.1} parent=43 // pred_check_branch
          %853 = sbr.rel (%p851) target = $region108
        $region107: #{tpu_custom_call.1} parent=43 // pred_region
          %p854 = scmp.lt.s32.totalorder %s32, 1
          %s855 = scalar_select %p854, %s32, 1
          %s856 = scalar_lea.vmem %s17, %s855
        $region108: #{tpu_custom_call.1} parent=43 // pred_fallthru
          _
      $region44: #{tpu_custom_call.1} parent=5 // pred_fallthru
        _
      %p857 = scmp.le.s32.totalorder 1, %s32
      %p858 = scmp.lt.s32.totalorder %s32, 3
      %p859 = pnand %p857, %p858
      %p860 = pneg %p859
      // Predicated region
      $region109: #{tpu_custom_call.1} parent=5 // pred_check
        _
      $region110: #{tpu_custom_call.1} parent=5 // pred_check_branch
        %862 = sbr.rel (%p859) target = $region112
      $region111: #{tpu_custom_call.1} parent=5 // pred_region
        %s863 = ssub.s32 %s32, 1
        // Predicated region
        $region113: #{tpu_custom_call.1} parent=111 // pred_check
          %p864 = pneg %p53
        $region114: #{tpu_custom_call.1} parent=111 // pred_check_branch
          %866 = sbr.rel (%p864) target = $region116
        $region115: #{tpu_custom_call.1} parent=111 // pred_region
          %867 = dma.done [#allocation3], 256
        $region116: #{tpu_custom_call.1} parent=111 // pred_fallthru
          _
        // Predicated region
        $region117: #{tpu_custom_call.1} parent=111 // pred_check
          %p868 = pneg %p74
        $region118: #{tpu_custom_call.1} parent=111 // pred_check_branch
          %870 = sbr.rel (%p868) target = $region120
        $region119: #{tpu_custom_call.1} parent=111 // pred_region
          %871 = dma.done [#allocation6], 32
        $region120: #{tpu_custom_call.1} parent=111 // pred_fallthru
          _
        %s872 = sand.u32 %s37, 1
        %s873 = scalar_lea.sflag [#allocation3], %s872
        %s874 = sand.u32 %s87, 1
        %s875 = smul.addr %s874, 32
        %s876 = scalar_lea.vmem [#allocation7], %s875
        // Predicated region
        $region121: #{tpu_custom_call.1} parent=111 // pred_check
          %p877 = pneg %p100
        $region122: #{tpu_custom_call.1} parent=111 // pred_check_branch
          %879 = sbr.rel (%p877) target = $region124
        $region123: #{tpu_custom_call.1} parent=111 // pred_region
          %880 = dma.done %s873, 512
        $region124: #{tpu_custom_call.1} parent=111 // pred_fallthru
          _
        %s881 = sand.u32 %s37, 1
        %s882 = scalar_lea.sflag [#allocation3], %s881
        %s883 = sand.u32 %s139, 1
        %s884 = smul.addr %s883, 32
        %s885 = scalar_lea.vmem [#allocation8], %s884
        // Predicated region
        $region125: #{tpu_custom_call.1} parent=111 // pred_check
          %p886 = pneg %p152
        $region126: #{tpu_custom_call.1} parent=111 // pred_check_branch
          %888 = sbr.rel (%p886) target = $region128
        $region127: #{tpu_custom_call.1} parent=111 // pred_region
          %889 = dma.done %s882, 512
        $region128: #{tpu_custom_call.1} parent=111 // pred_fallthru
          _
        %s890 = sand.u32 %s37, 1
        %s891 = scalar_lea.sflag [#allocation3], %s890
        %s892 = sand.u32 %s191, 1
        %s893 = smul.addr %s892, 32
        %s894 = scalar_lea.vmem [#allocation9], %s893
        // Predicated region
        $region129: #{tpu_custom_call.1} parent=111 // pred_check
          %p895 = pneg %p204
        $region130: #{tpu_custom_call.1} parent=111 // pred_check_branch
          %897 = sbr.rel (%p895) target = $region132
        $region131: #{tpu_custom_call.1} parent=111 // pred_region
          %898 = dma.done %s891, 512
        $region132: #{tpu_custom_call.1} parent=111 // pred_fallthru
          _
        %s899 = sand.u32 %s37, 1
        %s900 = scalar_lea.sflag [#allocation3], %s899
        %s901 = sand.u32 %s243, 1
        %s902 = smul.addr %s901, 32
        %s903 = scalar_lea.vmem [#allocation10], %s902
        // Predicated region
        $region133: #{tpu_custom_call.1} parent=111 // pred_check
          %p904 = pneg %p256
        $region134: #{tpu_custom_call.1} parent=111 // pred_check_branch
          %906 = sbr.rel (%p904) target = $region136
        $region135: #{tpu_custom_call.1} parent=111 // pred_region
          %907 = dma.done %s900, 512
        $region136: #{tpu_custom_call.1} parent=111 // pred_fallthru
          _
        %s908 = sand.u32 %s37, 1
        %s909 = scalar_lea.sflag [#allocation3], %s908
        %s910 = sand.u32 %s347, 1
        %s911 = smul.addr %s910, 32
        %s912 = scalar_lea.vmem [#allocation11], %s911
        // Predicated region
        $region137: #{tpu_custom_call.1} parent=111 // pred_check
          %p913 = pneg %p360
        $region138: #{tpu_custom_call.1} parent=111 // pred_check_branch
          %915 = sbr.rel (%p913) target = $region140
        $region139: #{tpu_custom_call.1} parent=111 // pred_region
          %916 = dma.done %s909, 512
        $region140: #{tpu_custom_call.1} parent=111 // pred_fallthru
          _
        // Predicated region
        $region141: #{tpu_custom_call.1} parent=111 // pred_check
          %p917 = pneg %p553
        $region142: #{tpu_custom_call.1} parent=111 // pred_check_branch
          %919 = sbr.rel (%p917) target = $region144
        $region143: #{tpu_custom_call.1} parent=111 // pred_region
          %920 = dma.done [#allocation6], 1536
        $region144: #{tpu_custom_call.1} parent=111 // pred_fallthru
          _
        %p921 = pneg %p53
        %p922 = pneg %p50
        %p923 = pneg %p74
        %p924 = pneg %p71
        %s925 = sand.u32 %s37, 1
        %s926 = scalar_lea.sflag [#allocation3], %s925
        %s927 = sand.u32 %s87, 1
        %s928 = smul.addr %s927, 32
        %s929 = scalar_lea.vmem [#allocation7], %s928
        %p930 = pneg %p100
        %p931 = pneg %p97
        %p932 = scmp.lt.s32.totalorder %s37, 1
        %s933 = scalar_select %p932, %s37, 1
        %s934 = scalar_lea.vmem %s3, %s933
        %p935 = pneg %p126
        %p936 = pneg %p123
        %s937 = sand.u32 %s37, 1
        %s938 = scalar_lea.sflag [#allocation3], %s937
        %s939 = sand.u32 %s139, 1
        %s940 = smul.addr %s939, 32
        %s941 = scalar_lea.vmem [#allocation8], %s940
        %p942 = pneg %p152
        %p943 = pneg %p149
        %p944 = scmp.lt.s32.totalorder %s37, 1
        %s945 = scalar_select %p944, %s37, 1
        %s946 = scalar_lea.vmem %s5, %s945
        %p947 = pneg %p178
        %p948 = pneg %p175
        %s949 = sand.u32 %s37, 1
        %s950 = scalar_lea.sflag [#allocation3], %s949
        %s951 = sand.u32 %s191, 1
        %s952 = smul.addr %s951, 32
        %s953 = scalar_lea.vmem [#allocation9], %s952
        %p954 = pneg %p204
        %p955 = pneg %p201
        %p956 = scmp.lt.s32.totalorder %s37, 1
        %s957 = scalar_select %p956, %s37, 1
        %s958 = scalar_lea.vmem %s7, %s957
        %p959 = pneg %p230
        %p960 = pneg %p227
        %s961 = sand.u32 %s37, 1
        %s962 = scalar_lea.sflag [#allocation3], %s961
        %s963 = sand.u32 %s243, 1
        %s964 = smul.addr %s963, 32
        %s965 = scalar_lea.vmem [#allocation10], %s964
        %p966 = pneg %p256
        %p967 = pneg %p253
        %p968 = scmp.lt.s32.totalorder %s37, 1
        %s969 = scalar_select %p968, %s37, 1
        %s970 = scalar_lea.vmem %s9, %s969
        %p971 = pneg %p282
        %p972 = pneg %p279
        %p973 = scmp.lt.s32.totalorder %s37, 1
        %s974 = scalar_select %p973, %s37, 1
        %s975 = scalar_lea.vmem %s10, %s974
        %p976 = pneg %p308
        %p977 = pneg %p305
        %p978 = scmp.lt.s32.totalorder %s37, 1
        %s979 = scalar_select %p978, %s37, 1
        %s980 = scalar_lea.vmem %s11, %s979
        %p981 = pneg %p334
        %p982 = pneg %p331
        %s983 = sand.u32 %s37, 1
        %s984 = scalar_lea.sflag [#allocation3], %s983
        %s985 = sand.u32 %s347, 1
        %s986 = smul.addr %s985, 32
        %s987 = scalar_lea.vmem [#allocation11], %s986
        %p988 = pneg %p360
        %p989 = pneg %p357
        %p990 = scmp.lt.s32.totalorder %s37, 1
        %s991 = scalar_select %p990, %s37, 1
        %s992 = scalar_lea.vmem %s13, %s991
        %p993 = pneg %p386
        %p994 = pneg %p383
        %p995 = scmp.lt.s32.totalorder %s37, 1
        %s996 = scalar_select %p995, %s37, 1
        %s997 = smul.addr %s996, 8
        %s998 = smul.addr %s997, 8
        %s999 = scalar_lea.vmem %s14, %s998
        %p1000 = pneg %p412
        %p1001 = pneg %p409
        %p1002 = scmp.lt.s32.totalorder %s37, 1
        %s1003 = scalar_select %p1002, %s37, 1
        %s1004 = scalar_lea.vmem %s15, %s1003
        %p1005 = pneg %p438
        %p1006 = pneg %p435
        %p1007 = scmp.lt.s32.totalorder %s37, 1
        %s1008 = scalar_select %p1007, %s37, 1
        %s1009 = scalar_lea.vmem %s16, %s1008
        %p1010 = pneg %p464
        %p1011 = pneg %p461
        %p1012 = scmp.lt.s32.totalorder %s37, 1
        %s1013 = scalar_select %p1012, %s37, 1
        %s1014 = scalar_lea.vmem %s17, %s1013
        %p1015 = pneg %p490
        %p1016 = pneg %p487
        %p1017 = pneg %p511
        %p1018 = pneg %p508
        %p1019 = pneg %p532
        %p1020 = pneg %p529
        %p1021 = pneg %p553
        %p1022 = pneg %p550
        %p1023 = pneg %p574
        %p1024 = pneg %p571
        %p1025 = pneg %p595
        %p1026 = pneg %p592
        %p1027 = pneg %p616
        %p1028 = pneg %p613
        %p1029 = scmp.lt.s32.totalorder %s37, 1
        %s1030 = scalar_select %p1029, %s37, 1
        %s1031 = scalar_lea.vmem %s3, %s1030
        %p1032 = scmp.lt.s32.totalorder %s37, 1
        %s1033 = scalar_select %p1032, %s37, 1
        %s1034 = scalar_lea.vmem %s5, %s1033
        %p1035 = scmp.lt.s32.totalorder %s37, 1
        %s1036 = scalar_select %p1035, %s37, 1
        %s1037 = scalar_lea.vmem %s7, %s1036
        %p1038 = scmp.lt.s32.totalorder %s37, 1
        %s1039 = scalar_select %p1038, %s37, 1
        %s1040 = scalar_lea.vmem %s9, %s1039
        %p1041 = scmp.lt.s32.totalorder %s37, 1
        %s1042 = scalar_select %p1041, %s37, 1
        %s1043 = scalar_lea.vmem %s10, %s1042
        %p1044 = scmp.lt.s32.totalorder %s37, 1
        %s1045 = scalar_select %p1044, %s37, 1
        %s1046 = scalar_lea.vmem %s11, %s1045
        %p1047 = scmp.lt.s32.totalorder %s37, 1
        %s1048 = scalar_select %p1047, %s37, 1
        %s1049 = scalar_lea.vmem %s13, %s1048
        %p1050 = scmp.lt.s32.totalorder %s37, 1
        %s1051 = scalar_select %p1050, %s37, 1
        %s1052 = smul.addr %s1051, 8
        %s1053 = smul.addr %s1052, 8
        %s1054 = scalar_lea.vmem %s14, %s1053
        %p1055 = scmp.lt.s32.totalorder %s37, 1
        %s1056 = scalar_select %p1055, %s37, 1
        %s1057 = scalar_lea.vmem %s15, %s1056
        %p1058 = scmp.lt.s32.totalorder %s37, 1
        %s1059 = scalar_select %p1058, %s37, 1
        %s1060 = scalar_lea.vmem %s16, %s1059
        %p1061 = scmp.lt.s32.totalorder %s37, 1
        %s1062 = scalar_select %p1061, %s37, 1
        %s1063 = scalar_lea.vmem %s17, %s1062
        %p1064 = scmp.eq.s32.totalorder %s37, 0
        // Predicated region
        $region145: #{tpu_custom_call.1} parent=111 // pred_check
          %p1065 = pneg %p1064
        $region146: #{tpu_custom_call.1} parent=111 // pred_check_branch
          %1067 = sbr.rel (%p1065) target = $region148
        $region147: #{tpu_custom_call.1} parent=111 // pred_region
          %v1068 = vld [vmem:[#allocation2] sm:$0xff]
          %v1069 = vld [vmem:[#allocation2 + $0x8] sm:$0xff]
          %vm1070 = vcmask 261120
          %1071 = vst.msk [vmem:[#allocation13] sm:$0xff] %vm1070, %v1068
          %1072 = vst.msk [vmem:[#allocation13 + $0x8] sm:$0xff] %vm1070, %v1069
        $region148: #{tpu_custom_call.1} parent=111 // pred_fallthru
          _
        %v1073 = vld [vmem:[#allocation13] sm:$0xff]
        %v1074 = vld [vmem:[#allocation13 + $0x8] sm:$0xff]
        %v1075 = vld [vmem:[#allocation5] sm:$0x3]
        %v1076 = vld [vmem:[%s876] sm:$0xff]
        %v1077 = vld [vmem:[%s876 + $0x8] sm:$0xff]
        %v1078 = vld [vmem:[%s876 + $0x10] sm:$0xff]
        %v1079 = vld [vmem:[%s876 + $0x18] sm:$0xff]
        %v1080 = vld [vmem:[%s1031] sm:$0x1]
        %v1081 = vld [vmem:[%s885] sm:$0xff]
        %v1082 = vld [vmem:[%s885 + $0x8] sm:$0xff]
        %v1083 = vld [vmem:[%s885 + $0x10] sm:$0xff]
        %v1084 = vld [vmem:[%s885 + $0x18] sm:$0xff]
        %v1085 = vld [vmem:[%s1034] sm:$0x1]
        %v1086 = vld [vmem:[%s894] sm:$0xff]
        %v1087 = vld [vmem:[%s894 + $0x8] sm:$0xff]
        %v1088 = vld [vmem:[%s894 + $0x10] sm:$0xff]
        %v1089 = vld [vmem:[%s894 + $0x18] sm:$0xff]
        %v1090 = vld [vmem:[%s1037] sm:$0x1]
        %v1091 = vld [vmem:[%s903] sm:$0xff]
        %v1092 = vld [vmem:[%s903 + $0x8] sm:$0xff]
        %v1093 = vld [vmem:[%s903 + $0x10] sm:$0xff]
        %v1094 = vld [vmem:[%s903 + $0x18] sm:$0xff]
        %v1095 = vld [vmem:[%s1040] sm:$0x1]
        %v1096 = vld [vmem:[%s1043] sm:$0x1]
        %v1097 = vld [vmem:[%s1046] sm:$0x1]
        %v1098 = vld [vmem:[%s912] sm:$0xff]
        %v1099 = vld [vmem:[%s912 + $0x8] sm:$0xff]
        %v1100 = vld [vmem:[%s912 + $0x10] sm:$0xff]
        %v1101 = vld [vmem:[%s912 + $0x18] sm:$0xff]
        %v1102 = vld [vmem:[%s1049] sm:$0x1]
        %v1103 = vld [vmem:[%s1054] sm:$0xff]
        %v1104 = vld [vmem:[%s1054 + $0x8] sm:$0xff]
        %v1105 = vld [vmem:[%s1054 + $0x10] sm:$0xff]
        %v1106 = vld [vmem:[%s1054 + $0x18] sm:$0xff]
        %v1107 = vld [vmem:[%s1054 + $0x20] sm:$0xff]
        %v1108 = vld [vmem:[%s1054 + $0x28] sm:$0xff]
        %v1109 = vld [vmem:[%s1054 + $0x30] sm:$0xff]
        %v1110 = vld [vmem:[%s1054 + $0x38] sm:$0xff]
        %v1111 = vld [vmem:[%s1057] sm:$0x1]
        %v1112 = vld [vmem:[%s1060] sm:$0x1]
        %v1113 = vld [vmem:[%s1063] sm:$0x1]
        %v1115 = vlaneseq
        %v1116 = vshrl.u32 %v1115, 7
        %v1117 = vsub.s32 0, %v1116
        %v1118 = vrot.slane %v1080, %v1117
        %vm1120 = vcmask 261120
        %v1122 = vsel %vm1120, %v1073, 0
        %v1125 = vsel %vm1120, %v1074, 0
        %1127 = vmatprep.subr.mxu0 0.0
        %1128 = vmatpush1.msra.mxu0 %v1076
        %1129 = vmatprep.subr.mxu0 0.0
        %1130 = vmatpush1.msra.mxu0 %v1077
        %1131 = vmatprep.subr.mxu0 0.0
        %1132 = vmatpush1.msra.mxu0 %v1078
        %1133 = vmatprep.subr.mxu0 0.0
        %1134 = vmatpush1.msra.mxu0 %v1079
        %1135 = vmatprep.subr.mxu0 0.0
        %1136 = vmatpush1.msra.mxu0 0.0
        %1137 = vmatprep.subr.mxu0 0.0
        %1138 = vmatpush1.msra.mxu0 0.0
        %1139 = vmatprep.subr.mxu0 0.0
        %1140 = vmatpush1.msra.mxu0 0.0
        %1141 = vmatprep.subr.mxu0 0.0
        %1142 = vmatpush1.msra.mxu0 0.0
        %1143 = vmatprep.subr.mxu0 0.0
        %1144 = vmatpush1.msra.mxu0 0.0
        %1145 = vmatprep.subr.mxu0 0.0
        %1146 = vmatpush1.msra.mxu0 0.0
        %1147 = vmatprep.subr.mxu0 0.0
        %1148 = vmatpush1.msra.mxu0 0.0
        %1149 = vmatprep.subr.mxu0 0.0
        %1150 = vmatpush1.msra.mxu0 0.0
        %1151 = vmatprep.subr.mxu0 0.0
        %1152 = vmatpush1.msra.mxu0 0.0
        %1153 = vmatprep.subr.mxu0 0.0
        %1154 = vmatpush1.msra.mxu0 0.0
        %1155 = vmatprep.subr.mxu0 0.0
        %1156 = vmatpush1.msra.mxu0 0.0
        %1157 = vmatprep.subr.mxu0 0.0
        %1158 = vmatpush1.msra.mxu0 0.0
        %1159 = vmatprep.subr.mxu0 0.0
        %1160 = vmatpush1.msra.mxu0 0.0
        %1161 = vmatprep.subr.mxu0 0.0
        %1162 = vmatpush1.msra.mxu0 0.0
        %1163 = vmatprep.subr.mxu0 0.0
        %1164 = vmatpush1.msra.mxu0 0.0
        %1165 = vmatprep.subr.mxu0 0.0
        %1166 = vmatpush1.msra.mxu0 0.0
        %1167 = vmatprep.subr.mxu0 0.0
        %1168 = vmatpush1.msra.mxu0 0.0
        %1169 = vmatprep.subr.mxu0 0.0
        %1170 = vmatpush1.msra.mxu0 0.0
        %1171 = vmatprep.subr.mxu0 0.0
        %1172 = vmatpush1.msra.mxu0 0.0
        %1173 = vmatprep.subr.mxu0 0.0
        %1174 = vmatpush1.msra.mxu0 0.0
        %1175 = vmatprep.subr.mxu0 0.0
        %1176 = vmatpush1.msra.mxu0 0.0
        %1177 = vmatprep.subr.mxu0 0.0
        %1178 = vmatpush1.msra.mxu0 0.0
        %1179 = vmatprep.subr.mxu0 0.0
        %1180 = vmatpush1.msra.mxu0 0.0
        %1181 = vmatprep.subr.mxu0 0.0
        %1182 = vmatpush1.msra.mxu0 0.0
        %1183 = vmatprep.subr.mxu0 0.0
        %1184 = vmatpush1.msra.mxu0 0.0
        %1185 = vmatprep.subr.mxu0 0.0
        %1186 = vmatpush1.msra.mxu0 0.0
        %1187 = vmatprep.subr.mxu0 0.0
        %1188 = vmatpush1.msra.mxu0 0.0
        %1189 = vmatprep.subr.mxu0 0.0
        %1190 = vmatpush1.msra.mxu0 0.0
        %1191 = vmatprep.mubr.f32.mxu0 0.0
        %1192 = vmatmul.mubr.f32.gmra.mrb[0].mxu0 %v1122
        %v1193 = vpop.f32.mrb[0].mxu0
        %v1194 = vadd.f32 %v1118, %v1193
        %v1195 = vpop.f32.mrb[0].mxu0
        %1196 = vmatprep.mubr.f32.mxu0 0.0
        %1197 = vmatmul.mubr.f32.gmra.mrb[0].mxu0 %v1125
        %v1198 = vpop.f32.mrb[0].mxu0
        %v1199 = vadd.f32 %v1118, %v1198
        %v1200 = vpop.f32.mrb[0].mxu0
        %1201 = vdwg.mxu0
        %v1203 = vlaneseq
        %v1204 = vshrl.u32 %v1203, 7
        %v1205 = vsub.s32 0, %v1204
        %v1206 = vrot.slane %v1085, %v1205
        %1208 = vmatprep.subr.mxu0 0.0
        %1209 = vmatpush1.msra.mxu0 %v1081
        %1210 = vmatprep.subr.mxu0 0.0
        %1211 = vmatpush1.msra.mxu0 %v1082
        %1212 = vmatprep.subr.mxu0 0.0
        %1213 = vmatpush1.msra.mxu0 %v1083
        %1214 = vmatprep.subr.mxu0 0.0
        %1215 = vmatpush1.msra.mxu0 %v1084
        %1216 = vmatprep.subr.mxu0 0.0
        %1217 = vmatpush1.msra.mxu0 0.0
        %1218 = vmatprep.subr.mxu0 0.0
        %1219 = vmatpush1.msra.mxu0 0.0
        %1220 = vmatprep.subr.mxu0 0.0
        %1221 = vmatpush1.msra.mxu0 0.0
        %1222 = vmatprep.subr.mxu0 0.0
        %1223 = vmatpush1.msra.mxu0 0.0
        %1224 = vmatprep.subr.mxu0 0.0
        %1225 = vmatpush1.msra.mxu0 0.0
        %1226 = vmatprep.subr.mxu0 0.0
        %1227 = vmatpush1.msra.mxu0 0.0
        %1228 = vmatprep.subr.mxu0 0.0
        %1229 = vmatpush1.msra.mxu0 0.0
        %1230 = vmatprep.subr.mxu0 0.0
        %1231 = vmatpush1.msra.mxu0 0.0
        %1232 = vmatprep.subr.mxu0 0.0
        %1233 = vmatpush1.msra.mxu0 0.0
        %1234 = vmatprep.subr.mxu0 0.0
        %1235 = vmatpush1.msra.mxu0 0.0
        %1236 = vmatprep.subr.mxu0 0.0
        %1237 = vmatpush1.msra.mxu0 0.0
        %1238 = vmatprep.subr.mxu0 0.0
        %1239 = vmatpush1.msra.mxu0 0.0
        %1240 = vmatprep.subr.mxu0 0.0
        %1241 = vmatpush1.msra.mxu0 0.0
        %1242 = vmatprep.subr.mxu0 0.0
        %1243 = vmatpush1.msra.mxu0 0.0
        %1244 = vmatprep.subr.mxu0 0.0
        %1245 = vmatpush1.msra.mxu0 0.0
        %1246 = vmatprep.subr.mxu0 0.0
        %1247 = vmatpush1.msra.mxu0 0.0
        %1248 = vmatprep.subr.mxu0 0.0
        %1249 = vmatpush1.msra.mxu0 0.0
        %1250 = vmatprep.subr.mxu0 0.0
        %1251 = vmatpush1.msra.mxu0 0.0
        %1252 = vmatprep.subr.mxu0 0.0
        %1253 = vmatpush1.msra.mxu0 0.0
        %1254 = vmatprep.subr.mxu0 0.0
        %1255 = vmatpush1.msra.mxu0 0.0
        %1256 = vmatprep.subr.mxu0 0.0
        %1257 = vmatpush1.msra.mxu0 0.0
        %1258 = vmatprep.subr.mxu0 0.0
        %1259 = vmatpush1.msra.mxu0 0.0
        %1260 = vmatprep.subr.mxu0 0.0
        %1261 = vmatpush1.msra.mxu0 0.0
        %1262 = vmatprep.subr.mxu0 0.0
        %1263 = vmatpush1.msra.mxu0 0.0
        %1264 = vmatprep.subr.mxu0 0.0
        %1265 = vmatpush1.msra.mxu0 0.0
        %1266 = vmatprep.subr.mxu0 0.0
        %1267 = vmatpush1.msra.mxu0 0.0
        %1268 = vmatprep.subr.mxu0 0.0
        %1269 = vmatpush1.msra.mxu0 0.0
        %1270 = vmatprep.subr.mxu0 0.0
        %1271 = vmatpush1.msra.mxu0 0.0
        %1272 = vmatprep.mubr.f32.mxu0 0.0
        %1273 = vmatmul.mubr.f32.gmra.mrb[0].mxu0 %v1122
        %v1274 = vpop.f32.mrb[0].mxu0
        %v1275 = vadd.f32 %v1206, %v1274
        %v1276 = vpop.f32.mrb[0].mxu0
        %1277 = vmatprep.mubr.f32.mxu0 0.0
        %1278 = vmatmul.mubr.f32.gmra.mrb[0].mxu0 %v1125
        %v1279 = vpop.f32.mrb[0].mxu0
        %v1280 = vadd.f32 %v1206, %v1279
        %v1281 = vpop.f32.mrb[0].mxu0
        %1282 = vdwg.mxu0
        %v1284 = vlaneseq
        %v1285 = vshrl.u32 %v1284, 7
        %v1286 = vsub.s32 0, %v1285
        %v1287 = vrot.slane %v1090, %v1286
        %1289 = vmatprep.subr.mxu0 0.0
        %1290 = vmatpush1.msra.mxu0 %v1086
        %1291 = vmatprep.subr.mxu0 0.0
        %1292 = vmatpush1.msra.mxu0 %v1087
        %1293 = vmatprep.subr.mxu0 0.0
        %1294 = vmatpush1.msra.mxu0 %v1088
        %1295 = vmatprep.subr.mxu0 0.0
        %1296 = vmatpush1.msra.mxu0 %v1089
        %1297 = vmatprep.subr.mxu0 0.0
        %1298 = vmatpush1.msra.mxu0 0.0
        %1299 = vmatprep.subr.mxu0 0.0
        %1300 = vmatpush1.msra.mxu0 0.0
        %1301 = vmatprep.subr.mxu0 0.0
        %1302 = vmatpush1.msra.mxu0 0.0
        %1303 = vmatprep.subr.mxu0 0.0
        %1304 = vmatpush1.msra.mxu0 0.0
        %1305 = vmatprep.subr.mxu0 0.0
        %1306 = vmatpush1.msra.mxu0 0.0
        %1307 = vmatprep.subr.mxu0 0.0
        %1308 = vmatpush1.msra.mxu0 0.0
        %1309 = vmatprep.subr.mxu0 0.0
        %1310 = vmatpush1.msra.mxu0 0.0
        %1311 = vmatprep.subr.mxu0 0.0
        %1312 = vmatpush1.msra.mxu0 0.0
        %1313 = vmatprep.subr.mxu0 0.0
        %1314 = vmatpush1.msra.mxu0 0.0
        %1315 = vmatprep.subr.mxu0 0.0
        %1316 = vmatpush1.msra.mxu0 0.0
        %1317 = vmatprep.subr.mxu0 0.0
        %1318 = vmatpush1.msra.mxu0 0.0
        %1319 = vmatprep.subr.mxu0 0.0
        %1320 = vmatpush1.msra.mxu0 0.0
        %1321 = vmatprep.subr.mxu0 0.0
        %1322 = vmatpush1.msra.mxu0 0.0
        %1323 = vmatprep.subr.mxu0 0.0
        %1324 = vmatpush1.msra.mxu0 0.0
        %1325 = vmatprep.subr.mxu0 0.0
        %1326 = vmatpush1.msra.mxu0 0.0
        %1327 = vmatprep.subr.mxu0 0.0
        %1328 = vmatpush1.msra.mxu0 0.0
        %1329 = vmatprep.subr.mxu0 0.0
        %1330 = vmatpush1.msra.mxu0 0.0
        %1331 = vmatprep.subr.mxu0 0.0
        %1332 = vmatpush1.msra.mxu0 0.0
        %1333 = vmatprep.subr.mxu0 0.0
        %1334 = vmatpush1.msra.mxu0 0.0
        %1335 = vmatprep.subr.mxu0 0.0
        %1336 = vmatpush1.msra.mxu0 0.0
        %1337 = vmatprep.subr.mxu0 0.0
        %1338 = vmatpush1.msra.mxu0 0.0
        %1339 = vmatprep.subr.mxu0 0.0
        %1340 = vmatpush1.msra.mxu0 0.0
        %1341 = vmatprep.subr.mxu0 0.0
        %1342 = vmatpush1.msra.mxu0 0.0
        %1343 = vmatprep.subr.mxu0 0.0
        %1344 = vmatpush1.msra.mxu0 0.0
        %1345 = vmatprep.subr.mxu0 0.0
        %1346 = vmatpush1.msra.mxu0 0.0
        %1347 = vmatprep.subr.mxu0 0.0
        %1348 = vmatpush1.msra.mxu0 0.0
        %1349 = vmatprep.subr.mxu0 0.0
        %1350 = vmatpush1.msra.mxu0 0.0
        %1351 = vmatprep.subr.mxu0 0.0
        %1352 = vmatpush1.msra.mxu0 0.0
        %1353 = vmatprep.mubr.f32.mxu0 0.0
        %1354 = vmatmul.mubr.f32.gmra.mrb[0].mxu0 %v1122
        %v1355 = vpop.f32.mrb[0].mxu0
        %v1356 = vadd.f32 %v1287, %v1355
        %v1357 = vpop.f32.mrb[0].mxu0
        %1358 = vmatprep.mubr.f32.mxu0 0.0
        %1359 = vmatmul.mubr.f32.gmra.mrb[0].mxu0 %v1125
        %v1360 = vpop.f32.mrb[0].mxu0
        %v1361 = vadd.f32 %v1287, %v1360
        %v1362 = vpop.f32.mrb[0].mxu0
        %1363 = vdwg.mxu0
        %vm1364 = vcmask 64512
        %v1366 = vsel %vm1364, %v1194, 0
        %v1369 = vsel %vm1364, %v1275, 0
        %1371 = vmatprep.subr.mxu0 0.0
        %1372 = vmatpush1.xpose.msra.mxu0 %v1369
        %1373 = vmatprep.subr.mxu0 0.0
        %1374 = vmatpush1.xpose.msra.mxu0 0.0
        %1375 = vmatprep.subr.mxu0 0.0
        %1376 = vmatpush1.xpose.msra.mxu0 0.0
        %1377 = vmatprep.subr.mxu0 0.0
        %1378 = vmatpush1.xpose.msra.mxu0 0.0
        %1379 = vmatprep.subr.mxu0 0.0
        %1380 = vmatpush1.xpose.msra.mxu0 0.0
        %1381 = vmatprep.subr.mxu0 0.0
        %1382 = vmatpush1.xpose.msra.mxu0 0.0
        %1383 = vmatprep.subr.mxu0 0.0
        %1384 = vmatpush1.xpose.msra.mxu0 0.0
        %1385 = vmatprep.subr.mxu0 0.0
        %1386 = vmatpush1.xpose.msra.mxu0 0.0
        %1387 = vmatprep.subr.mxu0 0.0
        %1388 = vmatpush1.xpose.msra.mxu0 0.0
        %1389 = vmatprep.subr.mxu0 0.0
        %1390 = vmatpush1.xpose.msra.mxu0 0.0
        %1391 = vmatprep.subr.mxu0 0.0
        %1392 = vmatpush1.xpose.msra.mxu0 0.0
        %1393 = vmatprep.subr.mxu0 0.0
        %1394 = vmatpush1.xpose.msra.mxu0 0.0
        %1395 = vmatprep.subr.mxu0 0.0
        %1396 = vmatpush1.xpose.msra.mxu0 0.0
        %1397 = vmatprep.subr.mxu0 0.0
        %1398 = vmatpush1.xpose.msra.mxu0 0.0
        %1399 = vmatprep.subr.mxu0 0.0
        %1400 = vmatpush1.xpose.msra.mxu0 0.0
        %1401 = vmatprep.subr.mxu0 0.0
        %1402 = vmatpush1.xpose.msra.mxu0 0.0
        %1403 = vmatprep.subr.mxu0 0.0
        %1404 = vmatpush1.xpose.msra.mxu0 0.0
        %1405 = vmatprep.subr.mxu0 0.0
        %1406 = vmatpush1.xpose.msra.mxu0 0.0
        %1407 = vmatprep.subr.mxu0 0.0
        %1408 = vmatpush1.xpose.msra.mxu0 0.0
        %1409 = vmatprep.subr.mxu0 0.0
        %1410 = vmatpush1.xpose.msra.mxu0 0.0
        %1411 = vmatprep.subr.mxu0 0.0
        %1412 = vmatpush1.xpose.msra.mxu0 0.0
        %1413 = vmatprep.subr.mxu0 0.0
        %1414 = vmatpush1.xpose.msra.mxu0 0.0
        %1415 = vmatprep.subr.mxu0 0.0
        %1416 = vmatpush1.xpose.msra.mxu0 0.0
        %1417 = vmatprep.subr.mxu0 0.0
        %1418 = vmatpush1.xpose.msra.mxu0 0.0
        %1419 = vmatprep.subr.mxu0 0.0
        %1420 = vmatpush1.xpose.msra.mxu0 0.0
        %1421 = vmatprep.subr.mxu0 0.0
        %1422 = vmatpush1.xpose.msra.mxu0 0.0
        %1423 = vmatprep.subr.mxu0 0.0
        %1424 = vmatpush1.xpose.msra.mxu0 0.0
        %1425 = vmatprep.subr.mxu0 0.0
        %1426 = vmatpush1.xpose.msra.mxu0 0.0
        %1427 = vmatprep.subr.mxu0 0.0
        %1428 = vmatpush1.xpose.msra.mxu0 0.0
        %1429 = vmatprep.subr.mxu0 0.0
        %1430 = vmatpush1.xpose.msra.mxu0 0.0
        %1431 = vmatprep.subr.mxu0 0.0
        %1432 = vmatpush1.xpose.msra.mxu0 0.0
        %1433 = vmatprep.subr.mxu0 0.0
        %1434 = vmatpush1.xpose.msra.mxu0 0.0
        %1435 = vmatprep.mubr.f32.mxu0 0.0
        %1436 = vmatmul.mubr.f32.gmra.mrb[0].mxu0 %v1366
        %v1437 = vpop.f32.mrb[0].mxu0
        %v1438 = vadd.f32 0.0, %v1437
        %v1439 = vpop.f32.mrb[0].mxu0
        %1440 = vdwg.mxu0
        %v1442 = vsel %vm1364, %v1199, 0
        %v1445 = vsel %vm1364, %v1280, 0
        %1447 = vmatprep.subr.mxu0 0.0
        %1448 = vmatpush1.xpose.msra.mxu0 %v1445
        %1449 = vmatprep.subr.mxu0 0.0
        %1450 = vmatpush1.xpose.msra.mxu0 0.0
        %1451 = vmatprep.subr.mxu0 0.0
        %1452 = vmatpush1.xpose.msra.mxu0 0.0
        %1453 = vmatprep.subr.mxu0 0.0
        %1454 = vmatpush1.xpose.msra.mxu0 0.0
        %1455 = vmatprep.subr.mxu0 0.0
        %1456 = vmatpush1.xpose.msra.mxu0 0.0
        %1457 = vmatprep.subr.mxu0 0.0
        %1458 = vmatpush1.xpose.msra.mxu0 0.0
        %1459 = vmatprep.subr.mxu0 0.0
        %1460 = vmatpush1.xpose.msra.mxu0 0.0
        %1461 = vmatprep.subr.mxu0 0.0
        %1462 = vmatpush1.xpose.msra.mxu0 0.0
        %1463 = vmatprep.subr.mxu0 0.0
        %1464 = vmatpush1.xpose.msra.mxu0 0.0
        %1465 = vmatprep.subr.mxu0 0.0
        %1466 = vmatpush1.xpose.msra.mxu0 0.0
        %1467 = vmatprep.subr.mxu0 0.0
        %1468 = vmatpush1.xpose.msra.mxu0 0.0
        %1469 = vmatprep.subr.mxu0 0.0
        %1470 = vmatpush1.xpose.msra.mxu0 0.0
        %1471 = vmatprep.subr.mxu0 0.0
        %1472 = vmatpush1.xpose.msra.mxu0 0.0
        %1473 = vmatprep.subr.mxu0 0.0
        %1474 = vmatpush1.xpose.msra.mxu0 0.0
        %1475 = vmatprep.subr.mxu0 0.0
        %1476 = vmatpush1.xpose.msra.mxu0 0.0
        %1477 = vmatprep.subr.mxu0 0.0
        %1478 = vmatpush1.xpose.msra.mxu0 0.0
        %1479 = vmatprep.subr.mxu0 0.0
        %1480 = vmatpush1.xpose.msra.mxu0 0.0
        %1481 = vmatprep.subr.mxu0 0.0
        %1482 = vmatpush1.xpose.msra.mxu0 0.0
        %1483 = vmatprep.subr.mxu0 0.0
        %1484 = vmatpush1.xpose.msra.mxu0 0.0
        %1485 = vmatprep.subr.mxu0 0.0
        %1486 = vmatpush1.xpose.msra.mxu0 0.0
        %1487 = vmatprep.subr.mxu0 0.0
        %1488 = vmatpush1.xpose.msra.mxu0 0.0
        %1489 = vmatprep.subr.mxu0 0.0
        %1490 = vmatpush1.xpose.msra.mxu0 0.0
        %1491 = vmatprep.subr.mxu0 0.0
        %1492 = vmatpush1.xpose.msra.mxu0 0.0
        %1493 = vmatprep.subr.mxu0 0.0
        %1494 = vmatpush1.xpose.msra.mxu0 0.0
        %1495 = vmatprep.subr.mxu0 0.0
        %1496 = vmatpush1.xpose.msra.mxu0 0.0
        %1497 = vmatprep.subr.mxu0 0.0
        %1498 = vmatpush1.xpose.msra.mxu0 0.0
        %1499 = vmatprep.subr.mxu0 0.0
        %1500 = vmatpush1.xpose.msra.mxu0 0.0
        %1501 = vmatprep.subr.mxu0 0.0
        %1502 = vmatpush1.xpose.msra.mxu0 0.0
        %1503 = vmatprep.subr.mxu0 0.0
        %1504 = vmatpush1.xpose.msra.mxu0 0.0
        %1505 = vmatprep.subr.mxu0 0.0
        %1506 = vmatpush1.xpose.msra.mxu0 0.0
        %1507 = vmatprep.subr.mxu0 0.0
        %1508 = vmatpush1.xpose.msra.mxu0 0.0
        %1509 = vmatprep.subr.mxu0 0.0
        %1510 = vmatpush1.xpose.msra.mxu0 0.0
        %1511 = vmatprep.mubr.f32.mxu0 0.0
        %1512 = vmatmul.mubr.f32.gmra.mrb[0].mxu0 %v1442
        %v1513 = vpop.f32.mrb[0].mxu0
        %v1514 = vadd.f32 0.0, %v1513
        %v1515 = vpop.f32.mrb[0].mxu0
        %1516 = vdwg.mxu0
        %v1517 = vrcp.pop 2.828427
        %v1518 = vmul.f32 %v1438, %v1517
        %v1519 = vmul.f32 %v1514, %v1517
        %v1522 = vunpack.c.l.s4 1966171168
        %v1523 = vunpack.c.0.s8 %v1522
        %v1524 = vlaneseq
        %v1525 = vshrl.u32 %v1524, 7
        %v1526 = vsub.s32 %v1523, %v1525
        %v1527 = vrot.slane %v1075, %v1526
        %v1528 = vcombine.high %v1527, %v1527
        %v1530 = vunpack.c.l.s4 1966171168
        %v1531 = vunpack.c.0.s8 %v1530
        %v1532 = vlaneseq
        %v1533 = vshrl.u32 %v1532, 7
        %v1534 = vsub.s32 %v1531, %v1533
        %v1535 = vrot.slane %v1527, %v1534
        %v1537 = vunpack.c.l.s4 1966171168
        %v1538 = vunpack.c.0.s8 %v1537
        %v1539 = vlaneseq
        %v1540 = vshrl.u32 %v1539, 7
        %v1541 = vsub.s32 %v1538, %v1540
        %v1542 = vrot.slane %v1528, %v1541
        %v1543 = vlaneseq
        %v1544 = vshrl.u32 %v1543, 7
        %v1545 = vsub.s32 0, %v1544
        %v1546 = vrot.slane %v1535, %v1545
        %v1547 = vlaneseq
        %v1548 = vshrl.u32 %v1547, 7
        %v1549 = vsub.s32 0, %v1548
        %v1550 = vrot.slane %v1542, %v1549
        %v1553 = vadd.f32 %v1518, %v1546
        %v1554 = vadd.f32 %v1519, %v1550
        %v1555 = vsel %vm1364, %v1553, -inf
        %1556 = vmax.xlane.f32.xlu0 %v1555
        %v1557 = vpop.xlane.xlu0 %1556
        %v1558 = vsel %vm1364, %v1554, -inf
        %1559 = vmax.xlane.f32.xlu0 %v1558
        %v1560 = vpop.xlane.xlu0 %1559
        %v1561 = vsub.f32 %v1553, %v1557
        %v1562 = vsub.f32 %v1554, %v1560
        %v1563 = vmul.f32 %v1561, 1.442695
        %v1564 = vpow.pop %v1563
        %v1565 = vmul.f32 %v1562, 1.442695
        %v1566 = vpow.pop %v1565
        %v1567 = vsel %vm1364, %v1564, 0.0
        %1568 = vadd.xlane.f32.xlu0 %v1567
        %v1569 = vpop.xlane.xlu0 %1568
        %v1570 = vsel %vm1364, %v1566, 0.0
        %1571 = vadd.xlane.f32.xlu0 %v1570
        %v1572 = vpop.xlane.xlu0 %1571
        %v1573 = vrcp.pop %v1569
        %v1574 = vmul.f32 %v1564, %v1573
        %v1575 = vrcp.pop %v1572
        %v1576 = vmul.f32 %v1566, %v1575
        %v1578 = vsel %vm1364, %v1574, 0
        %1580 = vmatprep.subr.mxu0 0.0
        %1581 = vmatpush1.msra.mxu0 %v1356
        %1582 = vmatprep.subr.mxu0 0.0
        %1583 = vmatpush1.msra.mxu0 0.0
        %1584 = vmatprep.subr.mxu0 0.0
        %1585 = vmatpush1.msra.mxu0 0.0
        %1586 = vmatprep.subr.mxu0 0.0
        %1587 = vmatpush1.msra.mxu0 0.0
        %1588 = vmatprep.subr.mxu0 0.0
        %1589 = vmatpush1.msra.mxu0 0.0
        %1590 = vmatprep.subr.mxu0 0.0
        %1591 = vmatpush1.msra.mxu0 0.0
        %1592 = vmatprep.subr.mxu0 0.0
        %1593 = vmatpush1.msra.mxu0 0.0
        %1594 = vmatprep.subr.mxu0 0.0
        %1595 = vmatpush1.msra.mxu0 0.0
        %1596 = vmatprep.subr.mxu0 0.0
        %1597 = vmatpush1.msra.mxu0 0.0
        %1598 = vmatprep.subr.mxu0 0.0
        %1599 = vmatpush1.msra.mxu0 0.0
        %1600 = vmatprep.subr.mxu0 0.0
        %1601 = vmatpush1.msra.mxu0 0.0
        %1602 = vmatprep.subr.mxu0 0.0
        %1603 = vmatpush1.msra.mxu0 0.0
        %1604 = vmatprep.subr.mxu0 0.0
        %1605 = vmatpush1.msra.mxu0 0.0
        %1606 = vmatprep.subr.mxu0 0.0
        %1607 = vmatpush1.msra.mxu0 0.0
        %1608 = vmatprep.subr.mxu0 0.0
        %1609 = vmatpush1.msra.mxu0 0.0
        %1610 = vmatprep.subr.mxu0 0.0
        %1611 = vmatpush1.msra.mxu0 0.0
        %1612 = vmatprep.subr.mxu0 0.0
        %1613 = vmatpush1.msra.mxu0 0.0
        %1614 = vmatprep.subr.mxu0 0.0
        %1615 = vmatpush1.msra.mxu0 0.0
        %1616 = vmatprep.subr.mxu0 0.0
        %1617 = vmatpush1.msra.mxu0 0.0
        %1618 = vmatprep.subr.mxu0 0.0
        %1619 = vmatpush1.msra.mxu0 0.0
        %1620 = vmatprep.subr.mxu0 0.0
        %1621 = vmatpush1.msra.mxu0 0.0
        %1622 = vmatprep.subr.mxu0 0.0
        %1623 = vmatpush1.msra.mxu0 0.0
        %1624 = vmatprep.subr.mxu0 0.0
        %1625 = vmatpush1.msra.mxu0 0.0
        %1626 = vmatprep.subr.mxu0 0.0
        %1627 = vmatpush1.msra.mxu0 0.0
        %1628 = vmatprep.subr.mxu0 0.0
        %1629 = vmatpush1.msra.mxu0 0.0
        %1630 = vmatprep.subr.mxu0 0.0
        %1631 = vmatpush1.msra.mxu0 0.0
        %1632 = vmatprep.subr.mxu0 0.0
        %1633 = vmatpush1.msra.mxu0 0.0
        %1634 = vmatprep.subr.mxu0 0.0
        %1635 = vmatpush1.msra.mxu0 0.0
        %1636 = vmatprep.subr.mxu0 0.0
        %1637 = vmatpush1.msra.mxu0 0.0
        %1638 = vmatprep.subr.mxu0 0.0
        %1639 = vmatpush1.msra.mxu0 0.0
        %1640 = vmatprep.subr.mxu0 0.0
        %1641 = vmatpush1.msra.mxu0 0.0
        %1642 = vmatprep.subr.mxu0 0.0
        %1643 = vmatpush1.msra.mxu0 0.0
        %1644 = vmatprep.mubr.f32.mxu0 0.0
        %1645 = vmatmul.mubr.f32.gmra.mrb[0].mxu0 %v1578
        %v1646 = vpop.f32.mrb[0].mxu0
        %v1647 = vadd.f32 0.0, %v1646
        %v1648 = vpop.f32.mrb[0].mxu0
        %1649 = vdwg.mxu0
        %v1651 = vsel %vm1364, %v1576, 0
        %1653 = vmatprep.subr.mxu0 0.0
        %1654 = vmatpush1.msra.mxu0 %v1361
        %1655 = vmatprep.subr.mxu0 0.0
        %1656 = vmatpush1.msra.mxu0 0.0
        %1657 = vmatprep.subr.mxu0 0.0
        %1658 = vmatpush1.msra.mxu0 0.0
        %1659 = vmatprep.subr.mxu0 0.0
        %1660 = vmatpush1.msra.mxu0 0.0
        %1661 = vmatprep.subr.mxu0 0.0
        %1662 = vmatpush1.msra.mxu0 0.0
        %1663 = vmatprep.subr.mxu0 0.0
        %1664 = vmatpush1.msra.mxu0 0.0
        %1665 = vmatprep.subr.mxu0 0.0
        %1666 = vmatpush1.msra.mxu0 0.0
        %1667 = vmatprep.subr.mxu0 0.0
        %1668 = vmatpush1.msra.mxu0 0.0
        %1669 = vmatprep.subr.mxu0 0.0
        %1670 = vmatpush1.msra.mxu0 0.0
        %1671 = vmatprep.subr.mxu0 0.0
        %1672 = vmatpush1.msra.mxu0 0.0
        %1673 = vmatprep.subr.mxu0 0.0
        %1674 = vmatpush1.msra.mxu0 0.0
        %1675 = vmatprep.subr.mxu0 0.0
        %1676 = vmatpush1.msra.mxu0 0.0
        %1677 = vmatprep.subr.mxu0 0.0
        %1678 = vmatpush1.msra.mxu0 0.0
        %1679 = vmatprep.subr.mxu0 0.0
        %1680 = vmatpush1.msra.mxu0 0.0
        %1681 = vmatprep.subr.mxu0 0.0
        %1682 = vmatpush1.msra.mxu0 0.0
        %1683 = vmatprep.subr.mxu0 0.0
        %1684 = vmatpush1.msra.mxu0 0.0
        %1685 = vmatprep.subr.mxu0 0.0
        %1686 = vmatpush1.msra.mxu0 0.0
        %1687 = vmatprep.subr.mxu0 0.0
        %1688 = vmatpush1.msra.mxu0 0.0
        %1689 = vmatprep.subr.mxu0 0.0
        %1690 = vmatpush1.msra.mxu0 0.0
        %1691 = vmatprep.subr.mxu0 0.0
        %1692 = vmatpush1.msra.mxu0 0.0
        %1693 = vmatprep.subr.mxu0 0.0
        %1694 = vmatpush1.msra.mxu0 0.0
        %1695 = vmatprep.subr.mxu0 0.0
        %1696 = vmatpush1.msra.mxu0 0.0
        %1697 = vmatprep.subr.mxu0 0.0
        %1698 = vmatpush1.msra.mxu0 0.0
        %1699 = vmatprep.subr.mxu0 0.0
        %1700 = vmatpush1.msra.mxu0 0.0
        %1701 = vmatprep.subr.mxu0 0.0
        %1702 = vmatpush1.msra.mxu0 0.0
        %1703 = vmatprep.subr.mxu0 0.0
        %1704 = vmatpush1.msra.mxu0 0.0
        %1705 = vmatprep.subr.mxu0 0.0
        %1706 = vmatpush1.msra.mxu0 0.0
        %1707 = vmatprep.subr.mxu0 0.0
        %1708 = vmatpush1.msra.mxu0 0.0
        %1709 = vmatprep.subr.mxu0 0.0
        %1710 = vmatpush1.msra.mxu0 0.0
        %1711 = vmatprep.subr.mxu0 0.0
        %1712 = vmatpush1.msra.mxu0 0.0
        %1713 = vmatprep.subr.mxu0 0.0
        %1714 = vmatpush1.msra.mxu0 0.0
        %1715 = vmatprep.subr.mxu0 0.0
        %1716 = vmatpush1.msra.mxu0 0.0
        %1717 = vmatprep.mubr.f32.mxu0 0.0
        %1718 = vmatmul.mubr.f32.gmra.mrb[0].mxu0 %v1651
        %v1719 = vpop.f32.mrb[0].mxu0
        %v1720 = vadd.f32 0.0, %v1719
        %v1721 = vpop.f32.mrb[0].mxu0
        %1722 = vdwg.mxu0
        %1723 = vrot.lane.b32.xlu0 %v1194, 120
        %v1724 = vpop.permute.xlu0 %1723
        %1725 = vrot.lane.b32.xlu0 %v1275, 120
        %v1726 = vpop.permute.xlu0 %1725
        %v1727 = vsel %vm1364, %v1724, 0
        %v1729 = vsel %vm1364, %v1726, 0
        %1731 = vmatprep.subr.mxu0 0.0
        %1732 = vmatpush1.xpose.msra.mxu0 %v1729
        %1733 = vmatprep.subr.mxu0 0.0
        %1734 = vmatpush1.xpose.msra.mxu0 0.0
        %1735 = vmatprep.subr.mxu0 0.0
        %1736 = vmatpush1.xpose.msra.mxu0 0.0
        %1737 = vmatprep.subr.mxu0 0.0
        %1738 = vmatpush1.xpose.msra.mxu0 0.0
        %1739 = vmatprep.subr.mxu0 0.0
        %1740 = vmatpush1.xpose.msra.mxu0 0.0
        %1741 = vmatprep.subr.mxu0 0.0
        %1742 = vmatpush1.xpose.msra.mxu0 0.0
        %1743 = vmatprep.subr.mxu0 0.0
        %1744 = vmatpush1.xpose.msra.mxu0 0.0
        %1745 = vmatprep.subr.mxu0 0.0
        %1746 = vmatpush1.xpose.msra.mxu0 0.0
        %1747 = vmatprep.subr.mxu0 0.0
        %1748 = vmatpush1.xpose.msra.mxu0 0.0
        %1749 = vmatprep.subr.mxu0 0.0
        %1750 = vmatpush1.xpose.msra.mxu0 0.0
        %1751 = vmatprep.subr.mxu0 0.0
        %1752 = vmatpush1.xpose.msra.mxu0 0.0
        %1753 = vmatprep.subr.mxu0 0.0
        %1754 = vmatpush1.xpose.msra.mxu0 0.0
        %1755 = vmatprep.subr.mxu0 0.0
        %1756 = vmatpush1.xpose.msra.mxu0 0.0
        %1757 = vmatprep.subr.mxu0 0.0
        %1758 = vmatpush1.xpose.msra.mxu0 0.0
        %1759 = vmatprep.subr.mxu0 0.0
        %1760 = vmatpush1.xpose.msra.mxu0 0.0
        %1761 = vmatprep.subr.mxu0 0.0
        %1762 = vmatpush1.xpose.msra.mxu0 0.0
        %1763 = vmatprep.subr.mxu0 0.0
        %1764 = vmatpush1.xpose.msra.mxu0 0.0
        %1765 = vmatprep.subr.mxu0 0.0
        %1766 = vmatpush1.xpose.msra.mxu0 0.0
        %1767 = vmatprep.subr.mxu0 0.0
        %1768 = vmatpush1.xpose.msra.mxu0 0.0
        %1769 = vmatprep.subr.mxu0 0.0
        %1770 = vmatpush1.xpose.msra.mxu0 0.0
        %1771 = vmatprep.subr.mxu0 0.0
        %1772 = vmatpush1.xpose.msra.mxu0 0.0
        %1773 = vmatprep.subr.mxu0 0.0
        %1774 = vmatpush1.xpose.msra.mxu0 0.0
        %1775 = vmatprep.subr.mxu0 0.0
        %1776 = vmatpush1.xpose.msra.mxu0 0.0
        %1777 = vmatprep.subr.mxu0 0.0
        %1778 = vmatpush1.xpose.msra.mxu0 0.0
        %1779 = vmatprep.subr.mxu0 0.0
        %1780 = vmatpush1.xpose.msra.mxu0 0.0
        %1781 = vmatprep.subr.mxu0 0.0
        %1782 = vmatpush1.xpose.msra.mxu0 0.0
        %1783 = vmatprep.subr.mxu0 0.0
        %1784 = vmatpush1.xpose.msra.mxu0 0.0
        %1785 = vmatprep.subr.mxu0 0.0
        %1786 = vmatpush1.xpose.msra.mxu0 0.0
        %1787 = vmatprep.subr.mxu0 0.0
        %1788 = vmatpush1.xpose.msra.mxu0 0.0
        %1789 = vmatprep.subr.mxu0 0.0
        %1790 = vmatpush1.xpose.msra.mxu0 0.0
        %1791 = vmatprep.subr.mxu0 0.0
        %1792 = vmatpush1.xpose.msra.mxu0 0.0
        %1793 = vmatprep.subr.mxu0 0.0
        %1794 = vmatpush1.xpose.msra.mxu0 0.0
        %1795 = vmatprep.mubr.f32.mxu0 0.0
        %1796 = vmatmul.mubr.f32.gmra.mrb[0].mxu0 %v1727
        %v1797 = vpop.f32.mrb[0].mxu0
        %v1798 = vadd.f32 0.0, %v1797
        %v1799 = vpop.f32.mrb[0].mxu0
        %1800 = vdwg.mxu0
        %1801 = vrot.lane.b32.xlu0 %v1199, 120
        %v1802 = vpop.permute.xlu0 %1801
        %1803 = vrot.lane.b32.xlu0 %v1280, 120
        %v1804 = vpop.permute.xlu0 %1803
        %v1805 = vsel %vm1364, %v1802, 0
        %v1807 = vsel %vm1364, %v1804, 0
        %1809 = vmatprep.subr.mxu0 0.0
        %1810 = vmatpush1.xpose.msra.mxu0 %v1807
        %1811 = vmatprep.subr.mxu0 0.0
        %1812 = vmatpush1.xpose.msra.mxu0 0.0
        %1813 = vmatprep.subr.mxu0 0.0
        %1814 = vmatpush1.xpose.msra.mxu0 0.0
        %1815 = vmatprep.subr.mxu0 0.0
        %1816 = vmatpush1.xpose.msra.mxu0 0.0
        %1817 = vmatprep.subr.mxu0 0.0
        %1818 = vmatpush1.xpose.msra.mxu0 0.0
        %1819 = vmatprep.subr.mxu0 0.0
        %1820 = vmatpush1.xpose.msra.mxu0 0.0
        %1821 = vmatprep.subr.mxu0 0.0
        %1822 = vmatpush1.xpose.msra.mxu0 0.0
        %1823 = vmatprep.subr.mxu0 0.0
        %1824 = vmatpush1.xpose.msra.mxu0 0.0
        %1825 = vmatprep.subr.mxu0 0.0
        %1826 = vmatpush1.xpose.msra.mxu0 0.0
        %1827 = vmatprep.subr.mxu0 0.0
        %1828 = vmatpush1.xpose.msra.mxu0 0.0
        %1829 = vmatprep.subr.mxu0 0.0
        %1830 = vmatpush1.xpose.msra.mxu0 0.0
        %1831 = vmatprep.subr.mxu0 0.0
        %1832 = vmatpush1.xpose.msra.mxu0 0.0
        %1833 = vmatprep.subr.mxu0 0.0
        %1834 = vmatpush1.xpose.msra.mxu0 0.0
        %1835 = vmatprep.subr.mxu0 0.0
        %1836 = vmatpush1.xpose.msra.mxu0 0.0
        %1837 = vmatprep.subr.mxu0 0.0
        %1838 = vmatpush1.xpose.msra.mxu0 0.0
        %1839 = vmatprep.subr.mxu0 0.0
        %1840 = vmatpush1.xpose.msra.mxu0 0.0
        %1841 = vmatprep.subr.mxu0 0.0
        %1842 = vmatpush1.xpose.msra.mxu0 0.0
        %1843 = vmatprep.subr.mxu0 0.0
        %1844 = vmatpush1.xpose.msra.mxu0 0.0
        %1845 = vmatprep.subr.mxu0 0.0
        %1846 = vmatpush1.xpose.msra.mxu0 0.0
        %1847 = vmatprep.subr.mxu0 0.0
        %1848 = vmatpush1.xpose.msra.mxu0 0.0
        %1849 = vmatprep.subr.mxu0 0.0
        %1850 = vmatpush1.xpose.msra.mxu0 0.0
        %1851 = vmatprep.subr.mxu0 0.0
        %1852 = vmatpush1.xpose.msra.mxu0 0.0
        %1853 = vmatprep.subr.mxu0 0.0
        %1854 = vmatpush1.xpose.msra.mxu0 0.0
        %1855 = vmatprep.subr.mxu0 0.0
        %1856 = vmatpush1.xpose.msra.mxu0 0.0
        %1857 = vmatprep.subr.mxu0 0.0
        %1858 = vmatpush1.xpose.msra.mxu0 0.0
        %1859 = vmatprep.subr.mxu0 0.0
        %1860 = vmatpush1.xpose.msra.mxu0 0.0
        %1861 = vmatprep.subr.mxu0 0.0
        %1862 = vmatpush1.xpose.msra.mxu0 0.0
        %1863 = vmatprep.subr.mxu0 0.0
        %1864 = vmatpush1.xpose.msra.mxu0 0.0
        %1865 = vmatprep.subr.mxu0 0.0
        %1866 = vmatpush1.xpose.msra.mxu0 0.0
        %1867 = vmatprep.subr.mxu0 0.0
        %1868 = vmatpush1.xpose.msra.mxu0 0.0
        %1869 = vmatprep.subr.mxu0 0.0
        %1870 = vmatpush1.xpose.msra.mxu0 0.0
        %1871 = vmatprep.subr.mxu0 0.0
        %1872 = vmatpush1.xpose.msra.mxu0 0.0
        %1873 = vmatprep.mubr.f32.mxu0 0.0
        %1874 = vmatmul.mubr.f32.gmra.mrb[0].mxu0 %v1805
        %v1875 = vpop.f32.mrb[0].mxu0
        %v1876 = vadd.f32 0.0, %v1875
        %v1877 = vpop.f32.mrb[0].mxu0
        %1878 = vdwg.mxu0
        %v1879 = vmul.f32 %v1798, %v1517
        %v1880 = vmul.f32 %v1876, %v1517
        %v1881 = vadd.f32 %v1879, %v1546
        %v1882 = vadd.f32 %v1880, %v1550
        %v1883 = vsel %vm1364, %v1881, -inf
        %1884 = vmax.xlane.f32.xlu0 %v1883
        %v1885 = vpop.xlane.xlu0 %1884
        %v1886 = vsel %vm1364, %v1882, -inf
        %1887 = vmax.xlane.f32.xlu0 %v1886
        %v1888 = vpop.xlane.xlu0 %1887
        %v1889 = vsub.f32 %v1881, %v1885
        %v1890 = vsub.f32 %v1882, %v1888
        %v1891 = vmul.f32 %v1889, 1.442695
        %v1892 = vpow.pop %v1891
        %v1893 = vmul.f32 %v1890, 1.442695
        %v1894 = vpow.pop %v1893
        %v1895 = vsel %vm1364, %v1892, 0.0
        %1896 = vadd.xlane.f32.xlu0 %v1895
        %v1897 = vpop.xlane.xlu0 %1896
        %v1898 = vsel %vm1364, %v1894, 0.0
        %1899 = vadd.xlane.f32.xlu0 %v1898
        %v1900 = vpop.xlane.xlu0 %1899
        %v1901 = vrcp.pop %v1897
        %v1902 = vmul.f32 %v1892, %v1901
        %v1903 = vrcp.pop %v1900
        %v1904 = vmul.f32 %v1894, %v1903
        %1906 = vrot.lane.b32.xlu0 %v1356, 120
        %v1907 = vpop.permute.xlu0 %1906
        %v1910 = vsel %vm1364, %v1902, 0
        %1912 = vmatprep.subr.mxu0 0.0
        %1913 = vmatpush1.msra.mxu0 %v1907
        %1914 = vmatprep.subr.mxu0 0.0
        %1915 = vmatpush1.msra.mxu0 0.0
        %1916 = vmatprep.subr.mxu0 0.0
        %1917 = vmatpush1.msra.mxu0 0.0
        %1918 = vmatprep.subr.mxu0 0.0
        %1919 = vmatpush1.msra.mxu0 0.0
        %1920 = vmatprep.subr.mxu0 0.0
        %1921 = vmatpush1.msra.mxu0 0.0
        %1922 = vmatprep.subr.mxu0 0.0
        %1923 = vmatpush1.msra.mxu0 0.0
        %1924 = vmatprep.subr.mxu0 0.0
        %1925 = vmatpush1.msra.mxu0 0.0
        %1926 = vmatprep.subr.mxu0 0.0
        %1927 = vmatpush1.msra.mxu0 0.0
        %1928 = vmatprep.subr.mxu0 0.0
        %1929 = vmatpush1.msra.mxu0 0.0
        %1930 = vmatprep.subr.mxu0 0.0
        %1931 = vmatpush1.msra.mxu0 0.0
        %1932 = vmatprep.subr.mxu0 0.0
        %1933 = vmatpush1.msra.mxu0 0.0
        %1934 = vmatprep.subr.mxu0 0.0
        %1935 = vmatpush1.msra.mxu0 0.0
        %1936 = vmatprep.subr.mxu0 0.0
        %1937 = vmatpush1.msra.mxu0 0.0
        %1938 = vmatprep.subr.mxu0 0.0
        %1939 = vmatpush1.msra.mxu0 0.0
        %1940 = vmatprep.subr.mxu0 0.0
        %1941 = vmatpush1.msra.mxu0 0.0
        %1942 = vmatprep.subr.mxu0 0.0
        %1943 = vmatpush1.msra.mxu0 0.0
        %1944 = vmatprep.subr.mxu0 0.0
        %1945 = vmatpush1.msra.mxu0 0.0
        %1946 = vmatprep.subr.mxu0 0.0
        %1947 = vmatpush1.msra.mxu0 0.0
        %1948 = vmatprep.subr.mxu0 0.0
        %1949 = vmatpush1.msra.mxu0 0.0
        %1950 = vmatprep.subr.mxu0 0.0
        %1951 = vmatpush1.msra.mxu0 0.0
        %1952 = vmatprep.subr.mxu0 0.0
        %1953 = vmatpush1.msra.mxu0 0.0
        %1954 = vmatprep.subr.mxu0 0.0
        %1955 = vmatpush1.msra.mxu0 0.0
        %1956 = vmatprep.subr.mxu0 0.0
        %1957 = vmatpush1.msra.mxu0 0.0
        %1958 = vmatprep.subr.mxu0 0.0
        %1959 = vmatpush1.msra.mxu0 0.0
        %1960 = vmatprep.subr.mxu0 0.0
        %1961 = vmatpush1.msra.mxu0 0.0
        %1962 = vmatprep.subr.mxu0 0.0
        %1963 = vmatpush1.msra.mxu0 0.0
        %1964 = vmatprep.subr.mxu0 0.0
        %1965 = vmatpush1.msra.mxu0 0.0
        %1966 = vmatprep.subr.mxu0 0.0
        %1967 = vmatpush1.msra.mxu0 0.0
        %1968 = vmatprep.subr.mxu0 0.0
        %1969 = vmatpush1.msra.mxu0 0.0
        %1970 = vmatprep.subr.mxu0 0.0
        %1971 = vmatpush1.msra.mxu0 0.0
        %1972 = vmatprep.subr.mxu0 0.0
        %1973 = vmatpush1.msra.mxu0 0.0
        %1974 = vmatprep.subr.mxu0 0.0
        %1975 = vmatpush1.msra.mxu0 0.0
        %1976 = vmatprep.mubr.f32.mxu0 0.0
        %1977 = vmatmul.mubr.f32.gmra.mrb[0].mxu0 %v1910
        %v1978 = vpop.f32.mrb[0].mxu0
        %v1979 = vadd.f32 0.0, %v1978
        %v1980 = vpop.f32.mrb[0].mxu0
        %1981 = vdwg.mxu0
        %1983 = vrot.lane.b32.xlu0 %v1361, 120
        %v1984 = vpop.permute.xlu0 %1983
        %v1987 = vsel %vm1364, %v1904, 0
        %1989 = vmatprep.subr.mxu0 0.0
        %1990 = vmatpush1.msra.mxu0 %v1984
        %1991 = vmatprep.subr.mxu0 0.0
        %1992 = vmatpush1.msra.mxu0 0.0
        %1993 = vmatprep.subr.mxu0 0.0
        %1994 = vmatpush1.msra.mxu0 0.0
        %1995 = vmatprep.subr.mxu0 0.0
        %1996 = vmatpush1.msra.mxu0 0.0
        %1997 = vmatprep.subr.mxu0 0.0
        %1998 = vmatpush1.msra.mxu0 0.0
        %1999 = vmatprep.subr.mxu0 0.0
        %2000 = vmatpush1.msra.mxu0 0.0
        %2001 = vmatprep.subr.mxu0 0.0
        %2002 = vmatpush1.msra.mxu0 0.0
        %2003 = vmatprep.subr.mxu0 0.0
        %2004 = vmatpush1.msra.mxu0 0.0
        %2005 = vmatprep.subr.mxu0 0.0
        %2006 = vmatpush1.msra.mxu0 0.0
        %2007 = vmatprep.subr.mxu0 0.0
        %2008 = vmatpush1.msra.mxu0 0.0
        %2009 = vmatprep.subr.mxu0 0.0
        %2010 = vmatpush1.msra.mxu0 0.0
        %2011 = vmatprep.subr.mxu0 0.0
        %2012 = vmatpush1.msra.mxu0 0.0
        %2013 = vmatprep.subr.mxu0 0.0
        %2014 = vmatpush1.msra.mxu0 0.0
        %2015 = vmatprep.subr.mxu0 0.0
        %2016 = vmatpush1.msra.mxu0 0.0
        %2017 = vmatprep.subr.mxu0 0.0
        %2018 = vmatpush1.msra.mxu0 0.0
        %2019 = vmatprep.subr.mxu0 0.0
        %2020 = vmatpush1.msra.mxu0 0.0
        %2021 = vmatprep.subr.mxu0 0.0
        %2022 = vmatpush1.msra.mxu0 0.0
        %2023 = vmatprep.subr.mxu0 0.0
        %2024 = vmatpush1.msra.mxu0 0.0
        %2025 = vmatprep.subr.mxu0 0.0
        %2026 = vmatpush1.msra.mxu0 0.0
        %2027 = vmatprep.subr.mxu0 0.0
        %2028 = vmatpush1.msra.mxu0 0.0
        %2029 = vmatprep.subr.mxu0 0.0
        %2030 = vmatpush1.msra.mxu0 0.0
        %2031 = vmatprep.subr.mxu0 0.0
        %2032 = vmatpush1.msra.mxu0 0.0
        %2033 = vmatprep.subr.mxu0 0.0
        %2034 = vmatpush1.msra.mxu0 0.0
        %2035 = vmatprep.subr.mxu0 0.0
        %2036 = vmatpush1.msra.mxu0 0.0
        %2037 = vmatprep.subr.mxu0 0.0
        %2038 = vmatpush1.msra.mxu0 0.0
        %2039 = vmatprep.subr.mxu0 0.0
        %2040 = vmatpush1.msra.mxu0 0.0
        %2041 = vmatprep.subr.mxu0 0.0
        %2042 = vmatpush1.msra.mxu0 0.0
        %2043 = vmatprep.subr.mxu0 0.0
        %2044 = vmatpush1.msra.mxu0 0.0
        %2045 = vmatprep.subr.mxu0 0.0
        %2046 = vmatpush1.msra.mxu0 0.0
        %2047 = vmatprep.subr.mxu0 0.0
        %2048 = vmatpush1.msra.mxu0 0.0
        %2049 = vmatprep.subr.mxu0 0.0
        %2050 = vmatpush1.msra.mxu0 0.0
        %2051 = vmatprep.subr.mxu0 0.0
        %2052 = vmatpush1.msra.mxu0 0.0
        %2053 = vmatprep.mubr.f32.mxu0 0.0
        %2054 = vmatmul.mubr.f32.gmra.mrb[0].mxu0 %v1987
        %v2055 = vpop.f32.mrb[0].mxu0
        %v2056 = vadd.f32 0.0, %v2055
        %v2057 = vpop.f32.mrb[0].mxu0
        %2058 = vdwg.mxu0
        %2059 = vrot.lane.b32.xlu0 %v1194, 112
        %v2060 = vpop.permute.xlu0 %2059
        %2061 = vrot.lane.b32.xlu0 %v1275, 112
        %v2062 = vpop.permute.xlu0 %2061
        %v2063 = vsel %vm1364, %v2060, 0
        %v2065 = vsel %vm1364, %v2062, 0
        %2067 = vmatprep.subr.mxu0 0.0
        %2068 = vmatpush1.xpose.msra.mxu0 %v2065
        %2069 = vmatprep.subr.mxu0 0.0
        %2070 = vmatpush1.xpose.msra.mxu0 0.0
        %2071 = vmatprep.subr.mxu0 0.0
        %2072 = vmatpush1.xpose.msra.mxu0 0.0
        %2073 = vmatprep.subr.mxu0 0.0
        %2074 = vmatpush1.xpose.msra.mxu0 0.0
        %2075 = vmatprep.subr.mxu0 0.0
        %2076 = vmatpush1.xpose.msra.mxu0 0.0
        %2077 = vmatprep.subr.mxu0 0.0
        %2078 = vmatpush1.xpose.msra.mxu0 0.0
        %2079 = vmatprep.subr.mxu0 0.0
        %2080 = vmatpush1.xpose.msra.mxu0 0.0
        %2081 = vmatprep.subr.mxu0 0.0
        %2082 = vmatpush1.xpose.msra.mxu0 0.0
        %2083 = vmatprep.subr.mxu0 0.0
        %2084 = vmatpush1.xpose.msra.mxu0 0.0
        %2085 = vmatprep.subr.mxu0 0.0
        %2086 = vmatpush1.xpose.msra.mxu0 0.0
        %2087 = vmatprep.subr.mxu0 0.0
        %2088 = vmatpush1.xpose.msra.mxu0 0.0
        %2089 = vmatprep.subr.mxu0 0.0
        %2090 = vmatpush1.xpose.msra.mxu0 0.0
        %2091 = vmatprep.subr.mxu0 0.0
        %2092 = vmatpush1.xpose.msra.mxu0 0.0
        %2093 = vmatprep.subr.mxu0 0.0
        %2094 = vmatpush1.xpose.msra.mxu0 0.0
        %2095 = vmatprep.subr.mxu0 0.0
        %2096 = vmatpush1.xpose.msra.mxu0 0.0
        %2097 = vmatprep.subr.mxu0 0.0
        %2098 = vmatpush1.xpose.msra.mxu0 0.0
        %2099 = vmatprep.subr.mxu0 0.0
        %2100 = vmatpush1.xpose.msra.mxu0 0.0
        %2101 = vmatprep.subr.mxu0 0.0
        %2102 = vmatpush1.xpose.msra.mxu0 0.0
        %2103 = vmatprep.subr.mxu0 0.0
        %2104 = vmatpush1.xpose.msra.mxu0 0.0
        %2105 = vmatprep.subr.mxu0 0.0
        %2106 = vmatpush1.xpose.msra.mxu0 0.0
        %2107 = vmatprep.subr.mxu0 0.0
        %2108 = vmatpush1.xpose.msra.mxu0 0.0
        %2109 = vmatprep.subr.mxu0 0.0
        %2110 = vmatpush1.xpose.msra.mxu0 0.0
        %2111 = vmatprep.subr.mxu0 0.0
        %2112 = vmatpush1.xpose.msra.mxu0 0.0
        %2113 = vmatprep.subr.mxu0 0.0
        %2114 = vmatpush1.xpose.msra.mxu0 0.0
        %2115 = vmatprep.subr.mxu0 0.0
        %2116 = vmatpush1.xpose.msra.mxu0 0.0
        %2117 = vmatprep.subr.mxu0 0.0
        %2118 = vmatpush1.xpose.msra.mxu0 0.0
        %2119 = vmatprep.subr.mxu0 0.0
        %2120 = vmatpush1.xpose.msra.mxu0 0.0
        %2121 = vmatprep.subr.mxu0 0.0
        %2122 = vmatpush1.xpose.msra.mxu0 0.0
        %2123 = vmatprep.subr.mxu0 0.0
        %2124 = vmatpush1.xpose.msra.mxu0 0.0
        %2125 = vmatprep.subr.mxu0 0.0
        %2126 = vmatpush1.xpose.msra.mxu0 0.0
        %2127 = vmatprep.subr.mxu0 0.0
        %2128 = vmatpush1.xpose.msra.mxu0 0.0
        %2129 = vmatprep.subr.mxu0 0.0
        %2130 = vmatpush1.xpose.msra.mxu0 0.0
        %2131 = vmatprep.mubr.f32.mxu0 0.0
        %2132 = vmatmul.mubr.f32.gmra.mrb[0].mxu0 %v2063
        %v2133 = vpop.f32.mrb[0].mxu0
        %v2134 = vadd.f32 0.0, %v2133
        %v2135 = vpop.f32.mrb[0].mxu0
        %2136 = vdwg.mxu0
        %2137 = vrot.lane.b32.xlu0 %v1199, 112
        %v2138 = vpop.permute.xlu0 %2137
        %2139 = vrot.lane.b32.xlu0 %v1280, 112
        %v2140 = vpop.permute.xlu0 %2139
        %v2141 = vsel %vm1364, %v2138, 0
        %v2143 = vsel %vm1364, %v2140, 0
        %2145 = vmatprep.subr.mxu0 0.0
        %2146 = vmatpush1.xpose.msra.mxu0 %v2143
        %2147 = vmatprep.subr.mxu0 0.0
        %2148 = vmatpush1.xpose.msra.mxu0 0.0
        %2149 = vmatprep.subr.mxu0 0.0
        %2150 = vmatpush1.xpose.msra.mxu0 0.0
        %2151 = vmatprep.subr.mxu0 0.0
        %2152 = vmatpush1.xpose.msra.mxu0 0.0
        %2153 = vmatprep.subr.mxu0 0.0
        %2154 = vmatpush1.xpose.msra.mxu0 0.0
        %2155 = vmatprep.subr.mxu0 0.0
        %2156 = vmatpush1.xpose.msra.mxu0 0.0
        %2157 = vmatprep.subr.mxu0 0.0
        %2158 = vmatpush1.xpose.msra.mxu0 0.0
        %2159 = vmatprep.subr.mxu0 0.0
        %2160 = vmatpush1.xpose.msra.mxu0 0.0
        %2161 = vmatprep.subr.mxu0 0.0
        %2162 = vmatpush1.xpose.msra.mxu0 0.0
        %2163 = vmatprep.subr.mxu0 0.0
        %2164 = vmatpush1.xpose.msra.mxu0 0.0
        %2165 = vmatprep.subr.mxu0 0.0
        %2166 = vmatpush1.xpose.msra.mxu0 0.0
        %2167 = vmatprep.subr.mxu0 0.0
        %2168 = vmatpush1.xpose.msra.mxu0 0.0
        %2169 = vmatprep.subr.mxu0 0.0
        %2170 = vmatpush1.xpose.msra.mxu0 0.0
        %2171 = vmatprep.subr.mxu0 0.0
        %2172 = vmatpush1.xpose.msra.mxu0 0.0
        %2173 = vmatprep.subr.mxu0 0.0
        %2174 = vmatpush1.xpose.msra.mxu0 0.0
        %2175 = vmatprep.subr.mxu0 0.0
        %2176 = vmatpush1.xpose.msra.mxu0 0.0
        %2177 = vmatprep.subr.mxu0 0.0
        %2178 = vmatpush1.xpose.msra.mxu0 0.0
        %2179 = vmatprep.subr.mxu0 0.0
        %2180 = vmatpush1.xpose.msra.mxu0 0.0
        %2181 = vmatprep.subr.mxu0 0.0
        %2182 = vmatpush1.xpose.msra.mxu0 0.0
        %2183 = vmatprep.subr.mxu0 0.0
        %2184 = vmatpush1.xpose.msra.mxu0 0.0
        %2185 = vmatprep.subr.mxu0 0.0
        %2186 = vmatpush1.xpose.msra.mxu0 0.0
        %2187 = vmatprep.subr.mxu0 0.0
        %2188 = vmatpush1.xpose.msra.mxu0 0.0
        %2189 = vmatprep.subr.mxu0 0.0
        %2190 = vmatpush1.xpose.msra.mxu0 0.0
        %2191 = vmatprep.subr.mxu0 0.0
        %2192 = vmatpush1.xpose.msra.mxu0 0.0
        %2193 = vmatprep.subr.mxu0 0.0
        %2194 = vmatpush1.xpose.msra.mxu0 0.0
        %2195 = vmatprep.subr.mxu0 0.0
        %2196 = vmatpush1.xpose.msra.mxu0 0.0
        %2197 = vmatprep.subr.mxu0 0.0
        %2198 = vmatpush1.xpose.msra.mxu0 0.0
        %2199 = vmatprep.subr.mxu0 0.0
        %2200 = vmatpush1.xpose.msra.mxu0 0.0
        %2201 = vmatprep.subr.mxu0 0.0
        %2202 = vmatpush1.xpose.msra.mxu0 0.0
        %2203 = vmatprep.subr.mxu0 0.0
        %2204 = vmatpush1.xpose.msra.mxu0 0.0
        %2205 = vmatprep.subr.mxu0 0.0
        %2206 = vmatpush1.xpose.msra.mxu0 0.0
        %2207 = vmatprep.subr.mxu0 0.0
        %2208 = vmatpush1.xpose.msra.mxu0 0.0
        %2209 = vmatprep.mubr.f32.mxu0 0.0
        %2210 = vmatmul.mubr.f32.gmra.mrb[0].mxu0 %v2141
        %v2211 = vpop.f32.mrb[0].mxu0
        %v2212 = vadd.f32 0.0, %v2211
        %v2213 = vpop.f32.mrb[0].mxu0
        %2214 = vdwg.mxu0
        %v2215 = vmul.f32 %v2134, %v1517
        %v2216 = vmul.f32 %v2212, %v1517
        %v2217 = vadd.f32 %v2215, %v1546
        %v2218 = vadd.f32 %v2216, %v1550
        %v2219 = vsel %vm1364, %v2217, -inf
        %2220 = vmax.xlane.f32.xlu0 %v2219
        %v2221 = vpop.xlane.xlu0 %2220
        %v2222 = vsel %vm1364, %v2218, -inf
        %2223 = vmax.xlane.f32.xlu0 %v2222
        %v2224 = vpop.xlane.xlu0 %2223
        %v2225 = vsub.f32 %v2217, %v2221
        %v2226 = vsub.f32 %v2218, %v2224
        %v2227 = vmul.f32 %v2225, 1.442695
        %v2228 = vpow.pop %v2227
        %v2229 = vmul.f32 %v2226, 1.442695
        %v2230 = vpow.pop %v2229
        %v2231 = vsel %vm1364, %v2228, 0.0
        %2232 = vadd.xlane.f32.xlu0 %v2231
        %v2233 = vpop.xlane.xlu0 %2232
        %v2234 = vsel %vm1364, %v2230, 0.0
        %2235 = vadd.xlane.f32.xlu0 %v2234
        %v2236 = vpop.xlane.xlu0 %2235
        %v2237 = vrcp.pop %v2233
        %v2238 = vmul.f32 %v2228, %v2237
        %v2239 = vrcp.pop %v2236
        %v2240 = vmul.f32 %v2230, %v2239
        %2241 = vrot.lane.b32.xlu0 %v1356, 112
        %v2242 = vpop.permute.xlu0 %2241
        %v2245 = vsel %vm1364, %v2238, 0
        %2247 = vmatprep.subr.mxu0 0.0
        %2248 = vmatpush1.msra.mxu0 %v2242
        %2249 = vmatprep.subr.mxu0 0.0
        %2250 = vmatpush1.msra.mxu0 0.0
        %2251 = vmatprep.subr.mxu0 0.0
        %2252 = vmatpush1.msra.mxu0 0.0
        %2253 = vmatprep.subr.mxu0 0.0
        %2254 = vmatpush1.msra.mxu0 0.0
        %2255 = vmatprep.subr.mxu0 0.0
        %2256 = vmatpush1.msra.mxu0 0.0
        %2257 = vmatprep.subr.mxu0 0.0
        %2258 = vmatpush1.msra.mxu0 0.0
        %2259 = vmatprep.subr.mxu0 0.0
        %2260 = vmatpush1.msra.mxu0 0.0
        %2261 = vmatprep.subr.mxu0 0.0
        %2262 = vmatpush1.msra.mxu0 0.0
        %2263 = vmatprep.subr.mxu0 0.0
        %2264 = vmatpush1.msra.mxu0 0.0
        %2265 = vmatprep.subr.mxu0 0.0
        %2266 = vmatpush1.msra.mxu0 0.0
        %2267 = vmatprep.subr.mxu0 0.0
        %2268 = vmatpush1.msra.mxu0 0.0
        %2269 = vmatprep.subr.mxu0 0.0
        %2270 = vmatpush1.msra.mxu0 0.0
        %2271 = vmatprep.subr.mxu0 0.0
        %2272 = vmatpush1.msra.mxu0 0.0
        %2273 = vmatprep.subr.mxu0 0.0
        %2274 = vmatpush1.msra.mxu0 0.0
        %2275 = vmatprep.subr.mxu0 0.0
        %2276 = vmatpush1.msra.mxu0 0.0
        %2277 = vmatprep.subr.mxu0 0.0
        %2278 = vmatpush1.msra.mxu0 0.0
        %2279 = vmatprep.subr.mxu0 0.0
        %2280 = vmatpush1.msra.mxu0 0.0
        %2281 = vmatprep.subr.mxu0 0.0
        %2282 = vmatpush1.msra.mxu0 0.0
        %2283 = vmatprep.subr.mxu0 0.0
        %2284 = vmatpush1.msra.mxu0 0.0
        %2285 = vmatprep.subr.mxu0 0.0
        %2286 = vmatpush1.msra.mxu0 0.0
        %2287 = vmatprep.subr.mxu0 0.0
        %2288 = vmatpush1.msra.mxu0 0.0
        %2289 = vmatprep.subr.mxu0 0.0
        %2290 = vmatpush1.msra.mxu0 0.0
        %2291 = vmatprep.subr.mxu0 0.0
        %2292 = vmatpush1.msra.mxu0 0.0
        %2293 = vmatprep.subr.mxu0 0.0
        %2294 = vmatpush1.msra.mxu0 0.0
        %2295 = vmatprep.subr.mxu0 0.0
        %2296 = vmatpush1.msra.mxu0 0.0
        %2297 = vmatprep.subr.mxu0 0.0
        %2298 = vmatpush1.msra.mxu0 0.0
        %2299 = vmatprep.subr.mxu0 0.0
        %2300 = vmatpush1.msra.mxu0 0.0
        %2301 = vmatprep.subr.mxu0 0.0
        %2302 = vmatpush1.msra.mxu0 0.0
        %2303 = vmatprep.subr.mxu0 0.0
        %2304 = vmatpush1.msra.mxu0 0.0
        %2305 = vmatprep.subr.mxu0 0.0
        %2306 = vmatpush1.msra.mxu0 0.0
        %2307 = vmatprep.subr.mxu0 0.0
        %2308 = vmatpush1.msra.mxu0 0.0
        %2309 = vmatprep.subr.mxu0 0.0
        %2310 = vmatpush1.msra.mxu0 0.0
        %2311 = vmatprep.mubr.f32.mxu0 0.0
        %2312 = vmatmul.mubr.f32.gmra.mrb[0].mxu0 %v2245
        %v2313 = vpop.f32.mrb[0].mxu0
        %v2314 = vadd.f32 0.0, %v2313
        %v2315 = vpop.f32.mrb[0].mxu0
        %2316 = vdwg.mxu0
        %2317 = vrot.lane.b32.xlu0 %v1361, 112
        %v2318 = vpop.permute.xlu0 %2317
        %v2321 = vsel %vm1364, %v2240, 0
        %2323 = vmatprep.subr.mxu0 0.0
        %2324 = vmatpush1.msra.mxu0 %v2318
        %2325 = vmatprep.subr.mxu0 0.0
        %2326 = vmatpush1.msra.mxu0 0.0
        %2327 = vmatprep.subr.mxu0 0.0
        %2328 = vmatpush1.msra.mxu0 0.0
        %2329 = vmatprep.subr.mxu0 0.0
        %2330 = vmatpush1.msra.mxu0 0.0
        %2331 = vmatprep.subr.mxu0 0.0
        %2332 = vmatpush1.msra.mxu0 0.0
        %2333 = vmatprep.subr.mxu0 0.0
        %2334 = vmatpush1.msra.mxu0 0.0
        %2335 = vmatprep.subr.mxu0 0.0
        %2336 = vmatpush1.msra.mxu0 0.0
        %2337 = vmatprep.subr.mxu0 0.0
        %2338 = vmatpush1.msra.mxu0 0.0
        %2339 = vmatprep.subr.mxu0 0.0
        %2340 = vmatpush1.msra.mxu0 0.0
        %2341 = vmatprep.subr.mxu0 0.0
        %2342 = vmatpush1.msra.mxu0 0.0
        %2343 = vmatprep.subr.mxu0 0.0
        %2344 = vmatpush1.msra.mxu0 0.0
        %2345 = vmatprep.subr.mxu0 0.0
        %2346 = vmatpush1.msra.mxu0 0.0
        %2347 = vmatprep.subr.mxu0 0.0
        %2348 = vmatpush1.msra.mxu0 0.0
        %2349 = vmatprep.subr.mxu0 0.0
        %2350 = vmatpush1.msra.mxu0 0.0
        %2351 = vmatprep.subr.mxu0 0.0
        %2352 = vmatpush1.msra.mxu0 0.0
        %2353 = vmatprep.subr.mxu0 0.0
        %2354 = vmatpush1.msra.mxu0 0.0
        %2355 = vmatprep.subr.mxu0 0.0
        %2356 = vmatpush1.msra.mxu0 0.0
        %2357 = vmatprep.subr.mxu0 0.0
        %2358 = vmatpush1.msra.mxu0 0.0
        %2359 = vmatprep.subr.mxu0 0.0
        %2360 = vmatpush1.msra.mxu0 0.0
        %2361 = vmatprep.subr.mxu0 0.0
        %2362 = vmatpush1.msra.mxu0 0.0
        %2363 = vmatprep.subr.mxu0 0.0
        %2364 = vmatpush1.msra.mxu0 0.0
        %2365 = vmatprep.subr.mxu0 0.0
        %2366 = vmatpush1.msra.mxu0 0.0
        %2367 = vmatprep.subr.mxu0 0.0
        %2368 = vmatpush1.msra.mxu0 0.0
        %2369 = vmatprep.subr.mxu0 0.0
        %2370 = vmatpush1.msra.mxu0 0.0
        %2371 = vmatprep.subr.mxu0 0.0
        %2372 = vmatpush1.msra.mxu0 0.0
        %2373 = vmatprep.subr.mxu0 0.0
        %2374 = vmatpush1.msra.mxu0 0.0
        %2375 = vmatprep.subr.mxu0 0.0
        %2376 = vmatpush1.msra.mxu0 0.0
        %2377 = vmatprep.subr.mxu0 0.0
        %2378 = vmatpush1.msra.mxu0 0.0
        %2379 = vmatprep.subr.mxu0 0.0
        %2380 = vmatpush1.msra.mxu0 0.0
        %2381 = vmatprep.subr.mxu0 0.0
        %2382 = vmatpush1.msra.mxu0 0.0
        %2383 = vmatprep.subr.mxu0 0.0
        %2384 = vmatpush1.msra.mxu0 0.0
        %2385 = vmatprep.subr.mxu0 0.0
        %2386 = vmatpush1.msra.mxu0 0.0
        %2387 = vmatprep.mubr.f32.mxu0 0.0
        %2388 = vmatmul.mubr.f32.gmra.mrb[0].mxu0 %v2321
        %v2389 = vpop.f32.mrb[0].mxu0
        %v2390 = vadd.f32 0.0, %v2389
        %v2391 = vpop.f32.mrb[0].mxu0
        %2392 = vdwg.mxu0
        %2393 = vrot.lane.b32.xlu0 %v1194, 104
        %v2394 = vpop.permute.xlu0 %2393
        %2395 = vrot.lane.b32.xlu0 %v1275, 104
        %v2396 = vpop.permute.xlu0 %2395
        %v2397 = vsel %vm1364, %v2394, 0
        %v2399 = vsel %vm1364, %v2396, 0
        %2401 = vmatprep.subr.mxu0 0.0
        %2402 = vmatpush1.xpose.msra.mxu0 %v2399
        %2403 = vmatprep.subr.mxu0 0.0
        %2404 = vmatpush1.xpose.msra.mxu0 0.0
        %2405 = vmatprep.subr.mxu0 0.0
        %2406 = vmatpush1.xpose.msra.mxu0 0.0
        %2407 = vmatprep.subr.mxu0 0.0
        %2408 = vmatpush1.xpose.msra.mxu0 0.0
        %2409 = vmatprep.subr.mxu0 0.0
        %2410 = vmatpush1.xpose.msra.mxu0 0.0
        %2411 = vmatprep.subr.mxu0 0.0
        %2412 = vmatpush1.xpose.msra.mxu0 0.0
        %2413 = vmatprep.subr.mxu0 0.0
        %2414 = vmatpush1.xpose.msra.mxu0 0.0
        %2415 = vmatprep.subr.mxu0 0.0
        %2416 = vmatpush1.xpose.msra.mxu0 0.0
        %2417 = vmatprep.subr.mxu0 0.0
        %2418 = vmatpush1.xpose.msra.mxu0 0.0
        %2419 = vmatprep.subr.mxu0 0.0
        %2420 = vmatpush1.xpose.msra.mxu0 0.0
        %2421 = vmatprep.subr.mxu0 0.0
        %2422 = vmatpush1.xpose.msra.mxu0 0.0
        %2423 = vmatprep.subr.mxu0 0.0
        %2424 = vmatpush1.xpose.msra.mxu0 0.0
        %2425 = vmatprep.subr.mxu0 0.0
        %2426 = vmatpush1.xpose.msra.mxu0 0.0
        %2427 = vmatprep.subr.mxu0 0.0
        %2428 = vmatpush1.xpose.msra.mxu0 0.0
        %2429 = vmatprep.subr.mxu0 0.0
        %2430 = vmatpush1.xpose.msra.mxu0 0.0
        %2431 = vmatprep.subr.mxu0 0.0
        %2432 = vmatpush1.xpose.msra.mxu0 0.0
        %2433 = vmatprep.subr.mxu0 0.0
        %2434 = vmatpush1.xpose.msra.mxu0 0.0
        %2435 = vmatprep.subr.mxu0 0.0
        %2436 = vmatpush1.xpose.msra.mxu0 0.0
        %2437 = vmatprep.subr.mxu0 0.0
        %2438 = vmatpush1.xpose.msra.mxu0 0.0
        %2439 = vmatprep.subr.mxu0 0.0
        %2440 = vmatpush1.xpose.msra.mxu0 0.0
        %2441 = vmatprep.subr.mxu0 0.0
        %2442 = vmatpush1.xpose.msra.mxu0 0.0
        %2443 = vmatprep.subr.mxu0 0.0
        %2444 = vmatpush1.xpose.msra.mxu0 0.0
        %2445 = vmatprep.subr.mxu0 0.0
        %2446 = vmatpush1.xpose.msra.mxu0 0.0
        %2447 = vmatprep.subr.mxu0 0.0
        %2448 = vmatpush1.xpose.msra.mxu0 0.0
        %2449 = vmatprep.subr.mxu0 0.0
        %2450 = vmatpush1.xpose.msra.mxu0 0.0
        %2451 = vmatprep.subr.mxu0 0.0
        %2452 = vmatpush1.xpose.msra.mxu0 0.0
        %2453 = vmatprep.subr.mxu0 0.0
        %2454 = vmatpush1.xpose.msra.mxu0 0.0
        %2455 = vmatprep.subr.mxu0 0.0
        %2456 = vmatpush1.xpose.msra.mxu0 0.0
        %2457 = vmatprep.subr.mxu0 0.0
        %2458 = vmatpush1.xpose.msra.mxu0 0.0
        %2459 = vmatprep.subr.mxu0 0.0
        %2460 = vmatpush1.xpose.msra.mxu0 0.0
        %2461 = vmatprep.subr.mxu0 0.0
        %2462 = vmatpush1.xpose.msra.mxu0 0.0
        %2463 = vmatprep.subr.mxu0 0.0
        %2464 = vmatpush1.xpose.msra.mxu0 0.0
        %2465 = vmatprep.mubr.f32.mxu0 0.0
        %2466 = vmatmul.mubr.f32.gmra.mrb[0].mxu0 %v2397
        %v2467 = vpop.f32.mrb[0].mxu0
        %v2468 = vadd.f32 0.0, %v2467
        %v2469 = vpop.f32.mrb[0].mxu0
        %2470 = vdwg.mxu0
        %2471 = vrot.lane.b32.xlu0 %v1199, 104
        %v2472 = vpop.permute.xlu0 %2471
        %2473 = vrot.lane.b32.xlu0 %v1280, 104
        %v2474 = vpop.permute.xlu0 %2473
        %v2475 = vsel %vm1364, %v2472, 0
        %v2477 = vsel %vm1364, %v2474, 0
        %2479 = vmatprep.subr.mxu0 0.0
        %2480 = vmatpush1.xpose.msra.mxu0 %v2477
        %2481 = vmatprep.subr.mxu0 0.0
        %2482 = vmatpush1.xpose.msra.mxu0 0.0
        %2483 = vmatprep.subr.mxu0 0.0
        %2484 = vmatpush1.xpose.msra.mxu0 0.0
        %2485 = vmatprep.subr.mxu0 0.0
        %2486 = vmatpush1.xpose.msra.mxu0 0.0
        %2487 = vmatprep.subr.mxu0 0.0
        %2488 = vmatpush1.xpose.msra.mxu0 0.0
        %2489 = vmatprep.subr.mxu0 0.0
        %2490 = vmatpush1.xpose.msra.mxu0 0.0
        %2491 = vmatprep.subr.mxu0 0.0
        %2492 = vmatpush1.xpose.msra.mxu0 0.0
        %2493 = vmatprep.subr.mxu0 0.0
        %2494 = vmatpush1.xpose.msra.mxu0 0.0
        %2495 = vmatprep.subr.mxu0 0.0
        %2496 = vmatpush1.xpose.msra.mxu0 0.0
        %2497 = vmatprep.subr.mxu0 0.0
        %2498 = vmatpush1.xpose.msra.mxu0 0.0
        %2499 = vmatprep.subr.mxu0 0.0
        %2500 = vmatpush1.xpose.msra.mxu0 0.0
        %2501 = vmatprep.subr.mxu0 0.0
        %2502 = vmatpush1.xpose.msra.mxu0 0.0
        %2503 = vmatprep.subr.mxu0 0.0
        %2504 = vmatpush1.xpose.msra.mxu0 0.0
        %2505 = vmatprep.subr.mxu0 0.0
        %2506 = vmatpush1.xpose.msra.mxu0 0.0
        %2507 = vmatprep.subr.mxu0 0.0
        %2508 = vmatpush1.xpose.msra.mxu0 0.0
        %2509 = vmatprep.subr.mxu0 0.0
        %2510 = vmatpush1.xpose.msra.mxu0 0.0
        %2511 = vmatprep.subr.mxu0 0.0
        %2512 = vmatpush1.xpose.msra.mxu0 0.0
        %2513 = vmatprep.subr.mxu0 0.0
        %2514 = vmatpush1.xpose.msra.mxu0 0.0
        %2515 = vmatprep.subr.mxu0 0.0
        %2516 = vmatpush1.xpose.msra.mxu0 0.0
        %2517 = vmatprep.subr.mxu0 0.0
        %2518 = vmatpush1.xpose.msra.mxu0 0.0
        %2519 = vmatprep.subr.mxu0 0.0
        %2520 = vmatpush1.xpose.msra.mxu0 0.0
        %2521 = vmatprep.subr.mxu0 0.0
        %2522 = vmatpush1.xpose.msra.mxu0 0.0
        %2523 = vmatprep.subr.mxu0 0.0
        %2524 = vmatpush1.xpose.msra.mxu0 0.0
        %2525 = vmatprep.subr.mxu0 0.0
        %2526 = vmatpush1.xpose.msra.mxu0 0.0
        %2527 = vmatprep.subr.mxu0 0.0
        %2528 = vmatpush1.xpose.msra.mxu0 0.0
        %2529 = vmatprep.subr.mxu0 0.0
        %2530 = vmatpush1.xpose.msra.mxu0 0.0
        %2531 = vmatprep.subr.mxu0 0.0
        %2532 = vmatpush1.xpose.msra.mxu0 0.0
        %2533 = vmatprep.subr.mxu0 0.0
        %2534 = vmatpush1.xpose.msra.mxu0 0.0
        %2535 = vmatprep.subr.mxu0 0.0
        %2536 = vmatpush1.xpose.msra.mxu0 0.0
        %2537 = vmatprep.subr.mxu0 0.0
        %2538 = vmatpush1.xpose.msra.mxu0 0.0
        %2539 = vmatprep.subr.mxu0 0.0
        %2540 = vmatpush1.xpose.msra.mxu0 0.0
        %2541 = vmatprep.subr.mxu0 0.0
        %2542 = vmatpush1.xpose.msra.mxu0 0.0
        %2543 = vmatprep.mubr.f32.mxu0 0.0
        %2544 = vmatmul.mubr.f32.gmra.mrb[0].mxu0 %v2475
        %v2545 = vpop.f32.mrb[0].mxu0
        %v2546 = vadd.f32 0.0, %v2545
        %v2547 = vpop.f32.mrb[0].mxu0
        %2548 = vdwg.mxu0
        %v2549 = vmul.f32 %v2468, %v1517
        %v2550 = vmul.f32 %v2546, %v1517
        %v2551 = vadd.f32 %v2549, %v1546
        %v2552 = vadd.f32 %v2550, %v1550
        %v2553 = vsel %vm1364, %v2551, -inf
        %2554 = vmax.xlane.f32.xlu0 %v2553
        %v2555 = vpop.xlane.xlu0 %2554
        %v2556 = vsel %vm1364, %v2552, -inf
        %2557 = vmax.xlane.f32.xlu0 %v2556
        %v2558 = vpop.xlane.xlu0 %2557
        %v2559 = vsub.f32 %v2551, %v2555
        %v2560 = vsub.f32 %v2552, %v2558
        %v2561 = vmul.f32 %v2559, 1.442695
        %v2562 = vpow.pop %v2561
        %v2563 = vmul.f32 %v2560, 1.442695
        %v2564 = vpow.pop %v2563
        %v2565 = vsel %vm1364, %v2562, 0.0
        %2566 = vadd.xlane.f32.xlu0 %v2565
        %v2567 = vpop.xlane.xlu0 %2566
        %v2568 = vsel %vm1364, %v2564, 0.0
        %2569 = vadd.xlane.f32.xlu0 %v2568
        %v2570 = vpop.xlane.xlu0 %2569
        %v2571 = vrcp.pop %v2567
        %v2572 = vmul.f32 %v2562, %v2571
        %v2573 = vrcp.pop %v2570
        %v2574 = vmul.f32 %v2564, %v2573
        %2575 = vrot.lane.b32.xlu0 %v1356, 104
        %v2576 = vpop.permute.xlu0 %2575
        %v2579 = vsel %vm1364, %v2572, 0
        %2581 = vmatprep.subr.mxu0 0.0
        %2582 = vmatpush1.msra.mxu0 %v2576
        %2583 = vmatprep.subr.mxu0 0.0
        %2584 = vmatpush1.msra.mxu0 0.0
        %2585 = vmatprep.subr.mxu0 0.0
        %2586 = vmatpush1.msra.mxu0 0.0
        %2587 = vmatprep.subr.mxu0 0.0
        %2588 = vmatpush1.msra.mxu0 0.0
        %2589 = vmatprep.subr.mxu0 0.0
        %2590 = vmatpush1.msra.mxu0 0.0
        %2591 = vmatprep.subr.mxu0 0.0
        %2592 = vmatpush1.msra.mxu0 0.0
        %2593 = vmatprep.subr.mxu0 0.0
        %2594 = vmatpush1.msra.mxu0 0.0
        %2595 = vmatprep.subr.mxu0 0.0
        %2596 = vmatpush1.msra.mxu0 0.0
        %2597 = vmatprep.subr.mxu0 0.0
        %2598 = vmatpush1.msra.mxu0 0.0
        %2599 = vmatprep.subr.mxu0 0.0
        %2600 = vmatpush1.msra.mxu0 0.0
        %2601 = vmatprep.subr.mxu0 0.0
        %2602 = vmatpush1.msra.mxu0 0.0
        %2603 = vmatprep.subr.mxu0 0.0
        %2604 = vmatpush1.msra.mxu0 0.0
        %2605 = vmatprep.subr.mxu0 0.0
        %2606 = vmatpush1.msra.mxu0 0.0
        %2607 = vmatprep.subr.mxu0 0.0
        %2608 = vmatpush1.msra.mxu0 0.0
        %2609 = vmatprep.subr.mxu0 0.0
        %2610 = vmatpush1.msra.mxu0 0.0
        %2611 = vmatprep.subr.mxu0 0.0
        %2612 = vmatpush1.msra.mxu0 0.0
        %2613 = vmatprep.subr.mxu0 0.0
        %2614 = vmatpush1.msra.mxu0 0.0
        %2615 = vmatprep.subr.mxu0 0.0
        %2616 = vmatpush1.msra.mxu0 0.0
        %2617 = vmatprep.subr.mxu0 0.0
        %2618 = vmatpush1.msra.mxu0 0.0
        %2619 = vmatprep.subr.mxu0 0.0
        %2620 = vmatpush1.msra.mxu0 0.0
        %2621 = vmatprep.subr.mxu0 0.0
        %2622 = vmatpush1.msra.mxu0 0.0
        %2623 = vmatprep.subr.mxu0 0.0
        %2624 = vmatpush1.msra.mxu0 0.0
        %2625 = vmatprep.subr.mxu0 0.0
        %2626 = vmatpush1.msra.mxu0 0.0
        %2627 = vmatprep.subr.mxu0 0.0
        %2628 = vmatpush1.msra.mxu0 0.0
        %2629 = vmatprep.subr.mxu0 0.0
        %2630 = vmatpush1.msra.mxu0 0.0
        %2631 = vmatprep.subr.mxu0 0.0
        %2632 = vmatpush1.msra.mxu0 0.0
        %2633 = vmatprep.subr.mxu0 0.0
        %2634 = vmatpush1.msra.mxu0 0.0
        %2635 = vmatprep.subr.mxu0 0.0
        %2636 = vmatpush1.msra.mxu0 0.0
        %2637 = vmatprep.subr.mxu0 0.0
        %2638 = vmatpush1.msra.mxu0 0.0
        %2639 = vmatprep.subr.mxu0 0.0
        %2640 = vmatpush1.msra.mxu0 0.0
        %2641 = vmatprep.subr.mxu0 0.0
        %2642 = vmatpush1.msra.mxu0 0.0
        %2643 = vmatprep.subr.mxu0 0.0
        %2644 = vmatpush1.msra.mxu0 0.0
        %2645 = vmatprep.mubr.f32.mxu0 0.0
        %2646 = vmatmul.mubr.f32.gmra.mrb[0].mxu0 %v2579
        %v2647 = vpop.f32.mrb[0].mxu0
        %v2648 = vadd.f32 0.0, %v2647
        %v2649 = vpop.f32.mrb[0].mxu0
        %2650 = vdwg.mxu0
        %2651 = vrot.lane.b32.xlu0 %v1361, 104
        %v2652 = vpop.permute.xlu0 %2651
        %v2655 = vsel %vm1364, %v2574, 0
        %2657 = vmatprep.subr.mxu0 0.0
        %2658 = vmatpush1.msra.mxu0 %v2652
        %2659 = vmatprep.subr.mxu0 0.0
        %2660 = vmatpush1.msra.mxu0 0.0
        %2661 = vmatprep.subr.mxu0 0.0
        %2662 = vmatpush1.msra.mxu0 0.0
        %2663 = vmatprep.subr.mxu0 0.0
        %2664 = vmatpush1.msra.mxu0 0.0
        %2665 = vmatprep.subr.mxu0 0.0
        %2666 = vmatpush1.msra.mxu0 0.0
        %2667 = vmatprep.subr.mxu0 0.0
        %2668 = vmatpush1.msra.mxu0 0.0
        %2669 = vmatprep.subr.mxu0 0.0
        %2670 = vmatpush1.msra.mxu0 0.0
        %2671 = vmatprep.subr.mxu0 0.0
        %2672 = vmatpush1.msra.mxu0 0.0
        %2673 = vmatprep.subr.mxu0 0.0
        %2674 = vmatpush1.msra.mxu0 0.0
        %2675 = vmatprep.subr.mxu0 0.0
        %2676 = vmatpush1.msra.mxu0 0.0
        %2677 = vmatprep.subr.mxu0 0.0
        %2678 = vmatpush1.msra.mxu0 0.0
        %2679 = vmatprep.subr.mxu0 0.0
        %2680 = vmatpush1.msra.mxu0 0.0
        %2681 = vmatprep.subr.mxu0 0.0
        %2682 = vmatpush1.msra.mxu0 0.0
        %2683 = vmatprep.subr.mxu0 0.0
        %2684 = vmatpush1.msra.mxu0 0.0
        %2685 = vmatprep.subr.mxu0 0.0
        %2686 = vmatpush1.msra.mxu0 0.0
        %2687 = vmatprep.subr.mxu0 0.0
        %2688 = vmatpush1.msra.mxu0 0.0
        %2689 = vmatprep.subr.mxu0 0.0
        %2690 = vmatpush1.msra.mxu0 0.0
        %2691 = vmatprep.subr.mxu0 0.0
        %2692 = vmatpush1.msra.mxu0 0.0
        %2693 = vmatprep.subr.mxu0 0.0
        %2694 = vmatpush1.msra.mxu0 0.0
        %2695 = vmatprep.subr.mxu0 0.0
        %2696 = vmatpush1.msra.mxu0 0.0
        %2697 = vmatprep.subr.mxu0 0.0
        %2698 = vmatpush1.msra.mxu0 0.0
        %2699 = vmatprep.subr.mxu0 0.0
        %2700 = vmatpush1.msra.mxu0 0.0
        %2701 = vmatprep.subr.mxu0 0.0
        %2702 = vmatpush1.msra.mxu0 0.0
        %2703 = vmatprep.subr.mxu0 0.0
        %2704 = vmatpush1.msra.mxu0 0.0
        %2705 = vmatprep.subr.mxu0 0.0
        %2706 = vmatpush1.msra.mxu0 0.0
        %2707 = vmatprep.subr.mxu0 0.0
        %2708 = vmatpush1.msra.mxu0 0.0
        %2709 = vmatprep.subr.mxu0 0.0
        %2710 = vmatpush1.msra.mxu0 0.0
        %2711 = vmatprep.subr.mxu0 0.0
        %2712 = vmatpush1.msra.mxu0 0.0
        %2713 = vmatprep.subr.mxu0 0.0
        %2714 = vmatpush1.msra.mxu0 0.0
        %2715 = vmatprep.subr.mxu0 0.0
        %2716 = vmatpush1.msra.mxu0 0.0
        %2717 = vmatprep.subr.mxu0 0.0
        %2718 = vmatpush1.msra.mxu0 0.0
        %2719 = vmatprep.subr.mxu0 0.0
        %2720 = vmatpush1.msra.mxu0 0.0
        %2721 = vmatprep.mubr.f32.mxu0 0.0
        %2722 = vmatmul.mubr.f32.gmra.mrb[0].mxu0 %v2655
        %v2723 = vpop.f32.mrb[0].mxu0
        %v2724 = vadd.f32 0.0, %v2723
        %v2725 = vpop.f32.mrb[0].mxu0
        %2726 = vdwg.mxu0
        %2729 = vrot.lane.b32.xlu0 %v1979, 8
        %v2730 = vpop.permute.xlu0 %2729
        %2731 = vrot.lane.b32.xlu0 %v2056, 8
        %v2732 = vpop.permute.xlu0 %2731
        %2737 = vrot.lane.b32.xlu0 %v2314, 16
        %v2738 = vpop.permute.xlu0 %2737
        %2739 = vrot.lane.b32.xlu0 %v2390, 16
        %v2740 = vpop.permute.xlu0 %2739
        %2745 = vrot.lane.b32.xlu0 %v2648, 24
        %v2746 = vpop.permute.xlu0 %2745
        %2747 = vrot.lane.b32.xlu0 %v2724, 24
        %v2748 = vpop.permute.xlu0 %2747
        %v2751 = vsel %vm1364, %v1647, %v2730
        %v2752 = vsel %vm1364, %v1720, %v2732
        %vm2753 = vcmask 130048
        %v2754 = vsel %vm2753, %v2751, %v2738
        %v2755 = vsel %vm2753, %v2752, %v2740
        %vm2756 = vcmask 195584
        %v2757 = vsel %vm2756, %v2754, %v2746
        %v2758 = vsel %vm2756, %v2755, %v2748
        %v2760 = vlaneseq
        %v2761 = vshrl.u32 %v2760, 7
        %v2762 = vsub.s32 0, %v2761
        %v2763 = vrot.slane %v1095, %v2762
        %v2766 = vsel %vm1120, %v2757, 0
        %v2769 = vsel %vm1120, %v2758, 0
        %2771 = vmatprep.subr.mxu0 0.0
        %2772 = vmatpush1.msra.mxu0 %v1091
        %2773 = vmatprep.subr.mxu0 0.0
        %2774 = vmatpush1.msra.mxu0 %v1092
        %2775 = vmatprep.subr.mxu0 0.0
        %2776 = vmatpush1.msra.mxu0 %v1093
        %2777 = vmatprep.subr.mxu0 0.0
        %2778 = vmatpush1.msra.mxu0 %v1094
        %2779 = vmatprep.subr.mxu0 0.0
        %2780 = vmatpush1.msra.mxu0 0.0
        %2781 = vmatprep.subr.mxu0 0.0
        %2782 = vmatpush1.msra.mxu0 0.0
        %2783 = vmatprep.subr.mxu0 0.0
        %2784 = vmatpush1.msra.mxu0 0.0
        %2785 = vmatprep.subr.mxu0 0.0
        %2786 = vmatpush1.msra.mxu0 0.0
        %2787 = vmatprep.subr.mxu0 0.0
        %2788 = vmatpush1.msra.mxu0 0.0
        %2789 = vmatprep.subr.mxu0 0.0
        %2790 = vmatpush1.msra.mxu0 0.0
        %2791 = vmatprep.subr.mxu0 0.0
        %2792 = vmatpush1.msra.mxu0 0.0
        %2793 = vmatprep.subr.mxu0 0.0
        %2794 = vmatpush1.msra.mxu0 0.0
        %2795 = vmatprep.subr.mxu0 0.0
        %2796 = vmatpush1.msra.mxu0 0.0
        %2797 = vmatprep.subr.mxu0 0.0
        %2798 = vmatpush1.msra.mxu0 0.0
        %2799 = vmatprep.subr.mxu0 0.0
        %2800 = vmatpush1.msra.mxu0 0.0
        %2801 = vmatprep.subr.mxu0 0.0
        %2802 = vmatpush1.msra.mxu0 0.0
        %2803 = vmatprep.subr.mxu0 0.0
        %2804 = vmatpush1.msra.mxu0 0.0
        %2805 = vmatprep.subr.mxu0 0.0
        %2806 = vmatpush1.msra.mxu0 0.0
        %2807 = vmatprep.subr.mxu0 0.0
        %2808 = vmatpush1.msra.mxu0 0.0
        %2809 = vmatprep.subr.mxu0 0.0
        %2810 = vmatpush1.msra.mxu0 0.0
        %2811 = vmatprep.subr.mxu0 0.0
        %2812 = vmatpush1.msra.mxu0 0.0
        %2813 = vmatprep.subr.mxu0 0.0
        %2814 = vmatpush1.msra.mxu0 0.0
        %2815 = vmatprep.subr.mxu0 0.0
        %2816 = vmatpush1.msra.mxu0 0.0
        %2817 = vmatprep.subr.mxu0 0.0
        %2818 = vmatpush1.msra.mxu0 0.0
        %2819 = vmatprep.subr.mxu0 0.0
        %2820 = vmatpush1.msra.mxu0 0.0
        %2821 = vmatprep.subr.mxu0 0.0
        %2822 = vmatpush1.msra.mxu0 0.0
        %2823 = vmatprep.subr.mxu0 0.0
        %2824 = vmatpush1.msra.mxu0 0.0
        %2825 = vmatprep.subr.mxu0 0.0
        %2826 = vmatpush1.msra.mxu0 0.0
        %2827 = vmatprep.subr.mxu0 0.0
        %2828 = vmatpush1.msra.mxu0 0.0
        %2829 = vmatprep.subr.mxu0 0.0
        %2830 = vmatpush1.msra.mxu0 0.0
        %2831 = vmatprep.subr.mxu0 0.0
        %2832 = vmatpush1.msra.mxu0 0.0
        %2833 = vmatprep.subr.mxu0 0.0
        %2834 = vmatpush1.msra.mxu0 0.0
        %2835 = vmatprep.mubr.f32.mxu0 0.0
        %2836 = vmatmul.mubr.f32.gmra.mrb[0].mxu0 %v2766
        %v2837 = vpop.f32.mrb[0].mxu0
        %v2838 = vadd.f32 %v2763, %v2837
        %v2839 = vpop.f32.mrb[0].mxu0
        %2840 = vmatprep.mubr.f32.mxu0 0.0
        %2841 = vmatmul.mubr.f32.gmra.mrb[0].mxu0 %v2769
        %v2842 = vpop.f32.mrb[0].mxu0
        %v2843 = vadd.f32 %v2763, %v2842
        %v2844 = vpop.f32.mrb[0].mxu0
        %2845 = vdwg.mxu0
        %v2846 = vadd.f32 %v2838, %v1073
        %v2847 = vadd.f32 %v2843, %v1074
        %v2848 = vsel %vm1120, %v2846, 0.0
        %2849 = vadd.xlane.f32.xlu0 %v2848
        %v2850 = vpop.xlane.xlu0 %2849
        %v2851 = vsel %vm1120, %v2847, 0.0
        %2852 = vadd.xlane.f32.xlu0 %v2851
        %v2853 = vpop.xlane.xlu0 %2852
        %v2854 = vrcp.pop 32.0
        %v2855 = vmul.f32 %v2850, %v2854
        %v2856 = vmul.f32 %v2853, %v2854
        %v2857 = vsub.f32 %v2846, %v2855
        %v2858 = vsub.f32 %v2847, %v2856
        %v2859 = vmul.f32 %v2857, %v2857
        %v2860 = vmul.f32 %v2858, %v2858
        %v2861 = vsel %vm1120, %v2859, 0.0
        %2862 = vadd.xlane.f32.xlu0 %v2861
        %v2863 = vpop.xlane.xlu0 %2862
        %v2864 = vsel %vm1120, %v2860, 0.0
        %2865 = vadd.xlane.f32.xlu0 %v2864
        %v2866 = vpop.xlane.xlu0 %2865
        %v2867 = vmul.f32 %v2863, %v2854
        %v2868 = vmul.f32 %v2866, %v2854
        %v2869 = vadd.f32 %v2867, 1e-12
        %v2870 = vadd.f32 %v2868, 1e-12
        %v2871 = vrsqrt.pop %v2869
        %v2872 = vrsqrt.pop %v2870
        %v2873 = vmul.f32 %v2857, %v2871
        %v2874 = vmul.f32 %v2858, %v2872
        %v2876 = vlaneseq
        %v2877 = vshrl.u32 %v2876, 7
        %v2878 = vsub.s32 0, %v2877
        %v2879 = vrot.slane %v1096, %v2878
        %v2881 = vmul.f32 %v2873, %v2879
        %v2882 = vmul.f32 %v2874, %v2879
        %v2884 = vlaneseq
        %v2885 = vshrl.u32 %v2884, 7
        %v2886 = vsub.s32 0, %v2885
        %v2887 = vrot.slane %v1097, %v2886
        %v2889 = vadd.f32 %v2881, %v2887
        %v2890 = vadd.f32 %v2882, %v2887
        %v2892 = vlaneseq
        %v2893 = vshrl.u32 %v2892, 7
        %v2894 = vsub.s32 0, %v2893
        %v2895 = vrot.slane %v1102, %v2894
        %v2898 = vsel %vm1120, %v2889, 0
        %v2901 = vsel %vm1120, %v2890, 0
        %2903 = vmatprep.subr.mxu0 0.0
        %2904 = vmatpush1.msra.mxu0 %v1098
        %2905 = vmatprep.subr.mxu0 0.0
        %2906 = vmatpush1.msra.mxu0 %v1099
        %2907 = vmatprep.subr.mxu0 0.0
        %2908 = vmatpush1.msra.mxu0 %v1100
        %2909 = vmatprep.subr.mxu0 0.0
        %2910 = vmatpush1.msra.mxu0 %v1101
        %2911 = vmatprep.subr.mxu0 0.0
        %2912 = vmatpush1.msra.mxu0 0.0
        %2913 = vmatprep.subr.mxu0 0.0
        %2914 = vmatpush1.msra.mxu0 0.0
        %2915 = vmatprep.subr.mxu0 0.0
        %2916 = vmatpush1.msra.mxu0 0.0
        %2917 = vmatprep.subr.mxu0 0.0
        %2918 = vmatpush1.msra.mxu0 0.0
        %2919 = vmatprep.subr.mxu0 0.0
        %2920 = vmatpush1.msra.mxu0 0.0
        %2921 = vmatprep.subr.mxu0 0.0
        %2922 = vmatpush1.msra.mxu0 0.0
        %2923 = vmatprep.subr.mxu0 0.0
        %2924 = vmatpush1.msra.mxu0 0.0
        %2925 = vmatprep.subr.mxu0 0.0
        %2926 = vmatpush1.msra.mxu0 0.0
        %2927 = vmatprep.subr.mxu0 0.0
        %2928 = vmatpush1.msra.mxu0 0.0
        %2929 = vmatprep.subr.mxu0 0.0
        %2930 = vmatpush1.msra.mxu0 0.0
        %2931 = vmatprep.subr.mxu0 0.0
        %2932 = vmatpush1.msra.mxu0 0.0
        %2933 = vmatprep.subr.mxu0 0.0
        %2934 = vmatpush1.msra.mxu0 0.0
        %2935 = vmatprep.subr.mxu0 0.0
        %2936 = vmatpush1.msra.mxu0 0.0
        %2937 = vmatprep.subr.mxu0 0.0
        %2938 = vmatpush1.msra.mxu0 0.0
        %2939 = vmatprep.subr.mxu0 0.0
        %2940 = vmatpush1.msra.mxu0 0.0
        %2941 = vmatprep.subr.mxu0 0.0
        %2942 = vmatpush1.msra.mxu0 0.0
        %2943 = vmatprep.subr.mxu0 0.0
        %2944 = vmatpush1.msra.mxu0 0.0
        %2945 = vmatprep.subr.mxu0 0.0
        %2946 = vmatpush1.msra.mxu0 0.0
        %2947 = vmatprep.subr.mxu0 0.0
        %2948 = vmatpush1.msra.mxu0 0.0
        %2949 = vmatprep.subr.mxu0 0.0
        %2950 = vmatpush1.msra.mxu0 0.0
        %2951 = vmatprep.subr.mxu0 0.0
        %2952 = vmatpush1.msra.mxu0 0.0
        %2953 = vmatprep.subr.mxu0 0.0
        %2954 = vmatpush1.msra.mxu0 0.0
        %2955 = vmatprep.subr.mxu0 0.0
        %2956 = vmatpush1.msra.mxu0 0.0
        %2957 = vmatprep.subr.mxu0 0.0
        %2958 = vmatpush1.msra.mxu0 0.0
        %2959 = vmatprep.subr.mxu0 0.0
        %2960 = vmatpush1.msra.mxu0 0.0
        %2961 = vmatprep.subr.mxu0 0.0
        %2962 = vmatpush1.msra.mxu0 0.0
        %2963 = vmatprep.subr.mxu0 0.0
        %2964 = vmatpush1.msra.mxu0 0.0
        %2965 = vmatprep.subr.mxu0 0.0
        %2966 = vmatpush1.msra.mxu0 0.0
        %2967 = vmatprep.mubr.f32.mxu0 0.0
        %2968 = vmatmul.mubr.f32.gmra.mrb[0].mxu0 %v2898
        %v2969 = vpop.f32.mrb[0].mxu0
        %v2970 = vadd.f32 %v2895, %v2969
        %v2971 = vpop.f32.mrb[0].mxu0
        %2972 = vmatprep.mubr.f32.mxu0 0.0
        %2973 = vmatmul.mubr.f32.gmra.mrb[0].mxu0 %v2901
        %v2974 = vpop.f32.mrb[0].mxu0
        %v2975 = vadd.f32 %v2895, %v2974
        %v2976 = vpop.f32.mrb[0].mxu0
        %2977 = vdwg.mxu0
        %v2978 = vmul.f32 %v2970, 0.5
        %v2979 = vmul.f32 %v2975, 0.5
        %v2980 = vmul.f32 %v2970, 0.044715
        %v2981 = vmul.f32 %v2975, 0.044715
        %v2982 = vmul.f32 %v2980, %v2970
        %v2983 = vmul.f32 %v2981, %v2975
        %v2984 = vmul.f32 %v2982, %v2970
        %v2985 = vmul.f32 %v2983, %v2975
        %v2986 = vadd.f32 %v2970, %v2984
        %v2987 = vadd.f32 %v2975, %v2985
        %v2988 = vmul.f32 %v2986, 0.7978846
        %v2989 = vmul.f32 %v2987, 0.7978846
        %v2990 = vtanh.pop %v2988
        %v2991 = vtanh.pop %v2989
        %v2992 = vadd.f32 %v2990, 1.0
        %v2993 = vadd.f32 %v2991, 1.0
        %v2994 = vmul.f32 %v2978, %v2992
        %v2995 = vmul.f32 %v2979, %v2993
        %v2997 = vlaneseq
        %v2998 = vshrl.u32 %v2997, 7
        %v2999 = vsub.s32 0, %v2998
        %v3000 = vrot.slane %v1111, %v2999
        %vm3002 = vcmask 523264
        %v3004 = vsel %vm3002, %v2994, 0
        %v3007 = vsel %vm3002, %v2995, 0
        %3009 = vmatprep.subr.mxu0 0.0
        %3010 = vmatpush1.msra.mxu0 %v1103
        %3011 = vmatprep.subr.mxu0 0.0
        %3012 = vmatpush1.msra.mxu0 %v1104
        %3013 = vmatprep.subr.mxu0 0.0
        %3014 = vmatpush1.msra.mxu0 %v1105
        %3015 = vmatprep.subr.mxu0 0.0
        %3016 = vmatpush1.msra.mxu0 %v1106
        %3017 = vmatprep.subr.mxu0 0.0
        %3018 = vmatpush1.msra.mxu0 %v1107
        %3019 = vmatprep.subr.mxu0 0.0
        %3020 = vmatpush1.msra.mxu0 %v1108
        %3021 = vmatprep.subr.mxu0 0.0
        %3022 = vmatpush1.msra.mxu0 %v1109
        %3023 = vmatprep.subr.mxu0 0.0
        %3024 = vmatpush1.msra.mxu0 %v1110
        %3025 = vmatprep.subr.mxu0 0.0
        %3026 = vmatpush1.msra.mxu0 0.0
        %3027 = vmatprep.subr.mxu0 0.0
        %3028 = vmatpush1.msra.mxu0 0.0
        %3029 = vmatprep.subr.mxu0 0.0
        %3030 = vmatpush1.msra.mxu0 0.0
        %3031 = vmatprep.subr.mxu0 0.0
        %3032 = vmatpush1.msra.mxu0 0.0
        %3033 = vmatprep.subr.mxu0 0.0
        %3034 = vmatpush1.msra.mxu0 0.0
        %3035 = vmatprep.subr.mxu0 0.0
        %3036 = vmatpush1.msra.mxu0 0.0
        %3037 = vmatprep.subr.mxu0 0.0
        %3038 = vmatpush1.msra.mxu0 0.0
        %3039 = vmatprep.subr.mxu0 0.0
        %3040 = vmatpush1.msra.mxu0 0.0
        %3041 = vmatprep.subr.mxu0 0.0
        %3042 = vmatpush1.msra.mxu0 0.0
        %3043 = vmatprep.subr.mxu0 0.0
        %3044 = vmatpush1.msra.mxu0 0.0
        %3045 = vmatprep.subr.mxu0 0.0
        %3046 = vmatpush1.msra.mxu0 0.0
        %3047 = vmatprep.subr.mxu0 0.0
        %3048 = vmatpush1.msra.mxu0 0.0
        %3049 = vmatprep.subr.mxu0 0.0
        %3050 = vmatpush1.msra.mxu0 0.0
        %3051 = vmatprep.subr.mxu0 0.0
        %3052 = vmatpush1.msra.mxu0 0.0
        %3053 = vmatprep.subr.mxu0 0.0
        %3054 = vmatpush1.msra.mxu0 0.0
        %3055 = vmatprep.subr.mxu0 0.0
        %3056 = vmatpush1.msra.mxu0 0.0
        %3057 = vmatprep.subr.mxu0 0.0
        %3058 = vmatpush1.msra.mxu0 0.0
        %3059 = vmatprep.subr.mxu0 0.0
        %3060 = vmatpush1.msra.mxu0 0.0
        %3061 = vmatprep.subr.mxu0 0.0
        %3062 = vmatpush1.msra.mxu0 0.0
        %3063 = vmatprep.subr.mxu0 0.0
        %3064 = vmatpush1.msra.mxu0 0.0
        %3065 = vmatprep.subr.mxu0 0.0
        %3066 = vmatpush1.msra.mxu0 0.0
        %3067 = vmatprep.subr.mxu0 0.0
        %3068 = vmatpush1.msra.mxu0 0.0
        %3069 = vmatprep.subr.mxu0 0.0
        %3070 = vmatpush1.msra.mxu0 0.0
        %3071 = vmatprep.subr.mxu0 0.0
        %3072 = vmatpush1.msra.mxu0 0.0
        %3073 = vmatprep.mubr.f32.mxu0 0.0
        %3074 = vmatmul.mubr.f32.gmra.mrb[0].mxu0 %v3004
        %v3075 = vpop.f32.mrb[0].mxu0
        %v3076 = vadd.f32 %v3000, %v3075
        %v3077 = vpop.f32.mrb[0].mxu0
        %3078 = vmatprep.mubr.f32.mxu0 0.0
        %3079 = vmatmul.mubr.f32.gmra.mrb[0].mxu0 %v3007
        %v3080 = vpop.f32.mrb[0].mxu0
        %v3081 = vadd.f32 %v3000, %v3080
        %v3082 = vpop.f32.mrb[0].mxu0
        %3083 = vdwg.mxu0
        %v3084 = vadd.f32 %v3076, %v2889
        %v3085 = vadd.f32 %v3081, %v2890
        %p3086 = scmp.eq.s32.totalorder %s37, 1
        // Predicated region
        $region149: #{tpu_custom_call.1} parent=111 // pred_check
          %p3087 = pneg %p3086
        $region150: #{tpu_custom_call.1} parent=111 // pred_check_branch
          %3089 = sbr.rel (%p3087) target = $region152
        $region151: #{tpu_custom_call.1} parent=111 // pred_region
          %v3090 = vld [vmem:[%s19] sm:$0xff]
          %v3091 = vld [vmem:[%s19 + $0x8] sm:$0xff]
          %v3092 = vld [vmem:[%s19 + $0x10] sm:$0xff]
          %v3093 = vld [vmem:[%s19 + $0x18] sm:$0xff]
          %v3094 = vld [vmem:[%s21] sm:$0x1]
          %v3096 = vlaneseq
          %v3097 = vshrl.u32 %v3096, 7
          %v3098 = vsub.s32 0, %v3097
          %v3099 = vrot.slane %v3094, %v3098
          %3101 = vmatprep.subr.mxu0 0.0
          %3102 = vmatpush1.msra.mxu0 %v3090
          %3103 = vmatprep.subr.mxu0 0.0
          %3104 = vmatpush1.msra.mxu0 %v3091
          %3105 = vmatprep.subr.mxu0 0.0
          %3106 = vmatpush1.msra.mxu0 %v3092
          %3107 = vmatprep.subr.mxu0 0.0
          %3108 = vmatpush1.msra.mxu0 %v3093
          %3109 = vmatprep.subr.mxu0 0.0
          %3110 = vmatpush1.msra.mxu0 0.0
          %3111 = vmatprep.subr.mxu0 0.0
          %3112 = vmatpush1.msra.mxu0 0.0
          %3113 = vmatprep.subr.mxu0 0.0
          %3114 = vmatpush1.msra.mxu0 0.0
          %3115 = vmatprep.subr.mxu0 0.0
          %3116 = vmatpush1.msra.mxu0 0.0
          %3117 = vmatprep.subr.mxu0 0.0
          %3118 = vmatpush1.msra.mxu0 0.0
          %3119 = vmatprep.subr.mxu0 0.0
          %3120 = vmatpush1.msra.mxu0 0.0
          %3121 = vmatprep.subr.mxu0 0.0
          %3122 = vmatpush1.msra.mxu0 0.0
          %3123 = vmatprep.subr.mxu0 0.0
          %3124 = vmatpush1.msra.mxu0 0.0
          %3125 = vmatprep.subr.mxu0 0.0
          %3126 = vmatpush1.msra.mxu0 0.0
          %3127 = vmatprep.subr.mxu0 0.0
          %3128 = vmatpush1.msra.mxu0 0.0
          %3129 = vmatprep.subr.mxu0 0.0
          %3130 = vmatpush1.msra.mxu0 0.0
          %3131 = vmatprep.subr.mxu0 0.0
          %3132 = vmatpush1.msra.mxu0 0.0
          %3133 = vmatprep.subr.mxu0 0.0
          %3134 = vmatpush1.msra.mxu0 0.0
          %3135 = vmatprep.subr.mxu0 0.0
          %3136 = vmatpush1.msra.mxu0 0.0
          %3137 = vmatprep.subr.mxu0 0.0
          %3138 = vmatpush1.msra.mxu0 0.0
          %3139 = vmatprep.subr.mxu0 0.0
          %3140 = vmatpush1.msra.mxu0 0.0
          %3141 = vmatprep.subr.mxu0 0.0
          %3142 = vmatpush1.msra.mxu0 0.0
          %3143 = vmatprep.subr.mxu0 0.0
          %3144 = vmatpush1.msra.mxu0 0.0
          %3145 = vmatprep.subr.mxu0 0.0
          %3146 = vmatpush1.msra.mxu0 0.0
          %3147 = vmatprep.subr.mxu0 0.0
          %3148 = vmatpush1.msra.mxu0 0.0
          %3149 = vmatprep.subr.mxu0 0.0
          %3150 = vmatpush1.msra.mxu0 0.0
          %3151 = vmatprep.subr.mxu0 0.0
          %3152 = vmatpush1.msra.mxu0 0.0
          %3153 = vmatprep.subr.mxu0 0.0
          %3154 = vmatpush1.msra.mxu0 0.0
          %3155 = vmatprep.subr.mxu0 0.0
          %3156 = vmatpush1.msra.mxu0 0.0
          %3157 = vmatprep.subr.mxu0 0.0
          %3158 = vmatpush1.msra.mxu0 0.0
          %3159 = vmatprep.subr.mxu0 0.0
          %3160 = vmatpush1.msra.mxu0 0.0
          %3161 = vmatprep.subr.mxu0 0.0
          %3162 = vmatpush1.msra.mxu0 0.0
          %3163 = vmatprep.subr.mxu0 0.0
          %3164 = vmatpush1.msra.mxu0 0.0
          %3165 = vmatprep.mubr.f32.mxu0 0.0
          %3166 = vmatmul.mubr.f32.gmra.mrb[0].mxu0 %v1122
          %v3167 = vpop.f32.mrb[0].mxu0
          %v3168 = vadd.f32 %v3099, %v3167
          %v3169 = vpop.f32.mrb[0].mxu0
          %3170 = vmatprep.mubr.f32.mxu0 0.0
          %3171 = vmatmul.mubr.f32.gmra.mrb[0].mxu0 %v1125
          %v3172 = vpop.f32.mrb[0].mxu0
          %v3173 = vadd.f32 %v3099, %v3172
          %v3174 = vpop.f32.mrb[0].mxu0
          %3175 = vdwg.mxu0
          %s3176 = scalar_lea.vmem %s19, 32
          %v3177 = vld [vmem:[%s3176] sm:$0xff]
          %v3178 = vld [vmem:[%s3176 + $0x8] sm:$0xff]
          %v3179 = vld [vmem:[%s3176 + $0x10] sm:$0xff]
          %v3180 = vld [vmem:[%s3176 + $0x18] sm:$0xff]
          %s3181 = scalar_lea.vmem %s21, 1
          %v3182 = vld [vmem:[%s3181] sm:$0x1]
          %v3184 = vlaneseq
          %v3185 = vshrl.u32 %v3184, 7
          %v3186 = vsub.s32 0, %v3185
          %v3187 = vrot.slane %v3182, %v3186
          %3189 = vmatprep.subr.mxu0 0.0
          %3190 = vmatpush1.msra.mxu0 %v3177
          %3191 = vmatprep.subr.mxu0 0.0
          %3192 = vmatpush1.msra.mxu0 %v3178
          %3193 = vmatprep.subr.mxu0 0.0
          %3194 = vmatpush1.msra.mxu0 %v3179
          %3195 = vmatprep.subr.mxu0 0.0
          %3196 = vmatpush1.msra.mxu0 %v3180
          %3197 = vmatprep.subr.mxu0 0.0
          %3198 = vmatpush1.msra.mxu0 0.0
          %3199 = vmatprep.subr.mxu0 0.0
          %3200 = vmatpush1.msra.mxu0 0.0
          %3201 = vmatprep.subr.mxu0 0.0
          %3202 = vmatpush1.msra.mxu0 0.0
          %3203 = vmatprep.subr.mxu0 0.0
          %3204 = vmatpush1.msra.mxu0 0.0
          %3205 = vmatprep.subr.mxu0 0.0
          %3206 = vmatpush1.msra.mxu0 0.0
          %3207 = vmatprep.subr.mxu0 0.0
          %3208 = vmatpush1.msra.mxu0 0.0
          %3209 = vmatprep.subr.mxu0 0.0
          %3210 = vmatpush1.msra.mxu0 0.0
          %3211 = vmatprep.subr.mxu0 0.0
          %3212 = vmatpush1.msra.mxu0 0.0
          %3213 = vmatprep.subr.mxu0 0.0
          %3214 = vmatpush1.msra.mxu0 0.0
          %3215 = vmatprep.subr.mxu0 0.0
          %3216 = vmatpush1.msra.mxu0 0.0
          %3217 = vmatprep.subr.mxu0 0.0
          %3218 = vmatpush1.msra.mxu0 0.0
          %3219 = vmatprep.subr.mxu0 0.0
          %3220 = vmatpush1.msra.mxu0 0.0
          %3221 = vmatprep.subr.mxu0 0.0
          %3222 = vmatpush1.msra.mxu0 0.0
          %3223 = vmatprep.subr.mxu0 0.0
          %3224 = vmatpush1.msra.mxu0 0.0
          %3225 = vmatprep.subr.mxu0 0.0
          %3226 = vmatpush1.msra.mxu0 0.0
          %3227 = vmatprep.subr.mxu0 0.0
          %3228 = vmatpush1.msra.mxu0 0.0
          %3229 = vmatprep.subr.mxu0 0.0
          %3230 = vmatpush1.msra.mxu0 0.0
          %3231 = vmatprep.subr.mxu0 0.0
          %3232 = vmatpush1.msra.mxu0 0.0
          %3233 = vmatprep.subr.mxu0 0.0
          %3234 = vmatpush1.msra.mxu0 0.0
          %3235 = vmatprep.subr.mxu0 0.0
          %3236 = vmatpush1.msra.mxu0 0.0
          %3237 = vmatprep.subr.mxu0 0.0
          %3238 = vmatpush1.msra.mxu0 0.0
          %3239 = vmatprep.subr.mxu0 0.0
          %3240 = vmatpush1.msra.mxu0 0.0
          %3241 = vmatprep.subr.mxu0 0.0
          %3242 = vmatpush1.msra.mxu0 0.0
          %3243 = vmatprep.subr.mxu0 0.0
          %3244 = vmatpush1.msra.mxu0 0.0
          %3245 = vmatprep.subr.mxu0 0.0
          %3246 = vmatpush1.msra.mxu0 0.0
          %3247 = vmatprep.subr.mxu0 0.0
          %3248 = vmatpush1.msra.mxu0 0.0
          %3249 = vmatprep.subr.mxu0 0.0
          %3250 = vmatpush1.msra.mxu0 0.0
          %3251 = vmatprep.subr.mxu0 0.0
          %3252 = vmatpush1.msra.mxu0 0.0
          %3253 = vmatprep.mubr.f32.mxu0 0.0
          %3254 = vmatmul.mubr.f32.gmra.mrb[0].mxu0 %v1122
          %v3255 = vpop.f32.mrb[0].mxu0
          %v3256 = vadd.f32 %v3187, %v3255
          %v3257 = vpop.f32.mrb[0].mxu0
          %3258 = vmatprep.mubr.f32.mxu0 0.0
          %3259 = vmatmul.mubr.f32.gmra.mrb[0].mxu0 %v1125
          %v3260 = vpop.f32.mrb[0].mxu0
          %v3261 = vadd.f32 %v3187, %v3260
          %v3262 = vpop.f32.mrb[0].mxu0
          %3263 = vdwg.mxu0
          %s3264 = scalar_lea.vmem %s19, 64
          %v3265 = vld [vmem:[%s3264] sm:$0xff]
          %v3266 = vld [vmem:[%s3264 + $0x8] sm:$0xff]
          %v3267 = vld [vmem:[%s3264 + $0x10] sm:$0xff]
          %v3268 = vld [vmem:[%s3264 + $0x18] sm:$0xff]
          %s3269 = scalar_lea.vmem %s21, 2
          %v3270 = vld [vmem:[%s3269] sm:$0x1]
          %v3272 = vlaneseq
          %v3273 = vshrl.u32 %v3272, 7
          %v3274 = vsub.s32 0, %v3273
          %v3275 = vrot.slane %v3270, %v3274
          %3277 = vmatprep.subr.mxu0 0.0
          %3278 = vmatpush1.msra.mxu0 %v3265
          %3279 = vmatprep.subr.mxu0 0.0
          %3280 = vmatpush1.msra.mxu0 %v3266
          %3281 = vmatprep.subr.mxu0 0.0
          %3282 = vmatpush1.msra.mxu0 %v3267
          %3283 = vmatprep.subr.mxu0 0.0
          %3284 = vmatpush1.msra.mxu0 %v3268
          %3285 = vmatprep.subr.mxu0 0.0
          %3286 = vmatpush1.msra.mxu0 0.0
          %3287 = vmatprep.subr.mxu0 0.0
          %3288 = vmatpush1.msra.mxu0 0.0
          %3289 = vmatprep.subr.mxu0 0.0
          %3290 = vmatpush1.msra.mxu0 0.0
          %3291 = vmatprep.subr.mxu0 0.0
          %3292 = vmatpush1.msra.mxu0 0.0
          %3293 = vmatprep.subr.mxu0 0.0
          %3294 = vmatpush1.msra.mxu0 0.0
          %3295 = vmatprep.subr.mxu0 0.0
          %3296 = vmatpush1.msra.mxu0 0.0
          %3297 = vmatprep.subr.mxu0 0.0
          %3298 = vmatpush1.msra.mxu0 0.0
          %3299 = vmatprep.subr.mxu0 0.0
          %3300 = vmatpush1.msra.mxu0 0.0
          %3301 = vmatprep.subr.mxu0 0.0
          %3302 = vmatpush1.msra.mxu0 0.0
          %3303 = vmatprep.subr.mxu0 0.0
          %3304 = vmatpush1.msra.mxu0 0.0
          %3305 = vmatprep.subr.mxu0 0.0
          %3306 = vmatpush1.msra.mxu0 0.0
          %3307 = vmatprep.subr.mxu0 0.0
          %3308 = vmatpush1.msra.mxu0 0.0
          %3309 = vmatprep.subr.mxu0 0.0
          %3310 = vmatpush1.msra.mxu0 0.0
          %3311 = vmatprep.subr.mxu0 0.0
          %3312 = vmatpush1.msra.mxu0 0.0
          %3313 = vmatprep.subr.mxu0 0.0
          %3314 = vmatpush1.msra.mxu0 0.0
          %3315 = vmatprep.subr.mxu0 0.0
          %3316 = vmatpush1.msra.mxu0 0.0
          %3317 = vmatprep.subr.mxu0 0.0
          %3318 = vmatpush1.msra.mxu0 0.0
          %3319 = vmatprep.subr.mxu0 0.0
          %3320 = vmatpush1.msra.mxu0 0.0
          %3321 = vmatprep.subr.mxu0 0.0
          %3322 = vmatpush1.msra.mxu0 0.0
          %3323 = vmatprep.subr.mxu0 0.0
          %3324 = vmatpush1.msra.mxu0 0.0
          %3325 = vmatprep.subr.mxu0 0.0
          %3326 = vmatpush1.msra.mxu0 0.0
          %3327 = vmatprep.subr.mxu0 0.0
          %3328 = vmatpush1.msra.mxu0 0.0
          %3329 = vmatprep.subr.mxu0 0.0
          %3330 = vmatpush1.msra.mxu0 0.0
          %3331 = vmatprep.subr.mxu0 0.0
          %3332 = vmatpush1.msra.mxu0 0.0
          %3333 = vmatprep.subr.mxu0 0.0
          %3334 = vmatpush1.msra.mxu0 0.0
          %3335 = vmatprep.subr.mxu0 0.0
          %3336 = vmatpush1.msra.mxu0 0.0
          %3337 = vmatprep.subr.mxu0 0.0
          %3338 = vmatpush1.msra.mxu0 0.0
          %3339 = vmatprep.subr.mxu0 0.0
          %3340 = vmatpush1.msra.mxu0 0.0
          %3341 = vmatprep.mubr.f32.mxu0 0.0
          %3342 = vmatmul.mubr.f32.gmra.mrb[0].mxu0 %v1122
          %v3343 = vpop.f32.mrb[0].mxu0
          %v3344 = vadd.f32 %v3275, %v3343
          %v3345 = vpop.f32.mrb[0].mxu0
          %3346 = vmatprep.mubr.f32.mxu0 0.0
          %3347 = vmatmul.mubr.f32.gmra.mrb[0].mxu0 %v1125
          %v3348 = vpop.f32.mrb[0].mxu0
          %v3349 = vadd.f32 %v3275, %v3348
          %v3350 = vpop.f32.mrb[0].mxu0
          %3351 = vdwg.mxu0
          %v3352 = vld [vmem:[%s18] sm:$0xff]
          %v3353 = vld [vmem:[%s18 + $0x8] sm:$0xff]
          %v3354 = vld [vmem:[%s18 + $0x10] sm:$0xff]
          %v3355 = vld [vmem:[%s18 + $0x18] sm:$0xff]
          %s3356 = scalar_lea.vmem %s18, 32
          %v3357 = vld [vmem:[%s3356] sm:$0xff]
          %v3358 = vld [vmem:[%s3356 + $0x8] sm:$0xff]
          %v3359 = vld [vmem:[%s3356 + $0x10] sm:$0xff]
          %v3360 = vld [vmem:[%s3356 + $0x18] sm:$0xff]
          %s3361 = scalar_lea.vmem %s18, 64
          %v3362 = vld [vmem:[%s3361] sm:$0xff]
          %v3363 = vld [vmem:[%s3361 + $0x8] sm:$0xff]
          %v3364 = vld [vmem:[%s3361 + $0x10] sm:$0xff]
          %v3365 = vld [vmem:[%s3361 + $0x18] sm:$0xff]
          %v3366 = vld [vmem:[#allocation12] sm:$0xff]
          %v3367 = vld [vmem:[#allocation12 + $0x8] sm:$0xff]
          %v3368 = vld [vmem:[#allocation12 + $0x10] sm:$0xff]
          %v3369 = vld [vmem:[#allocation12 + $0x18] sm:$0xff]
          %s3370 = scalar_lea.vmem [#allocation12], 32
          %v3371 = vld [vmem:[%s3370] sm:$0xff]
          %v3372 = vld [vmem:[%s3370 + $0x8] sm:$0xff]
          %v3373 = vld [vmem:[%s3370 + $0x10] sm:$0xff]
          %v3374 = vld [vmem:[%s3370 + $0x18] sm:$0xff]
          %s3375 = scalar_lea.vmem [#allocation12], 64
          %v3376 = vld [vmem:[%s3375] sm:$0xff]
          %v3377 = vld [vmem:[%s3375 + $0x8] sm:$0xff]
          %v3378 = vld [vmem:[%s3375 + $0x10] sm:$0xff]
          %v3379 = vld [vmem:[%s3375 + $0x18] sm:$0xff]
          %v3380 = vld [vmem:[%s22] sm:$0x1]
          %s3381 = scalar_lea.vmem %s22, 1
          %v3382 = vld [vmem:[%s3381] sm:$0x1]
          %s3383 = scalar_lea.vmem %s22, 2
          %v3384 = vld [vmem:[%s3383] sm:$0x1]
          %v3386 = vlaneseq
          %v3387 = vshrl.u32 %v3386, 7
          %v3388 = vsub.s32 0, %v3387
          %v3389 = vrot.slane %v3380, %v3388
          %v3391 = vadd.f32 %v3168, %v3389
          %v3392 = vsub.f32 0.0, %v3391
          %v3393 = vmul.f32 %v3392, 1.442695
          %v3394 = vpow.pop %v3393
          %v3395 = vadd.f32 %v3394, 1.0
          %v3396 = vrcp.pop %v3395
          %v3397 = vmul.f32 1.0, %v3396
          %v3399 = vlaneseq
          %v3400 = vshrl.u32 %v3399, 7
          %v3401 = vsub.s32 0, %v3400
          %v3402 = vrot.slane %v3382, %v3401
          %v3404 = vadd.f32 %v3256, %v3402
          %v3405 = vsub.f32 0.0, %v3404
          %v3406 = vmul.f32 %v3405, 1.442695
          %v3407 = vpow.pop %v3406
          %v3408 = vadd.f32 %v3407, 1.0
          %v3409 = vrcp.pop %v3408
          %v3410 = vmul.f32 1.0, %v3409
          %v3412 = vlaneseq
          %v3413 = vshrl.u32 %v3412, 7
          %v3414 = vsub.s32 0, %v3413
          %v3415 = vrot.slane %v3384, %v3414
          %v3417 = vmul.f32 %v3397, %v3415
          %v3418 = vadd.f32 %v3344, %v3417
          %v3419 = vtanh.pop %v3418
          %v3420 = vsub.f32 1.0, %v3410
          %v3421 = vmul.f32 %v3420, %v3419
          %v3422 = vmul.f32 %v3410, 0.0
          %v3423 = vadd.f32 %v3421, %v3422
          %v3425 = vsel %vm1120, %v3423, 0
          %3427 = vmatprep.subr.mxu0 0.0
          %3428 = vmatpush1.msra.mxu0 %v3352
          %3429 = vmatprep.subr.mxu0 0.0
          %3430 = vmatpush1.msra.mxu0 %v3353
          %3431 = vmatprep.subr.mxu0 0.0
          %3432 = vmatpush1.msra.mxu0 %v3354
          %3433 = vmatprep.subr.mxu0 0.0
          %3434 = vmatpush1.msra.mxu0 %v3355
          %3435 = vmatprep.subr.mxu0 0.0
          %3436 = vmatpush1.msra.mxu0 0.0
          %3437 = vmatprep.subr.mxu0 0.0
          %3438 = vmatpush1.msra.mxu0 0.0
          %3439 = vmatprep.subr.mxu0 0.0
          %3440 = vmatpush1.msra.mxu0 0.0
          %3441 = vmatprep.subr.mxu0 0.0
          %3442 = vmatpush1.msra.mxu0 0.0
          %3443 = vmatprep.subr.mxu0 0.0
          %3444 = vmatpush1.msra.mxu0 0.0
          %3445 = vmatprep.subr.mxu0 0.0
          %3446 = vmatpush1.msra.mxu0 0.0
          %3447 = vmatprep.subr.mxu0 0.0
          %3448 = vmatpush1.msra.mxu0 0.0
          %3449 = vmatprep.subr.mxu0 0.0
          %3450 = vmatpush1.msra.mxu0 0.0
          %3451 = vmatprep.subr.mxu0 0.0
          %3452 = vmatpush1.msra.mxu0 0.0
          %3453 = vmatprep.subr.mxu0 0.0
          %3454 = vmatpush1.msra.mxu0 0.0
          %3455 = vmatprep.subr.mxu0 0.0
          %3456 = vmatpush1.msra.mxu0 0.0
          %3457 = vmatprep.subr.mxu0 0.0
          %3458 = vmatpush1.msra.mxu0 0.0
          %3459 = vmatprep.subr.mxu0 0.0
          %3460 = vmatpush1.msra.mxu0 0.0
          %3461 = vmatprep.subr.mxu0 0.0
          %3462 = vmatpush1.msra.mxu0 0.0
          %3463 = vmatprep.subr.mxu0 0.0
          %3464 = vmatpush1.msra.mxu0 0.0
          %3465 = vmatprep.subr.mxu0 0.0
          %3466 = vmatpush1.msra.mxu0 0.0
          %3467 = vmatprep.subr.mxu0 0.0
          %3468 = vmatpush1.msra.mxu0 0.0
          %3469 = vmatprep.subr.mxu0 0.0
          %3470 = vmatpush1.msra.mxu0 0.0
          %3471 = vmatprep.subr.mxu0 0.0
          %3472 = vmatpush1.msra.mxu0 0.0
          %3473 = vmatprep.subr.mxu0 0.0
          %3474 = vmatpush1.msra.mxu0 0.0
          %3475 = vmatprep.subr.mxu0 0.0
          %3476 = vmatpush1.msra.mxu0 0.0
          %3477 = vmatprep.subr.mxu0 0.0
          %3478 = vmatpush1.msra.mxu0 0.0
          %3479 = vmatprep.subr.mxu0 0.0
          %3480 = vmatpush1.msra.mxu0 0.0
          %3481 = vmatprep.subr.mxu0 0.0
          %3482 = vmatpush1.msra.mxu0 0.0
          %3483 = vmatprep.subr.mxu0 0.0
          %3484 = vmatpush1.msra.mxu0 0.0
          %3485 = vmatprep.subr.mxu0 0.0
          %3486 = vmatpush1.msra.mxu0 0.0
          %3487 = vmatprep.subr.mxu0 0.0
          %3488 = vmatpush1.msra.mxu0 0.0
          %3489 = vmatprep.subr.mxu0 0.0
          %3490 = vmatpush1.msra.mxu0 0.0
          %3491 = vmatprep.mubr.f32.mxu0 0.0
          %3492 = vmatmul.mubr.f32.gmra.mrb[0].mxu0 %v3425
          %v3493 = vpop.f32.mrb[0].mxu0
          %v3494 = vadd.f32 0.0, %v3493
          %v3495 = vpop.f32.mrb[0].mxu0
          %3496 = vdwg.mxu0
          %v3497 = vadd.f32 %v3173, %v3494
          %3498 = vmatprep.subr.mxu0 0.0
          %3499 = vmatpush1.msra.mxu0 %v3357
          %3500 = vmatprep.subr.mxu0 0.0
          %3501 = vmatpush1.msra.mxu0 %v3358
          %3502 = vmatprep.subr.mxu0 0.0
          %3503 = vmatpush1.msra.mxu0 %v3359
          %3504 = vmatprep.subr.mxu0 0.0
          %3505 = vmatpush1.msra.mxu0 %v3360
          %3506 = vmatprep.subr.mxu0 0.0
          %3507 = vmatpush1.msra.mxu0 0.0
          %3508 = vmatprep.subr.mxu0 0.0
          %3509 = vmatpush1.msra.mxu0 0.0
          %3510 = vmatprep.subr.mxu0 0.0
          %3511 = vmatpush1.msra.mxu0 0.0
          %3512 = vmatprep.subr.mxu0 0.0
          %3513 = vmatpush1.msra.mxu0 0.0
          %3514 = vmatprep.subr.mxu0 0.0
          %3515 = vmatpush1.msra.mxu0 0.0
          %3516 = vmatprep.subr.mxu0 0.0
          %3517 = vmatpush1.msra.mxu0 0.0
          %3518 = vmatprep.subr.mxu0 0.0
          %3519 = vmatpush1.msra.mxu0 0.0
          %3520 = vmatprep.subr.mxu0 0.0
          %3521 = vmatpush1.msra.mxu0 0.0
          %3522 = vmatprep.subr.mxu0 0.0
          %3523 = vmatpush1.msra.mxu0 0.0
          %3524 = vmatprep.subr.mxu0 0.0
          %3525 = vmatpush1.msra.mxu0 0.0
          %3526 = vmatprep.subr.mxu0 0.0
          %3527 = vmatpush1.msra.mxu0 0.0
          %3528 = vmatprep.subr.mxu0 0.0
          %3529 = vmatpush1.msra.mxu0 0.0
          %3530 = vmatprep.subr.mxu0 0.0
          %3531 = vmatpush1.msra.mxu0 0.0
          %3532 = vmatprep.subr.mxu0 0.0
          %3533 = vmatpush1.msra.mxu0 0.0
          %3534 = vmatprep.subr.mxu0 0.0
          %3535 = vmatpush1.msra.mxu0 0.0
          %3536 = vmatprep.subr.mxu0 0.0
          %3537 = vmatpush1.msra.mxu0 0.0
          %3538 = vmatprep.subr.mxu0 0.0
          %3539 = vmatpush1.msra.mxu0 0.0
          %3540 = vmatprep.subr.mxu0 0.0
          %3541 = vmatpush1.msra.mxu0 0.0
          %3542 = vmatprep.subr.mxu0 0.0
          %3543 = vmatpush1.msra.mxu0 0.0
          %3544 = vmatprep.subr.mxu0 0.0
          %3545 = vmatpush1.msra.mxu0 0.0
          %3546 = vmatprep.subr.mxu0 0.0
          %3547 = vmatpush1.msra.mxu0 0.0
          %3548 = vmatprep.subr.mxu0 0.0
          %3549 = vmatpush1.msra.mxu0 0.0
          %3550 = vmatprep.subr.mxu0 0.0
          %3551 = vmatpush1.msra.mxu0 0.0
          %3552 = vmatprep.subr.mxu0 0.0
          %3553 = vmatpush1.msra.mxu0 0.0
          %3554 = vmatprep.subr.mxu0 0.0
          %3555 = vmatpush1.msra.mxu0 0.0
          %3556 = vmatprep.subr.mxu0 0.0
          %3557 = vmatpush1.msra.mxu0 0.0
          %3558 = vmatprep.subr.mxu0 0.0
          %3559 = vmatpush1.msra.mxu0 0.0
          %3560 = vmatprep.subr.mxu0 0.0
          %3561 = vmatpush1.msra.mxu0 0.0
          %3562 = vmatprep.mubr.f32.mxu0 0.0
          %3563 = vmatmul.mubr.f32.gmra.mrb[0].mxu0 %v3425
          %v3564 = vpop.f32.mrb[0].mxu0
          %v3565 = vadd.f32 0.0, %v3564
          %v3566 = vpop.f32.mrb[0].mxu0
          %3567 = vdwg.mxu0
          %v3568 = vadd.f32 %v3261, %v3565
          %3569 = vmatprep.subr.mxu0 0.0
          %3570 = vmatpush1.msra.mxu0 %v3362
          %3571 = vmatprep.subr.mxu0 0.0
          %3572 = vmatpush1.msra.mxu0 %v3363
          %3573 = vmatprep.subr.mxu0 0.0
          %3574 = vmatpush1.msra.mxu0 %v3364
          %3575 = vmatprep.subr.mxu0 0.0
          %3576 = vmatpush1.msra.mxu0 %v3365
          %3577 = vmatprep.subr.mxu0 0.0
          %3578 = vmatpush1.msra.mxu0 0.0
          %3579 = vmatprep.subr.mxu0 0.0
          %3580 = vmatpush1.msra.mxu0 0.0
          %3581 = vmatprep.subr.mxu0 0.0
          %3582 = vmatpush1.msra.mxu0 0.0
          %3583 = vmatprep.subr.mxu0 0.0
          %3584 = vmatpush1.msra.mxu0 0.0
          %3585 = vmatprep.subr.mxu0 0.0
          %3586 = vmatpush1.msra.mxu0 0.0
          %3587 = vmatprep.subr.mxu0 0.0
          %3588 = vmatpush1.msra.mxu0 0.0
          %3589 = vmatprep.subr.mxu0 0.0
          %3590 = vmatpush1.msra.mxu0 0.0
          %3591 = vmatprep.subr.mxu0 0.0
          %3592 = vmatpush1.msra.mxu0 0.0
          %3593 = vmatprep.subr.mxu0 0.0
          %3594 = vmatpush1.msra.mxu0 0.0
          %3595 = vmatprep.subr.mxu0 0.0
          %3596 = vmatpush1.msra.mxu0 0.0
          %3597 = vmatprep.subr.mxu0 0.0
          %3598 = vmatpush1.msra.mxu0 0.0
          %3599 = vmatprep.subr.mxu0 0.0
          %3600 = vmatpush1.msra.mxu0 0.0
          %3601 = vmatprep.subr.mxu0 0.0
          %3602 = vmatpush1.msra.mxu0 0.0
          %3603 = vmatprep.subr.mxu0 0.0
          %3604 = vmatpush1.msra.mxu0 0.0
          %3605 = vmatprep.subr.mxu0 0.0
          %3606 = vmatpush1.msra.mxu0 0.0
          %3607 = vmatprep.subr.mxu0 0.0
          %3608 = vmatpush1.msra.mxu0 0.0
          %3609 = vmatprep.subr.mxu0 0.0
          %3610 = vmatpush1.msra.mxu0 0.0
          %3611 = vmatprep.subr.mxu0 0.0
          %3612 = vmatpush1.msra.mxu0 0.0
          %3613 = vmatprep.subr.mxu0 0.0
          %3614 = vmatpush1.msra.mxu0 0.0
          %3615 = vmatprep.subr.mxu0 0.0
          %3616 = vmatpush1.msra.mxu0 0.0
          %3617 = vmatprep.subr.mxu0 0.0
          %3618 = vmatpush1.msra.mxu0 0.0
          %3619 = vmatprep.subr.mxu0 0.0
          %3620 = vmatpush1.msra.mxu0 0.0
          %3621 = vmatprep.subr.mxu0 0.0
          %3622 = vmatpush1.msra.mxu0 0.0
          %3623 = vmatprep.subr.mxu0 0.0
          %3624 = vmatpush1.msra.mxu0 0.0
          %3625 = vmatprep.subr.mxu0 0.0
          %3626 = vmatpush1.msra.mxu0 0.0
          %3627 = vmatprep.subr.mxu0 0.0
          %3628 = vmatpush1.msra.mxu0 0.0
          %3629 = vmatprep.subr.mxu0 0.0
          %3630 = vmatpush1.msra.mxu0 0.0
          %3631 = vmatprep.subr.mxu0 0.0
          %3632 = vmatpush1.msra.mxu0 0.0
          %3633 = vmatprep.mubr.f32.mxu0 0.0
          %3634 = vmatmul.mubr.f32.gmra.mrb[0].mxu0 %v3425
          %v3635 = vpop.f32.mrb[0].mxu0
          %v3636 = vadd.f32 0.0, %v3635
          %v3637 = vpop.f32.mrb[0].mxu0
          %3638 = vdwg.mxu0
          %v3639 = vadd.f32 %v3349, %v3636
          %3640 = vmatprep.subr.mxu0 0.0
          %3641 = vmatpush1.msra.mxu0 %v3366
          %3642 = vmatprep.subr.mxu0 0.0
          %3643 = vmatpush1.msra.mxu0 %v3367
          %3644 = vmatprep.subr.mxu0 0.0
          %3645 = vmatpush1.msra.mxu0 %v3368
          %3646 = vmatprep.subr.mxu0 0.0
          %3647 = vmatpush1.msra.mxu0 %v3369
          %3648 = vmatprep.subr.mxu0 0.0
          %3649 = vmatpush1.msra.mxu0 0.0
          %3650 = vmatprep.subr.mxu0 0.0
          %3651 = vmatpush1.msra.mxu0 0.0
          %3652 = vmatprep.subr.mxu0 0.0
          %3653 = vmatpush1.msra.mxu0 0.0
          %3654 = vmatprep.subr.mxu0 0.0
          %3655 = vmatpush1.msra.mxu0 0.0
          %3656 = vmatprep.subr.mxu0 0.0
          %3657 = vmatpush1.msra.mxu0 0.0
          %3658 = vmatprep.subr.mxu0 0.0
          %3659 = vmatpush1.msra.mxu0 0.0
          %3660 = vmatprep.subr.mxu0 0.0
          %3661 = vmatpush1.msra.mxu0 0.0
          %3662 = vmatprep.subr.mxu0 0.0
          %3663 = vmatpush1.msra.mxu0 0.0
          %3664 = vmatprep.subr.mxu0 0.0
          %3665 = vmatpush1.msra.mxu0 0.0
          %3666 = vmatprep.subr.mxu0 0.0
          %3667 = vmatpush1.msra.mxu0 0.0
          %3668 = vmatprep.subr.mxu0 0.0
          %3669 = vmatpush1.msra.mxu0 0.0
          %3670 = vmatprep.subr.mxu0 0.0
          %3671 = vmatpush1.msra.mxu0 0.0
          %3672 = vmatprep.subr.mxu0 0.0
          %3673 = vmatpush1.msra.mxu0 0.0
          %3674 = vmatprep.subr.mxu0 0.0
          %3675 = vmatpush1.msra.mxu0 0.0
          %3676 = vmatprep.subr.mxu0 0.0
          %3677 = vmatpush1.msra.mxu0 0.0
          %3678 = vmatprep.subr.mxu0 0.0
          %3679 = vmatpush1.msra.mxu0 0.0
          %3680 = vmatprep.subr.mxu0 0.0
          %3681 = vmatpush1.msra.mxu0 0.0
          %3682 = vmatprep.subr.mxu0 0.0
          %3683 = vmatpush1.msra.mxu0 0.0
          %3684 = vmatprep.subr.mxu0 0.0
          %3685 = vmatpush1.msra.mxu0 0.0
          %3686 = vmatprep.subr.mxu0 0.0
          %3687 = vmatpush1.msra.mxu0 0.0
          %3688 = vmatprep.subr.mxu0 0.0
          %3689 = vmatpush1.msra.mxu0 0.0
          %3690 = vmatprep.subr.mxu0 0.0
          %3691 = vmatpush1.msra.mxu0 0.0
          %3692 = vmatprep.subr.mxu0 0.0
          %3693 = vmatpush1.msra.mxu0 0.0
          %3694 = vmatprep.subr.mxu0 0.0
          %3695 = vmatpush1.msra.mxu0 0.0
          %3696 = vmatprep.subr.mxu0 0.0
          %3697 = vmatpush1.msra.mxu0 0.0
          %3698 = vmatprep.subr.mxu0 0.0
          %3699 = vmatpush1.msra.mxu0 0.0
          %3700 = vmatprep.subr.mxu0 0.0
          %3701 = vmatpush1.msra.mxu0 0.0
          %3702 = vmatprep.subr.mxu0 0.0
          %3703 = vmatpush1.msra.mxu0 0.0
          %3704 = vmatprep.mubr.f32.mxu0 0.0
          %3705 = vmatmul.mubr.f32.gmra.mrb[0].mxu0 %v3425
          %v3706 = vpop.f32.mrb[0].mxu0
          %v3707 = vadd.f32 %v3389, %v3706
          %v3708 = vpop.f32.mrb[0].mxu0
          %3709 = vdwg.mxu0
          %3710 = vmatprep.subr.mxu0 0.0
          %3711 = vmatpush1.msra.mxu0 %v3371
          %3712 = vmatprep.subr.mxu0 0.0
          %3713 = vmatpush1.msra.mxu0 %v3372
          %3714 = vmatprep.subr.mxu0 0.0
          %3715 = vmatpush1.msra.mxu0 %v3373
          %3716 = vmatprep.subr.mxu0 0.0
          %3717 = vmatpush1.msra.mxu0 %v3374
          %3718 = vmatprep.subr.mxu0 0.0
          %3719 = vmatpush1.msra.mxu0 0.0
          %3720 = vmatprep.subr.mxu0 0.0
          %3721 = vmatpush1.msra.mxu0 0.0
          %3722 = vmatprep.subr.mxu0 0.0
          %3723 = vmatpush1.msra.mxu0 0.0
          %3724 = vmatprep.subr.mxu0 0.0
          %3725 = vmatpush1.msra.mxu0 0.0
          %3726 = vmatprep.subr.mxu0 0.0
          %3727 = vmatpush1.msra.mxu0 0.0
          %3728 = vmatprep.subr.mxu0 0.0
          %3729 = vmatpush1.msra.mxu0 0.0
          %3730 = vmatprep.subr.mxu0 0.0
          %3731 = vmatpush1.msra.mxu0 0.0
          %3732 = vmatprep.subr.mxu0 0.0
          %3733 = vmatpush1.msra.mxu0 0.0
          %3734 = vmatprep.subr.mxu0 0.0
          %3735 = vmatpush1.msra.mxu0 0.0
          %3736 = vmatprep.subr.mxu0 0.0
          %3737 = vmatpush1.msra.mxu0 0.0
          %3738 = vmatprep.subr.mxu0 0.0
          %3739 = vmatpush1.msra.mxu0 0.0
          %3740 = vmatprep.subr.mxu0 0.0
          %3741 = vmatpush1.msra.mxu0 0.0
          %3742 = vmatprep.subr.mxu0 0.0
          %3743 = vmatpush1.msra.mxu0 0.0
          %3744 = vmatprep.subr.mxu0 0.0
          %3745 = vmatpush1.msra.mxu0 0.0
          %3746 = vmatprep.subr.mxu0 0.0
          %3747 = vmatpush1.msra.mxu0 0.0
          %3748 = vmatprep.subr.mxu0 0.0
          %3749 = vmatpush1.msra.mxu0 0.0
          %3750 = vmatprep.subr.mxu0 0.0
          %3751 = vmatpush1.msra.mxu0 0.0
          %3752 = vmatprep.subr.mxu0 0.0
          %3753 = vmatpush1.msra.mxu0 0.0
          %3754 = vmatprep.subr.mxu0 0.0
          %3755 = vmatpush1.msra.mxu0 0.0
          %3756 = vmatprep.subr.mxu0 0.0
          %3757 = vmatpush1.msra.mxu0 0.0
          %3758 = vmatprep.subr.mxu0 0.0
          %3759 = vmatpush1.msra.mxu0 0.0
          %3760 = vmatprep.subr.mxu0 0.0
          %3761 = vmatpush1.msra.mxu0 0.0
          %3762 = vmatprep.subr.mxu0 0.0
          %3763 = vmatpush1.msra.mxu0 0.0
          %3764 = vmatprep.subr.mxu0 0.0
          %3765 = vmatpush1.msra.mxu0 0.0
          %3766 = vmatprep.subr.mxu0 0.0
          %3767 = vmatpush1.msra.mxu0 0.0
          %3768 = vmatprep.subr.mxu0 0.0
          %3769 = vmatpush1.msra.mxu0 0.0
          %3770 = vmatprep.subr.mxu0 0.0
          %3771 = vmatpush1.msra.mxu0 0.0
          %3772 = vmatprep.subr.mxu0 0.0
          %3773 = vmatpush1.msra.mxu0 0.0
          %3774 = vmatprep.mubr.f32.mxu0 0.0
          %3775 = vmatmul.mubr.f32.gmra.mrb[0].mxu0 %v3425
          %v3776 = vpop.f32.mrb[0].mxu0
          %v3777 = vadd.f32 %v3402, %v3776
          %v3778 = vpop.f32.mrb[0].mxu0
          %3779 = vdwg.mxu0
          %3780 = vmatprep.subr.mxu0 0.0
          %3781 = vmatpush1.msra.mxu0 %v3376
          %3782 = vmatprep.subr.mxu0 0.0
          %3783 = vmatpush1.msra.mxu0 %v3377
          %3784 = vmatprep.subr.mxu0 0.0
          %3785 = vmatpush1.msra.mxu0 %v3378
          %3786 = vmatprep.subr.mxu0 0.0
          %3787 = vmatpush1.msra.mxu0 %v3379
          %3788 = vmatprep.subr.mxu0 0.0
          %3789 = vmatpush1.msra.mxu0 0.0
          %3790 = vmatprep.subr.mxu0 0.0
          %3791 = vmatpush1.msra.mxu0 0.0
          %3792 = vmatprep.subr.mxu0 0.0
          %3793 = vmatpush1.msra.mxu0 0.0
          %3794 = vmatprep.subr.mxu0 0.0
          %3795 = vmatpush1.msra.mxu0 0.0
          %3796 = vmatprep.subr.mxu0 0.0
          %3797 = vmatpush1.msra.mxu0 0.0
          %3798 = vmatprep.subr.mxu0 0.0
          %3799 = vmatpush1.msra.mxu0 0.0
          %3800 = vmatprep.subr.mxu0 0.0
          %3801 = vmatpush1.msra.mxu0 0.0
          %3802 = vmatprep.subr.mxu0 0.0
          %3803 = vmatpush1.msra.mxu0 0.0
          %3804 = vmatprep.subr.mxu0 0.0
          %3805 = vmatpush1.msra.mxu0 0.0
          %3806 = vmatprep.subr.mxu0 0.0
          %3807 = vmatpush1.msra.mxu0 0.0
          %3808 = vmatprep.subr.mxu0 0.0
          %3809 = vmatpush1.msra.mxu0 0.0
          %3810 = vmatprep.subr.mxu0 0.0
          %3811 = vmatpush1.msra.mxu0 0.0
          %3812 = vmatprep.subr.mxu0 0.0
          %3813 = vmatpush1.msra.mxu0 0.0
          %3814 = vmatprep.subr.mxu0 0.0
          %3815 = vmatpush1.msra.mxu0 0.0
          %3816 = vmatprep.subr.mxu0 0.0
          %3817 = vmatpush1.msra.mxu0 0.0
          %3818 = vmatprep.subr.mxu0 0.0
          %3819 = vmatpush1.msra.mxu0 0.0
          %3820 = vmatprep.subr.mxu0 0.0
          %3821 = vmatpush1.msra.mxu0 0.0
          %3822 = vmatprep.subr.mxu0 0.0
          %3823 = vmatpush1.msra.mxu0 0.0
          %3824 = vmatprep.subr.mxu0 0.0
          %3825 = vmatpush1.msra.mxu0 0.0
          %3826 = vmatprep.subr.mxu0 0.0
          %3827 = vmatpush1.msra.mxu0 0.0
          %3828 = vmatprep.subr.mxu0 0.0
          %3829 = vmatpush1.msra.mxu0 0.0
          %3830 = vmatprep.subr.mxu0 0.0
          %3831 = vmatpush1.msra.mxu0 0.0
          %3832 = vmatprep.subr.mxu0 0.0
          %3833 = vmatpush1.msra.mxu0 0.0
          %3834 = vmatprep.subr.mxu0 0.0
          %3835 = vmatpush1.msra.mxu0 0.0
          %3836 = vmatprep.subr.mxu0 0.0
          %3837 = vmatpush1.msra.mxu0 0.0
          %3838 = vmatprep.subr.mxu0 0.0
          %3839 = vmatpush1.msra.mxu0 0.0
          %3840 = vmatprep.subr.mxu0 0.0
          %3841 = vmatpush1.msra.mxu0 0.0
          %3842 = vmatprep.subr.mxu0 0.0
          %3843 = vmatpush1.msra.mxu0 0.0
          %3844 = vmatprep.mubr.f32.mxu0 0.0
          %3845 = vmatmul.mubr.f32.gmra.mrb[0].mxu0 %v3425
          %v3846 = vpop.f32.mrb[0].mxu0
          %v3847 = vadd.f32 %v3415, %v3846
          %v3848 = vpop.f32.mrb[0].mxu0
          %3849 = vdwg.mxu0
          %v3850 = vadd.f32 %v3497, %v3707
          %v3851 = vsub.f32 0.0, %v3850
          %v3852 = vmul.f32 %v3851, 1.442695
          %v3853 = vpow.pop %v3852
          %v3854 = vadd.f32 %v3853, 1.0
          %v3855 = vrcp.pop %v3854
          %v3856 = vmul.f32 1.0, %v3855
          %v3857 = vadd.f32 %v3568, %v3777
          %v3858 = vsub.f32 0.0, %v3857
          %v3859 = vmul.f32 %v3858, 1.442695
          %v3860 = vpow.pop %v3859
          %v3861 = vadd.f32 %v3860, 1.0
          %v3862 = vrcp.pop %v3861
          %v3863 = vmul.f32 1.0, %v3862
          %v3864 = vmul.f32 %v3856, %v3847
          %v3865 = vadd.f32 %v3639, %v3864
          %v3866 = vtanh.pop %v3865
          %v3867 = vsub.f32 1.0, %v3863
          %v3868 = vmul.f32 %v3867, %v3866
          %v3869 = vmul.f32 %v3863, %v3423
          %v3870 = vadd.f32 %v3868, %v3869
          %v3871 = vadd.f32 %v3084, %v3423
          %v3872 = vadd.f32 %v3085, %v3870
          %v3873 = vsel %vm1120, %v3871, 0.0
          %3874 = vadd.xlane.f32.xlu0 %v3873
          %v3875 = vpop.xlane.xlu0 %3874
          %v3876 = vsel %vm1120, %v3872, 0.0
          %3877 = vadd.xlane.f32.xlu0 %v3876
          %v3878 = vpop.xlane.xlu0 %3877
          %v3879 = vmul.f32 %v3875, %v2854
          %v3880 = vmul.f32 %v3878, %v2854
          %v3881 = vsub.f32 %v3871, %v3879
          %v3882 = vsub.f32 %v3872, %v3880
          %v3883 = vmul.f32 %v3881, %v3881
          %v3884 = vmul.f32 %v3882, %v3882
          %v3885 = vsel %vm1120, %v3883, 0.0
          %3886 = vadd.xlane.f32.xlu0 %v3885
          %v3887 = vpop.xlane.xlu0 %3886
          %v3888 = vsel %vm1120, %v3884, 0.0
          %3889 = vadd.xlane.f32.xlu0 %v3888
          %v3890 = vpop.xlane.xlu0 %3889
          %v3891 = vmul.f32 %v3887, %v2854
          %v3892 = vmul.f32 %v3890, %v2854
          %v3893 = vadd.f32 %v3891, 1e-12
          %v3894 = vadd.f32 %v3892, 1e-12
          %v3895 = vrsqrt.pop %v3893
          %v3896 = vrsqrt.pop %v3894
          %v3897 = vmul.f32 %v3881, %v3895
          %v3898 = vmul.f32 %v3882, %v3896
          %v3900 = vlaneseq
          %v3901 = vshrl.u32 %v3900, 7
          %v3902 = vsub.s32 0, %v3901
          %v3903 = vrot.slane %v1112, %v3902
          %v3905 = vmul.f32 %v3897, %v3903
          %v3906 = vmul.f32 %v3898, %v3903
          %v3908 = vlaneseq
          %v3909 = vshrl.u32 %v3908, 7
          %v3910 = vsub.s32 0, %v3909
          %v3911 = vrot.slane %v1113, %v3910
          %v3913 = vadd.f32 %v3905, %v3911
          %v3914 = vadd.f32 %v3906, %v3911
          %3915 = vst.msk [vmem:[#allocation13] sm:$0xff] %vm1120, %v3913
          %3916 = vst.msk [vmem:[#allocation13 + $0x8] sm:$0xff] %vm1120, %v3914
        $region152: #{tpu_custom_call.1} parent=111 // pred_fallthru
          _
        %p3917 = scmp.ne.s32.totalorder %s37, 1
        // Predicated region
        $region153: #{tpu_custom_call.1} parent=111 // pred_check
          %p3918 = pneg %p3917
        $region154: #{tpu_custom_call.1} parent=111 // pred_check_branch
          %3920 = sbr.rel (%p3918) target = $region156
        $region155: #{tpu_custom_call.1} parent=111 // pred_region
          %v3921 = vsel %vm1120, %v3084, 0.0
          %3922 = vadd.xlane.f32.xlu0 %v3921
          %v3923 = vpop.xlane.xlu0 %3922
          %v3924 = vsel %vm1120, %v3085, 0.0
          %3925 = vadd.xlane.f32.xlu0 %v3924
          %v3926 = vpop.xlane.xlu0 %3925
          %v3927 = vmul.f32 %v3923, %v2854
          %v3928 = vmul.f32 %v3926, %v2854
          %v3929 = vsub.f32 %v3084, %v3927
          %v3930 = vsub.f32 %v3085, %v3928
          %v3931 = vmul.f32 %v3929, %v3929
          %v3932 = vmul.f32 %v3930, %v3930
          %v3933 = vsel %vm1120, %v3931, 0.0
          %3934 = vadd.xlane.f32.xlu0 %v3933
          %v3935 = vpop.xlane.xlu0 %3934
          %v3936 = vsel %vm1120, %v3932, 0.0
          %3937 = vadd.xlane.f32.xlu0 %v3936
          %v3938 = vpop.xlane.xlu0 %3937
          %v3939 = vmul.f32 %v3935, %v2854
          %v3940 = vmul.f32 %v3938, %v2854
          %v3941 = vadd.f32 %v3939, 1e-12
          %v3942 = vadd.f32 %v3940, 1e-12
          %v3943 = vrsqrt.pop %v3941
          %v3944 = vrsqrt.pop %v3942
          %v3945 = vmul.f32 %v3929, %v3943
          %v3946 = vmul.f32 %v3930, %v3944
          %v3948 = vlaneseq
          %v3949 = vshrl.u32 %v3948, 7
          %v3950 = vsub.s32 0, %v3949
          %v3951 = vrot.slane %v1112, %v3950
          %v3953 = vmul.f32 %v3945, %v3951
          %v3954 = vmul.f32 %v3946, %v3951
          %v3956 = vlaneseq
          %v3957 = vshrl.u32 %v3956, 7
          %v3958 = vsub.s32 0, %v3957
          %v3959 = vrot.slane %v1113, %v3958
          %v3961 = vadd.f32 %v3953, %v3959
          %v3962 = vadd.f32 %v3954, %v3959
          %3963 = vst.msk [vmem:[#allocation13] sm:$0xff] %vm1120, %v3961
          %3964 = vst.msk [vmem:[#allocation13 + $0x8] sm:$0xff] %vm1120, %v3962
        $region156: #{tpu_custom_call.1} parent=111 // pred_fallthru
          _
        // Predicated region
        $region157: #{tpu_custom_call.1} parent=111 // pred_check
          %p3965 = pneg %p613
        $region158: #{tpu_custom_call.1} parent=111 // pred_check_branch
          %3967 = sbr.rel (%p3965) target = $region160
        $region159: #{tpu_custom_call.1} parent=111 // pred_region
          %s3969 = ssub.s32 256, 256
          %3970 = vsyncadd [#allocation4], %s3969
          %s3971 = sshll.u32 [#allocation13], 4
          %s3972 = int_to_ptr.vmem [resolvable:$true] %s3971
          %3977 = dma.vmem_to_hbm [thread:$0]  %s3972, 256, %s23, [#allocation4], 128, 128, 8
        $region160: #{tpu_custom_call.1} parent=111 // pred_fallthru
          _
        // Predicated region
        $region161: #{tpu_custom_call.1} parent=111 // pred_check
          %p3978 = pneg %p613
        $region162: #{tpu_custom_call.1} parent=111 // pred_check_branch
          %3980 = sbr.rel (%p3978) target = $region164
        $region163: #{tpu_custom_call.1} parent=111 // pred_region
          %3981 = dma.done [#allocation4], 256
        $region164: #{tpu_custom_call.1} parent=111 // pred_fallthru
          _
      $region112: #{tpu_custom_call.1} parent=5 // pred_fallthru
        _
      %p3982 = scmp.le.s32.totalorder 2, %s32
      // Predicated region
      $region165: #{tpu_custom_call.1} parent=5 // pred_check
        %p3983 = pneg %p3982
      $region166: #{tpu_custom_call.1} parent=5 // pred_check_branch
        %3985 = sbr.rel (%p3983) target = $region168
      $region167: #{tpu_custom_call.1} parent=5 // pred_region
        %s3986 = ssub.s32 %s32, 2
      $region168: #{tpu_custom_call.1} parent=5 // pred_fallthru
        _
    $region6: #{tpu_custom_call.1} parent=1 // loop_footer
      %s36 = sadd.s32 1, %s32
    $region7: #{tpu_custom_call.1} parent=1 // loop_footer_branch
      %31 = sbr.rel target = $region3
    $region8: #{tpu_custom_call.1} parent=1 // loop_exit
      _
    %3987 = vsyncpa [#allocation3], 1
    %s3988 = scalar_lea.sflag [#allocation3], 1
    %3989 = vsyncpa %s3988, 1
    %3990 = vsyncpa [#allocation6], 1
    %3991 = vsyncpa [#allocation4], 1
    %s3992 = scalar_lea.sflag [#allocation4], 1
    %3993 = vsyncpa %s3992, 1

</llo_original>
